<compile_context>
chip_gen: v7x
topology: tpu7x:2x2x1
jax: 0.10.0
libtpu: 0.0.40
codegen_flags: <defaults>
</compile_context>

<pallas_src>
import functools

import jax
import jax.numpy as jnp
import numpy as np
from jax.experimental import pallas as pl
from jax.experimental.pallas import tpu as pltpu

HIDDEN = 200        # logical hidden width fixed by the PyTorch module
HIDDEN_PAD = 256    # lane-aligned padded hidden width (zero padding is inert)
LANE = 128


def _round_up(n, m):
    return ((n + m - 1) // m) * m


def _swish(x):
    return x * jax.nn.sigmoid(x)


# ---------------------------------------------------------------------------
# Kernel
# ---------------------------------------------------------------------------
def ensemble_mlp_kernel(
    mu_ref, inv_sigma_ref, maxlv_ref, minlv_ref,
    x_ref,
    w0_ref, b0_ref, w1_ref, b1_ref, w2_ref, b2_ref,
    w3m_ref, b3m_ref, w3v_ref, b3v_ref,
    mean_ref, var_ref,
    *, members_per_block,
):
    mu = mu_ref[...]
    inv_sigma = inv_sigma_ref[...]
    max_lv = maxlv_ref[...]
    min_lv = minlv_ref[...]

    # Static unroll over the ensemble members in this block: gives the MXU
    # several independent matmul chains to overlap (hides result-FIFO drain).
    for e in range(members_per_block):
        # Normalize in f32 (multiply by precomputed 1/sigma, no divide).
        x = (x_ref[e] - mu) * inv_sigma

        h = _swish(jnp.dot(x.astype(jnp.bfloat16), w0_ref[e],
                           preferred_element_type=jnp.float32) + b0_ref[e])
        h = _swish(jnp.dot(h.astype(jnp.bfloat16), w1_ref[e],
                           preferred_element_type=jnp.float32) + b1_ref[e])
        h = _swish(jnp.dot(h.astype(jnp.bfloat16), w2_ref[e],
                           preferred_element_type=jnp.float32) + b2_ref[e])
        hb = h.astype(jnp.bfloat16)

        # Split head: two lane-aligned matmuls instead of slicing one output.
        mean = jnp.dot(hb, w3m_ref[e],
                       preferred_element_type=jnp.float32) + b3m_ref[e]
        logvar = jnp.dot(hb, w3v_ref[e],
                         preferred_element_type=jnp.float32) + b3v_ref[e]

        logvar = max_lv - jax.nn.softplus(max_lv - logvar)
        logvar = min_lv + jax.nn.softplus(logvar - min_lv)

        mean_ref[e] = mean
        var_ref[e] = jnp.exp(logvar)


# ---------------------------------------------------------------------------
# Wrapper
# ---------------------------------------------------------------------------
def pt_model_forward(x, kp):
    """x: (E, B, F) float32.  kp: prepared kernel params (see below).

    Returns (mean, var), each (E, B, out_features // 2) float32.
    """
    E, B, F = x.shape
    half = kp["half"]
    half_pad = kp["w3m"].shape[-1]
    epb = 2 if E % 2 == 0 else 1          # members per grid step
    grid = (E // epb,)

    def ens3(d1, d2):
        # per-step ensemble-member block (2 members at a time)
        return pl.BlockSpec((epb, d1, d2), lambda g: (g, 0, 0))

    def shared(d1, d2):
        # constant-index shared params: DMA'd once, reused across steps
        return pl.BlockSpec((d1, d2), lambda g: (0, 0))

    in_specs = [
        shared(1, F),                     # inputs_mu
        shared(1, F),                     # 1 / inputs_sigma
        shared(1, half_pad),              # max_logvar (padded)
        shared(1, half_pad),              # min_logvar (padded)
        ens3(B, F),                       # x
        ens3(F, HIDDEN_PAD),              # lin0_w
        ens3(1, HIDDEN_PAD),              # lin0_b
        ens3(HIDDEN_PAD, HIDDEN_PAD),     # lin1_w
        ens3(1, HIDDEN_PAD),              # lin1_b
        ens3(HIDDEN_PAD, HIDDEN_PAD),     # lin2_w
        ens3(1, HIDDEN_PAD),              # lin2_b
        ens3(HIDDEN_PAD, half_pad),       # lin3_w (mean head)
        ens3(1, half_pad),                # lin3_b (mean head)
        ens3(HIDDEN_PAD, half_pad),       # lin3_w (logvar head)
        ens3(1, half_pad),                # lin3_b (logvar head)
    ]
    out_specs = (ens3(B, half_pad), ens3(B, half_pad))
    out_shape = (
        jax.ShapeDtypeStruct((E, B, half_pad), jnp.float32),
        jax.ShapeDtypeStruct((E, B, half_pad), jnp.float32),
    )

    fn = pl.pallas_call(
        functools.partial(ensemble_mlp_kernel, members_per_block=epb),
        out_shape=out_shape,
        grid_spec=pltpu.PrefetchScalarGridSpec(
            num_scalar_prefetch=0,
            grid=grid,
            in_specs=in_specs,
            out_specs=out_specs,
        ),
        compiler_params=pltpu.CompilerParams(
            dimension_semantics=("parallel",),   # v7x: 2 TCs take 1 step each
        ),
    )
    mean_pad, var_pad = fn(
        kp["mu"], kp["inv_sigma"], kp["max_lv_pad"], kp["min_lv_pad"],
        x,
        kp["w0"], kp["b0"], kp["w1"], kp["b1"], kp["w2"], kp["b2"],
        kp["w3m"], kp["b3m"], kp["w3v"], kp["b3v"],
    )
    # Slice the lane-padded outputs back to the true head width.
    return mean_pad[:, :, :half], var_pad[:, :, :half]


# ---------------------------------------------------------------------------
# Parameter construction (raw = PyTorch layout) and one-time kernel transform
# ---------------------------------------------------------------------------
def get_affine_params(key, ensemble_size, in_f, out_f):
    # Standard PETS init: truncated normal, std = 1/(2*sqrt(in_f)), zero bias.
    w = jax.random.truncated_normal(
        key, -2.0, 2.0, (ensemble_size, in_f, out_f), dtype=jnp.float32
    ) / (2.0 * jnp.sqrt(float(in_f)))
    b = jnp.zeros((ensemble_size, 1, out_f), dtype=jnp.float32)
    return w, b


def init_params(key, ensemble_size, in_features, out_features):
    k0, k1, k2, k3 = jax.random.split(key, 4)
    lin0_w, lin0_b = get_affine_params(k0, ensemble_size, in_features, HIDDEN)
    lin1_w, lin1_b = get_affine_params(k1, ensemble_size, HIDDEN, HIDDEN)
    lin2_w, lin2_b = get_affine_params(k2, ensemble_size, HIDDEN, HIDDEN)
    lin3_w, lin3_b = get_affine_params(k3, ensemble_size, HIDDEN, out_features)
    half = out_features // 2
    return {
        "lin0_w": lin0_w, "lin0_b": lin0_b,
        "lin1_w": lin1_w, "lin1_b": lin1_b,
        "lin2_w": lin2_w, "lin2_b": lin2_b,
        "lin3_w": lin3_w, "lin3_b": lin3_b,
        # sigma set to ones (as if fit_input_stats had been called) to avoid
        # the degenerate divide-by-zero of the raw __init__ value.
        "inputs_mu": jnp.zeros((1, in_features), jnp.float32),
        "inputs_sigma": jnp.ones((1, in_features), jnp.float32),
        "max_logvar": jnp.ones((1, half), jnp.float32) / 2.0,
        "min_logvar": -jnp.ones((1, half), jnp.float32) * 10.0,
    }


def prepare_kernel_params(params):
    """One-time transform: split lin3 head, zero-pad to lane-aligned widths,
    cast weights to bf16, precompute 1/sigma.  Done once at setup, not per call."""
    half = params["max_logvar"].shape[-1]
    half_pad = _round_up(half, LANE)

    def pad2(a, rows, cols):
        e, r0, c0 = a.shape
        return jnp.pad(a, ((0, 0), (0, rows - r0), (0, cols - c0)))

    w0 = pad2(params["lin0_w"], params["lin0_w"].shape[1], HIDDEN_PAD)
    w1 = pad2(params["lin1_w"], HIDDEN_PAD, HIDDEN_PAD)
    w2 = pad2(params["lin2_w"], HIDDEN_PAD, HIDDEN_PAD)
    b0 = pad2(params["lin0_b"], 1, HIDDEN_PAD)
    b1 = pad2(params["lin1_b"], 1, HIDDEN_PAD)
    b2 = pad2(params["lin2_b"], 1, HIDDEN_PAD)

    w3, b3 = params["lin3_w"], params["lin3_b"]
    w3m = pad2(w3[..., :half], HIDDEN_PAD, half_pad)
    w3v = pad2(w3[..., half:], HIDDEN_PAD, half_pad)
    b3m = pad2(b3[..., :half], 1, half_pad)
    b3v = pad2(b3[..., half:], 1, half_pad)

    max_lv_pad = jnp.pad(params["max_logvar"],
                         ((0, 0), (0, half_pad - half)), mode="edge")
    min_lv_pad = jnp.pad(params["min_logvar"],
                         ((0, 0), (0, half_pad - half)), mode="edge")

    return {
        "mu": params["inputs_mu"],
        "inv_sigma": 1.0 / params["inputs_sigma"],
        "max_lv_pad": max_lv_pad,
        "min_lv_pad": min_lv_pad,
        # weights in bf16 (HBM traffic halved); biases stay f32 (tiny).
        "w0": w0.astype(jnp.bfloat16), "b0": b0,
        "w1": w1.astype(jnp.bfloat16), "b1": b1,
        "w2": w2.astype(jnp.bfloat16), "b2": b2,
        "w3m": w3m.astype(jnp.bfloat16), "b3m": b3m,
        "w3v": w3v.astype(jnp.bfloat16), "b3v": b3v,
        "half": half,
    }


# ---------------------------------------------------------------------------
# Pure-JAX reference (original f32 semantics of the PyTorch forward)
# ---------------------------------------------------------------------------
def reference_forward(x, params):
    h = (x - params["inputs_mu"]) / params["inputs_sigma"]
    h = _swish(jnp.matmul(h, params["lin0_w"]) + params["lin0_b"])
    h = _swish(jnp.matmul(h, params["lin1_w"]) + params["lin1_b"])
    h = _swish(jnp.matmul(h, params["lin2_w"]) + params["lin2_b"])
    out = jnp.matmul(h, params["lin3_w"]) + params["lin3_b"]
    half = out.shape[-1] // 2
    mean = out[:, :, :half]
    logvar = out[:, :, half:]
    logvar = params["max_logvar"] - jax.nn.softplus(params["max_logvar"] - logvar)
    logvar = params["min_logvar"] + jax.nn.softplus(logvar - params["min_logvar"])
    return mean, jnp.exp(logvar)


if __name__ == "__main__":
    ENSEMBLE = 4
    BATCH = 32
    IN_FEATURES = 16
    OUT_FEATURES = 8   # must be even (mean / logvar split)

    key = jax.random.PRNGKey(0)
    k_params, k_x = jax.random.split(key)
    params = init_params(k_params, ENSEMBLE, IN_FEATURES, OUT_FEATURES)
    kparams = prepare_kernel_params(params)          # one-time setup transform
    x = jax.random.normal(k_x, (ENSEMBLE, BATCH, IN_FEATURES), dtype=jnp.float32)

    mean, var = pt_model_forward(x, kparams)
    mean, var = jax.block_until_ready((mean, var))

    # bf16 weights/activations => relaxed tolerance vs. the f32 reference.
    ref_mean, ref_var = reference_forward(x, params)
    np.testing.assert_allclose(np.asarray(mean), np.asarray(ref_mean),
                               rtol=5e-2, atol=5e-2)
    np.testing.assert_allclose(np.asarray(var), np.asarray(ref_var),
                               rtol=5e-2, atol=5e-2)

    print("KERNEL_OK")
</pallas_src>

<mosaic_0001>
module attributes {stable_mosaic.version = 11 : i64} {
  func.func @ensemble_mlp_kernel(%arg0: i32, %arg1: memref<1x16xf32, #tpu.memory_space<vmem>>, %arg2: memref<1x16xf32, #tpu.memory_space<vmem>>, %arg3: memref<1x128xf32, #tpu.memory_space<vmem>>, %arg4: memref<1x128xf32, #tpu.memory_space<vmem>>, %arg5: memref<2x32x16xf32, #tpu.memory_space<vmem>>, %arg6: memref<2x16x256xbf16, #tpu.memory_space<vmem>>, %arg7: memref<2x1x256xf32, #tpu.memory_space<vmem>>, %arg8: memref<2x256x256xbf16, #tpu.memory_space<vmem>>, %arg9: memref<2x1x256xf32, #tpu.memory_space<vmem>>, %arg10: memref<2x256x256xbf16, #tpu.memory_space<vmem>>, %arg11: memref<2x1x256xf32, #tpu.memory_space<vmem>>, %arg12: memref<2x256x128xbf16, #tpu.memory_space<vmem>>, %arg13: memref<2x1x128xf32, #tpu.memory_space<vmem>>, %arg14: memref<2x256x128xbf16, #tpu.memory_space<vmem>>, %arg15: memref<2x1x128xf32, #tpu.memory_space<vmem>>, %arg16: memref<2x32x128xf32, #tpu.memory_space<vmem>>, %arg17: memref<2x32x128xf32, #tpu.memory_space<vmem>>) attributes {dimension_semantics = [#tpu.dimension_semantics<parallel>], iteration_bounds = array<i64: 2>, scalar_prefetch = 0 : i64, scratch_operands = 0 : i64, tpu.core_type = #tpu.core_type<tc>, window_params = [{pipeline_mode = #tpu.pipeline_mode<synchronous>, transform_indices = @transform_0, window_bounds = array<i64: 1, 16>}, {pipeline_mode = #tpu.pipeline_mode<synchronous>, transform_indices = @transform_1, window_bounds = array<i64: 1, 16>}, {pipeline_mode = #tpu.pipeline_mode<synchronous>, transform_indices = @transform_2, window_bounds = array<i64: 1, 128>}, {pipeline_mode = #tpu.pipeline_mode<synchronous>, transform_indices = @transform_3, window_bounds = array<i64: 1, 128>}, {transform_indices = @transform_4, window_bounds = array<i64: 2, 32, 16>}, {transform_indices = @transform_5, window_bounds = array<i64: 2, 16, 256>}, {transform_indices = @transform_6, window_bounds = array<i64: 2, 1, 256>}, {transform_indices = @transform_7, window_bounds = array<i64: 2, 256, 256>}, {transform_indices = @transform_8, window_bounds = array<i64: 2, 1, 256>}, {transform_indices = @transform_9, window_bounds = array<i64: 2, 256, 256>}, {transform_indices = @transform_10, window_bounds = array<i64: 2, 1, 256>}, {transform_indices = @transform_11, window_bounds = array<i64: 2, 256, 128>}, {transform_indices = @transform_12, window_bounds = array<i64: 2, 1, 128>}, {transform_indices = @transform_13, window_bounds = array<i64: 2, 256, 128>}, {transform_indices = @transform_14, window_bounds = array<i64: 2, 1, 128>}, {transform_indices = @transform_15, window_bounds = array<i64: 2, 32, 128>}, {transform_indices = @transform_16, window_bounds = array<i64: 2, 32, 128>}]} {
    %c0 = arith.constant 0 : index
    %c0_0 = arith.constant 0 : index
    %0 = vector.load %arg1[%c0, %c0_0] : memref<1x16xf32, #tpu.memory_space<vmem>>, vector<1x16xf32>
    %c0_1 = arith.constant 0 : index
    %c0_2 = arith.constant 0 : index
    %1 = vector.load %arg2[%c0_1, %c0_2] : memref<1x16xf32, #tpu.memory_space<vmem>>, vector<1x16xf32>
    %c0_3 = arith.constant 0 : index
    %c0_4 = arith.constant 0 : index
    %2 = vector.load %arg3[%c0_3, %c0_4] : memref<1x128xf32, #tpu.memory_space<vmem>>, vector<1x128xf32>
    %c0_5 = arith.constant 0 : index
    %c0_6 = arith.constant 0 : index
    %3 = vector.load %arg4[%c0_5, %c0_6] : memref<1x128xf32, #tpu.memory_space<vmem>>, vector<1x128xf32>
    %c0_7 = arith.constant 0 : index
    %c0_8 = arith.constant 0 : index
    %c0_9 = arith.constant 0 : index
    %4 = vector.load %arg5[%c0_7, %c0_8, %c0_9] : memref<2x32x16xf32, #tpu.memory_space<vmem>>, vector<1x32x16xf32>
    %5 = vector.shape_cast %4 : vector<1x32x16xf32> to vector<32x16xf32>
    %6 = vector.broadcast %0 : vector<1x16xf32> to vector<32x16xf32>
    %7 = arith.subf %5, %6 : vector<32x16xf32>
    %8 = vector.broadcast %1 : vector<1x16xf32> to vector<32x16xf32>
    %9 = arith.mulf %7, %8 : vector<32x16xf32>
    %10 = arith.truncf %9 : vector<32x16xf32> to vector<32x16xbf16>
    %c0_10 = arith.constant 0 : index
    %c0_11 = arith.constant 0 : index
    %c0_12 = arith.constant 0 : index
    %11 = vector.load %arg6[%c0_10, %c0_11, %c0_12] : memref<2x16x256xbf16, #tpu.memory_space<vmem>>, vector<1x16x256xbf16>
    %12 = vector.shape_cast %11 : vector<1x16x256xbf16> to vector<16x256xbf16>
    %cst = arith.constant dense<0.000000e+00> : vector<32x256xf32>
    %13 = tpu.matmul %10, %12, %cst {dimension_numbers = #tpu.dot_dimension_numbers<[1], [0], [0], [1], [0, 0, 1, 1], [], []>} : vector<32x16xbf16>, vector<16x256xbf16>, vector<32x256xf32> -> vector<32x256xf32>
    %c0_13 = arith.constant 0 : index
    %c0_14 = arith.constant 0 : index
    %c0_15 = arith.constant 0 : index
    %14 = vector.load %arg7[%c0_13, %c0_14, %c0_15] : memref<2x1x256xf32, #tpu.memory_space<vmem>>, vector<1x1x256xf32>
    %15 = vector.shape_cast %14 : vector<1x1x256xf32> to vector<1x256xf32>
    %16 = vector.broadcast %15 : vector<1x256xf32> to vector<32x256xf32>
    %17 = arith.addf %13, %16 : vector<32x256xf32>
    %18 = arith.negf %17 : vector<32x256xf32>
    %19 = math.exp %18 : vector<32x256xf32>
    %cst_16 = arith.constant 1.000000e+00 : f32
    %20 = vector.broadcast %cst_16 : f32 to vector<32x256xf32>
    %21 = arith.addf %20, %19 : vector<32x256xf32>
    %22 = arith.divf %20, %21 : vector<32x256xf32>
    %23 = arith.mulf %17, %22 : vector<32x256xf32>
    %24 = arith.truncf %23 : vector<32x256xf32> to vector<32x256xbf16>
    %c0_17 = arith.constant 0 : index
    %c0_18 = arith.constant 0 : index
    %c0_19 = arith.constant 0 : index
    %25 = vector.load %arg8[%c0_17, %c0_18, %c0_19] : memref<2x256x256xbf16, #tpu.memory_space<vmem>>, vector<1x256x256xbf16>
    %26 = vector.shape_cast %25 : vector<1x256x256xbf16> to vector<256x256xbf16>
    %cst_20 = arith.constant dense<0.000000e+00> : vector<32x256xf32>
    %27 = tpu.matmul %24, %26, %cst_20 {dimension_numbers = #tpu.dot_dimension_numbers<[1], [0], [0], [1], [0, 0, 1, 1], [], []>} : vector<32x256xbf16>, vector<256x256xbf16>, vector<32x256xf32> -> vector<32x256xf32>
    %c0_21 = arith.constant 0 : index
    %c0_22 = arith.constant 0 : index
    %c0_23 = arith.constant 0 : index
    %28 = vector.load %arg9[%c0_21, %c0_22, %c0_23] : memref<2x1x256xf32, #tpu.memory_space<vmem>>, vector<1x1x256xf32>
    %29 = vector.shape_cast %28 : vector<1x1x256xf32> to vector<1x256xf32>
    %30 = vector.broadcast %29 : vector<1x256xf32> to vector<32x256xf32>
    %31 = arith.addf %27, %30 : vector<32x256xf32>
    %32 = arith.negf %31 : vector<32x256xf32>
    %33 = math.exp %32 : vector<32x256xf32>
    %cst_24 = arith.constant 1.000000e+00 : f32
    %34 = vector.broadcast %cst_24 : f32 to vector<32x256xf32>
    %35 = arith.addf %34, %33 : vector<32x256xf32>
    %36 = arith.divf %34, %35 : vector<32x256xf32>
    %37 = arith.mulf %31, %36 : vector<32x256xf32>
    %38 = arith.truncf %37 : vector<32x256xf32> to vector<32x256xbf16>
    %c0_25 = arith.constant 0 : index
    %c0_26 = arith.constant 0 : index
    %c0_27 = arith.constant 0 : index
    %39 = vector.load %arg10[%c0_25, %c0_26, %c0_27] : memref<2x256x256xbf16, #tpu.memory_space<vmem>>, vector<1x256x256xbf16>
    %40 = vector.shape_cast %39 : vector<1x256x256xbf16> to vector<256x256xbf16>
    %cst_28 = arith.constant dense<0.000000e+00> : vector<32x256xf32>
    %41 = tpu.matmul %38, %40, %cst_28 {dimension_numbers = #tpu.dot_dimension_numbers<[1], [0], [0], [1], [0, 0, 1, 1], [], []>} : vector<32x256xbf16>, vector<256x256xbf16>, vector<32x256xf32> -> vector<32x256xf32>
    %c0_29 = arith.constant 0 : index
    %c0_30 = arith.constant 0 : index
    %c0_31 = arith.constant 0 : index
    %42 = vector.load %arg11[%c0_29, %c0_30, %c0_31] : memref<2x1x256xf32, #tpu.memory_space<vmem>>, vector<1x1x256xf32>
    %43 = vector.shape_cast %42 : vector<1x1x256xf32> to vector<1x256xf32>
    %44 = vector.broadcast %43 : vector<1x256xf32> to vector<32x256xf32>
    %45 = arith.addf %41, %44 : vector<32x256xf32>
    %46 = arith.negf %45 : vector<32x256xf32>
    %47 = math.exp %46 : vector<32x256xf32>
    %cst_32 = arith.constant 1.000000e+00 : f32
    %48 = vector.broadcast %cst_32 : f32 to vector<32x256xf32>
    %49 = arith.addf %48, %47 : vector<32x256xf32>
    %50 = arith.divf %48, %49 : vector<32x256xf32>
    %51 = arith.mulf %45, %50 : vector<32x256xf32>
    %52 = arith.truncf %51 : vector<32x256xf32> to vector<32x256xbf16>
    %c0_33 = arith.constant 0 : index
    %c0_34 = arith.constant 0 : index
    %c0_35 = arith.constant 0 : index
    %53 = vector.load %arg12[%c0_33, %c0_34, %c0_35] : memref<2x256x128xbf16, #tpu.memory_space<vmem>>, vector<1x256x128xbf16>
    %54 = vector.shape_cast %53 : vector<1x256x128xbf16> to vector<256x128xbf16>
    %cst_36 = arith.constant dense<0.000000e+00> : vector<32x128xf32>
    %55 = tpu.matmul %52, %54, %cst_36 {dimension_numbers = #tpu.dot_dimension_numbers<[1], [0], [0], [1], [0, 0, 1, 1], [], []>} : vector<32x256xbf16>, vector<256x128xbf16>, vector<32x128xf32> -> vector<32x128xf32>
    %c0_37 = arith.constant 0 : index
    %c0_38 = arith.constant 0 : index
    %c0_39 = arith.constant 0 : index
    %56 = vector.load %arg13[%c0_37, %c0_38, %c0_39] : memref<2x1x128xf32, #tpu.memory_space<vmem>>, vector<1x1x128xf32>
    %57 = vector.shape_cast %56 : vector<1x1x128xf32> to vector<1x128xf32>
    %58 = vector.broadcast %57 : vector<1x128xf32> to vector<32x128xf32>
    %59 = arith.addf %55, %58 : vector<32x128xf32>
    %c0_40 = arith.constant 0 : index
    %c0_41 = arith.constant 0 : index
    %c0_42 = arith.constant 0 : index
    %60 = vector.load %arg14[%c0_40, %c0_41, %c0_42] : memref<2x256x128xbf16, #tpu.memory_space<vmem>>, vector<1x256x128xbf16>
    %61 = vector.shape_cast %60 : vector<1x256x128xbf16> to vector<256x128xbf16>
    %cst_43 = arith.constant dense<0.000000e+00> : vector<32x128xf32>
    %62 = tpu.matmul %52, %61, %cst_43 {dimension_numbers = #tpu.dot_dimension_numbers<[1], [0], [0], [1], [0, 0, 1, 1], [], []>} : vector<32x256xbf16>, vector<256x128xbf16>, vector<32x128xf32> -> vector<32x128xf32>
    %c0_44 = arith.constant 0 : index
    %c0_45 = arith.constant 0 : index
    %c0_46 = arith.constant 0 : index
    %63 = vector.load %arg15[%c0_44, %c0_45, %c0_46] : memref<2x1x128xf32, #tpu.memory_space<vmem>>, vector<1x1x128xf32>
    %64 = vector.shape_cast %63 : vector<1x1x128xf32> to vector<1x128xf32>
    %65 = vector.broadcast %64 : vector<1x128xf32> to vector<32x128xf32>
    %66 = arith.addf %62, %65 : vector<32x128xf32>
    %67 = vector.broadcast %2 : vector<1x128xf32> to vector<32x128xf32>
    %68 = arith.subf %67, %66 : vector<32x128xf32>
    %cst_47 = arith.constant 0.000000e+00 : f32
    %69 = vector.broadcast %cst_47 : f32 to vector<32x128xf32>
    %70 = arith.maximumf %68, %69 : vector<32x128xf32>
    %71 = vector.broadcast %cst_47 : f32 to vector<32x128xf32>
    %72 = arith.subf %68, %71 : vector<32x128xf32>
    %73 = arith.cmpf one, %72, %72 : vector<32x128xf32>
    %74 = vector.broadcast %cst_47 : f32 to vector<32x128xf32>
    %75 = arith.addf %68, %74 : vector<32x128xf32>
    %76 = math.absf %72 : vector<32x128xf32>
    %cst_48 = arith.constant 0.000000e+00 : f32
    %77 = vector.broadcast %cst_48 : f32 to vector<32x128xf32>
    %78 = arith.subf %77, %76 : vector<32x128xf32>
    %79 = math.exp %78 : vector<32x128xf32>
    %80 = math.log1p %79 : vector<32x128xf32>
    %81 = arith.addf %70, %80 : vector<32x128xf32>
    %82 = arith.select %73, %75, %81 : vector<32x128xi1>, vector<32x128xf32>
    %83 = vector.broadcast %2 : vector<1x128xf32> to vector<32x128xf32>
    %84 = arith.subf %83, %82 : vector<32x128xf32>
    %85 = vector.broadcast %3 : vector<1x128xf32> to vector<32x128xf32>
    %86 = arith.subf %84, %85 : vector<32x128xf32>
    %cst_49 = arith.constant 0.000000e+00 : f32
    %87 = vector.broadcast %cst_49 : f32 to vector<32x128xf32>
    %88 = arith.maximumf %86, %87 : vector<32x128xf32>
    %89 = vector.broadcast %cst_49 : f32 to vector<32x128xf32>
    %90 = arith.subf %86, %89 : vector<32x128xf32>
    %91 = arith.cmpf one, %90, %90 : vector<32x128xf32>
    %92 = vector.broadcast %cst_49 : f32 to vector<32x128xf32>
    %93 = arith.addf %86, %92 : vector<32x128xf32>
    %94 = math.absf %90 : vector<32x128xf32>
    %cst_50 = arith.constant 0.000000e+00 : f32
    %95 = vector.broadcast %cst_50 : f32 to vector<32x128xf32>
    %96 = arith.subf %95, %94 : vector<32x128xf32>
    %97 = math.exp %96 : vector<32x128xf32>
    %98 = math.log1p %97 : vector<32x128xf32>
    %99 = arith.addf %88, %98 : vector<32x128xf32>
    %100 = arith.select %91, %93, %99 : vector<32x128xi1>, vector<32x128xf32>
    %101 = vector.broadcast %3 : vector<1x128xf32> to vector<32x128xf32>
    %102 = arith.addf %101, %100 : vector<32x128xf32>
    %c0_51 = arith.constant 0 : index
    %c0_52 = arith.constant 0 : index
    %c0_53 = arith.constant 0 : index
    %103 = vector.load %arg16[%c0_51, %c0_52, %c0_53] : memref<2x32x128xf32, #tpu.memory_space<vmem>>, vector<1x32x128xf32>
    %104 = vector.shape_cast %103 : vector<1x32x128xf32> to vector<32x128xf32>
    %105 = vector.shape_cast %59 : vector<32x128xf32> to vector<1x32x128xf32>
    tpu.vector_store %arg16[%c0_51, %c0_52, %c0_53], %105 {strides = array<i32>} : memref<2x32x128xf32, #tpu.memory_space<vmem>>, vector<1x32x128xf32>,
    %106 = math.exp %102 : vector<32x128xf32>
    %c0_54 = arith.constant 0 : index
    %c0_55 = arith.constant 0 : index
    %c0_56 = arith.constant 0 : index
    %107 = vector.load %arg17[%c0_54, %c0_55, %c0_56] : memref<2x32x128xf32, #tpu.memory_space<vmem>>, vector<1x32x128xf32>
    %108 = vector.shape_cast %107 : vector<1x32x128xf32> to vector<32x128xf32>
    %109 = vector.shape_cast %106 : vector<32x128xf32> to vector<1x32x128xf32>
    tpu.vector_store %arg17[%c0_54, %c0_55, %c0_56], %109 {strides = array<i32>} : memref<2x32x128xf32, #tpu.memory_space<vmem>>, vector<1x32x128xf32>,
    %c1 = arith.constant 1 : index
    %c0_57 = arith.constant 0 : index
    %c0_58 = arith.constant 0 : index
    %110 = vector.load %arg5[%c1, %c0_57, %c0_58] : memref<2x32x16xf32, #tpu.memory_space<vmem>>, vector<1x32x16xf32>
    %111 = vector.shape_cast %110 : vector<1x32x16xf32> to vector<32x16xf32>
    %112 = vector.broadcast %0 : vector<1x16xf32> to vector<32x16xf32>
    %113 = arith.subf %111, %112 : vector<32x16xf32>
    %114 = vector.broadcast %1 : vector<1x16xf32> to vector<32x16xf32>
    %115 = arith.mulf %113, %114 : vector<32x16xf32>
    %116 = arith.truncf %115 : vector<32x16xf32> to vector<32x16xbf16>
    %c1_59 = arith.constant 1 : index
    %c0_60 = arith.constant 0 : index
    %c0_61 = arith.constant 0 : index
    %117 = vector.load %arg6[%c1_59, %c0_60, %c0_61] : memref<2x16x256xbf16, #tpu.memory_space<vmem>>, vector<1x16x256xbf16>
    %118 = vector.shape_cast %117 : vector<1x16x256xbf16> to vector<16x256xbf16>
    %cst_62 = arith.constant dense<0.000000e+00> : vector<32x256xf32>
    %119 = tpu.matmul %116, %118, %cst_62 {dimension_numbers = #tpu.dot_dimension_numbers<[1], [0], [0], [1], [0, 0, 1, 1], [], []>} : vector<32x16xbf16>, vector<16x256xbf16>, vector<32x256xf32> -> vector<32x256xf32>
    %c1_63 = arith.constant 1 : index
    %c0_64 = arith.constant 0 : index
    %c0_65 = arith.constant 0 : index
    %120 = vector.load %arg7[%c1_63, %c0_64, %c0_65] : memref<2x1x256xf32, #tpu.memory_space<vmem>>, vector<1x1x256xf32>
    %121 = vector.shape_cast %120 : vector<1x1x256xf32> to vector<1x256xf32>
    %122 = vector.broadcast %121 : vector<1x256xf32> to vector<32x256xf32>
    %123 = arith.addf %119, %122 : vector<32x256xf32>
    %124 = arith.negf %123 : vector<32x256xf32>
    %125 = math.exp %124 : vector<32x256xf32>
    %cst_66 = arith.constant 1.000000e+00 : f32
    %126 = vector.broadcast %cst_66 : f32 to vector<32x256xf32>
    %127 = arith.addf %126, %125 : vector<32x256xf32>
    %128 = arith.divf %126, %127 : vector<32x256xf32>
    %129 = arith.mulf %123, %128 : vector<32x256xf32>
    %130 = arith.truncf %129 : vector<32x256xf32> to vector<32x256xbf16>
    %c1_67 = arith.constant 1 : index
    %c0_68 = arith.constant 0 : index
    %c0_69 = arith.constant 0 : index
    %131 = vector.load %arg8[%c1_67, %c0_68, %c0_69] : memref<2x256x256xbf16, #tpu.memory_space<vmem>>, vector<1x256x256xbf16>
    %132 = vector.shape_cast %131 : vector<1x256x256xbf16> to vector<256x256xbf16>
    %cst_70 = arith.constant dense<0.000000e+00> : vector<32x256xf32>
    %133 = tpu.matmul %130, %132, %cst_70 {dimension_numbers = #tpu.dot_dimension_numbers<[1], [0], [0], [1], [0, 0, 1, 1], [], []>} : vector<32x256xbf16>, vector<256x256xbf16>, vector<32x256xf32> -> vector<32x256xf32>
    %c1_71 = arith.constant 1 : index
    %c0_72 = arith.constant 0 : index
    %c0_73 = arith.constant 0 : index
    %134 = vector.load %arg9[%c1_71, %c0_72, %c0_73] : memref<2x1x256xf32, #tpu.memory_space<vmem>>, vector<1x1x256xf32>
    %135 = vector.shape_cast %134 : vector<1x1x256xf32> to vector<1x256xf32>
    %136 = vector.broadcast %135 : vector<1x256xf32> to vector<32x256xf32>
    %137 = arith.addf %133, %136 : vector<32x256xf32>
    %138 = arith.negf %137 : vector<32x256xf32>
    %139 = math.exp %138 : vector<32x256xf32>
    %cst_74 = arith.constant 1.000000e+00 : f32
    %140 = vector.broadcast %cst_74 : f32 to vector<32x256xf32>
    %141 = arith.addf %140, %139 : vector<32x256xf32>
    %142 = arith.divf %140, %141 : vector<32x256xf32>
    %143 = arith.mulf %137, %142 : vector<32x256xf32>
    %144 = arith.truncf %143 : vector<32x256xf32> to vector<32x256xbf16>
    %c1_75 = arith.constant 1 : index
    %c0_76 = arith.constant 0 : index
    %c0_77 = arith.constant 0 : index
    %145 = vector.load %arg10[%c1_75, %c0_76, %c0_77] : memref<2x256x256xbf16, #tpu.memory_space<vmem>>, vector<1x256x256xbf16>
    %146 = vector.shape_cast %145 : vector<1x256x256xbf16> to vector<256x256xbf16>
    %cst_78 = arith.constant dense<0.000000e+00> : vector<32x256xf32>
    %147 = tpu.matmul %144, %146, %cst_78 {dimension_numbers = #tpu.dot_dimension_numbers<[1], [0], [0], [1], [0, 0, 1, 1], [], []>} : vector<32x256xbf16>, vector<256x256xbf16>, vector<32x256xf32> -> vector<32x256xf32>
    %c1_79 = arith.constant 1 : index
    %c0_80 = arith.constant 0 : index
    %c0_81 = arith.constant 0 : index
    %148 = vector.load %arg11[%c1_79, %c0_80, %c0_81] : memref<2x1x256xf32, #tpu.memory_space<vmem>>, vector<1x1x256xf32>
    %149 = vector.shape_cast %148 : vector<1x1x256xf32> to vector<1x256xf32>
    %150 = vector.broadcast %149 : vector<1x256xf32> to vector<32x256xf32>
    %151 = arith.addf %147, %150 : vector<32x256xf32>
    %152 = arith.negf %151 : vector<32x256xf32>
    %153 = math.exp %152 : vector<32x256xf32>
    %cst_82 = arith.constant 1.000000e+00 : f32
    %154 = vector.broadcast %cst_82 : f32 to vector<32x256xf32>
    %155 = arith.addf %154, %153 : vector<32x256xf32>
    %156 = arith.divf %154, %155 : vector<32x256xf32>
    %157 = arith.mulf %151, %156 : vector<32x256xf32>
    %158 = arith.truncf %157 : vector<32x256xf32> to vector<32x256xbf16>
    %c1_83 = arith.constant 1 : index
    %c0_84 = arith.constant 0 : index
    %c0_85 = arith.constant 0 : index
    %159 = vector.load %arg12[%c1_83, %c0_84, %c0_85] : memref<2x256x128xbf16, #tpu.memory_space<vmem>>, vector<1x256x128xbf16>
    %160 = vector.shape_cast %159 : vector<1x256x128xbf16> to vector<256x128xbf16>
    %cst_86 = arith.constant dense<0.000000e+00> : vector<32x128xf32>
    %161 = tpu.matmul %158, %160, %cst_86 {dimension_numbers = #tpu.dot_dimension_numbers<[1], [0], [0], [1], [0, 0, 1, 1], [], []>} : vector<32x256xbf16>, vector<256x128xbf16>, vector<32x128xf32> -> vector<32x128xf32>
    %c1_87 = arith.constant 1 : index
    %c0_88 = arith.constant 0 : index
    %c0_89 = arith.constant 0 : index
    %162 = vector.load %arg13[%c1_87, %c0_88, %c0_89] : memref<2x1x128xf32, #tpu.memory_space<vmem>>, vector<1x1x128xf32>
    %163 = vector.shape_cast %162 : vector<1x1x128xf32> to vector<1x128xf32>
    %164 = vector.broadcast %163 : vector<1x128xf32> to vector<32x128xf32>
    %165 = arith.addf %161, %164 : vector<32x128xf32>
    %c1_90 = arith.constant 1 : index
    %c0_91 = arith.constant 0 : index
    %c0_92 = arith.constant 0 : index
    %166 = vector.load %arg14[%c1_90, %c0_91, %c0_92] : memref<2x256x128xbf16, #tpu.memory_space<vmem>>, vector<1x256x128xbf16>
    %167 = vector.shape_cast %166 : vector<1x256x128xbf16> to vector<256x128xbf16>
    %cst_93 = arith.constant dense<0.000000e+00> : vector<32x128xf32>
    %168 = tpu.matmul %158, %167, %cst_93 {dimension_numbers = #tpu.dot_dimension_numbers<[1], [0], [0], [1], [0, 0, 1, 1], [], []>} : vector<32x256xbf16>, vector<256x128xbf16>, vector<32x128xf32> -> vector<32x128xf32>
    %c1_94 = arith.constant 1 : index
    %c0_95 = arith.constant 0 : index
    %c0_96 = arith.constant 0 : index
    %169 = vector.load %arg15[%c1_94, %c0_95, %c0_96] : memref<2x1x128xf32, #tpu.memory_space<vmem>>, vector<1x1x128xf32>
    %170 = vector.shape_cast %169 : vector<1x1x128xf32> to vector<1x128xf32>
    %171 = vector.broadcast %170 : vector<1x128xf32> to vector<32x128xf32>
    %172 = arith.addf %168, %171 : vector<32x128xf32>
    %173 = vector.broadcast %2 : vector<1x128xf32> to vector<32x128xf32>
    %174 = arith.subf %173, %172 : vector<32x128xf32>
    %cst_97 = arith.constant 0.000000e+00 : f32
    %175 = vector.broadcast %cst_97 : f32 to vector<32x128xf32>
    %176 = arith.maximumf %174, %175 : vector<32x128xf32>
    %177 = vector.broadcast %cst_97 : f32 to vector<32x128xf32>
    %178 = arith.subf %174, %177 : vector<32x128xf32>
    %179 = arith.cmpf one, %178, %178 : vector<32x128xf32>
    %180 = vector.broadcast %cst_97 : f32 to vector<32x128xf32>
    %181 = arith.addf %174, %180 : vector<32x128xf32>
    %182 = math.absf %178 : vector<32x128xf32>
    %cst_98 = arith.constant 0.000000e+00 : f32
    %183 = vector.broadcast %cst_98 : f32 to vector<32x128xf32>
    %184 = arith.subf %183, %182 : vector<32x128xf32>
    %185 = math.exp %184 : vector<32x128xf32>
    %186 = math.log1p %185 : vector<32x128xf32>
    %187 = arith.addf %176, %186 : vector<32x128xf32>
    %188 = arith.select %179, %181, %187 : vector<32x128xi1>, vector<32x128xf32>
    %189 = vector.broadcast %2 : vector<1x128xf32> to vector<32x128xf32>
    %190 = arith.subf %189, %188 : vector<32x128xf32>
    %191 = vector.broadcast %3 : vector<1x128xf32> to vector<32x128xf32>
    %192 = arith.subf %190, %191 : vector<32x128xf32>
    %cst_99 = arith.constant 0.000000e+00 : f32
    %193 = vector.broadcast %cst_99 : f32 to vector<32x128xf32>
    %194 = arith.maximumf %192, %193 : vector<32x128xf32>
    %195 = vector.broadcast %cst_99 : f32 to vector<32x128xf32>
    %196 = arith.subf %192, %195 : vector<32x128xf32>
    %197 = arith.cmpf one, %196, %196 : vector<32x128xf32>
    %198 = vector.broadcast %cst_99 : f32 to vector<32x128xf32>
    %199 = arith.addf %192, %198 : vector<32x128xf32>
    %200 = math.absf %196 : vector<32x128xf32>
    %cst_100 = arith.constant 0.000000e+00 : f32
    %201 = vector.broadcast %cst_100 : f32 to vector<32x128xf32>
    %202 = arith.subf %201, %200 : vector<32x128xf32>
    %203 = math.exp %202 : vector<32x128xf32>
    %204 = math.log1p %203 : vector<32x128xf32>
    %205 = arith.addf %194, %204 : vector<32x128xf32>
    %206 = arith.select %197, %199, %205 : vector<32x128xi1>, vector<32x128xf32>
    %207 = vector.broadcast %3 : vector<1x128xf32> to vector<32x128xf32>
    %208 = arith.addf %207, %206 : vector<32x128xf32>
    %c1_101 = arith.constant 1 : index
    %c0_102 = arith.constant 0 : index
    %c0_103 = arith.constant 0 : index
    %209 = vector.load %arg16[%c1_101, %c0_102, %c0_103] : memref<2x32x128xf32, #tpu.memory_space<vmem>>, vector<1x32x128xf32>
    %210 = vector.shape_cast %209 : vector<1x32x128xf32> to vector<32x128xf32>
    %211 = vector.shape_cast %165 : vector<32x128xf32> to vector<1x32x128xf32>
    tpu.vector_store %arg16[%c1_101, %c0_102, %c0_103], %211 {strides = array<i32>} : memref<2x32x128xf32, #tpu.memory_space<vmem>>, vector<1x32x128xf32>,
    %212 = math.exp %208 : vector<32x128xf32>
    %c1_104 = arith.constant 1 : index
    %c0_105 = arith.constant 0 : index
    %c0_106 = arith.constant 0 : index
    %213 = vector.load %arg17[%c1_104, %c0_105, %c0_106] : memref<2x32x128xf32, #tpu.memory_space<vmem>>, vector<1x32x128xf32>
    %214 = vector.shape_cast %213 : vector<1x32x128xf32> to vector<32x128xf32>
    %215 = vector.shape_cast %212 : vector<32x128xf32> to vector<1x32x128xf32>
    tpu.vector_store %arg17[%c1_104, %c0_105, %c0_106], %215 {strides = array<i32>} : memref<2x32x128xf32, #tpu.memory_space<vmem>>, vector<1x32x128xf32>,
    return
  }
  func.func @transform_0(%arg0: i32) -> (i32, i32) {
    %c0_i32 = arith.constant 0 : i32
    %c0_i32_0 = arith.constant 0 : i32
    %c0_i32_1 = arith.constant 0 : i32
    return %c0_i32, %c0_i32_0 : i32, i32
  }
  func.func @transform_1(%arg0: i32) -> (i32, i32) {
    %c0_i32 = arith.constant 0 : i32
    %c0_i32_0 = arith.constant 0 : i32
    %c0_i32_1 = arith.constant 0 : i32
    return %c0_i32, %c0_i32_0 : i32, i32
  }
  func.func @transform_2(%arg0: i32) -> (i32, i32) {
    %c0_i32 = arith.constant 0 : i32
    %c0_i32_0 = arith.constant 0 : i32
    %c0_i32_1 = arith.constant 0 : i32
    return %c0_i32, %c0_i32_0 : i32, i32
  }
  func.func @transform_3(%arg0: i32) -> (i32, i32) {
    %c0_i32 = arith.constant 0 : i32
    %c0_i32_0 = arith.constant 0 : i32
    %c0_i32_1 = arith.constant 0 : i32
    return %c0_i32, %c0_i32_0 : i32, i32
  }
  func.func @transform_4(%arg0: i32) -> (i32, i32, i32) {
    %c0_i32 = arith.constant 0 : i32
    %c0_i32_0 = arith.constant 0 : i32
    %c0_i32_1 = arith.constant 0 : i32
    return %arg0, %c0_i32, %c0_i32_0 : i32, i32, i32
  }
  func.func @transform_5(%arg0: i32) -> (i32, i32, i32) {
    %c0_i32 = arith.constant 0 : i32
    %c0_i32_0 = arith.constant 0 : i32
    %c0_i32_1 = arith.constant 0 : i32
    return %arg0, %c0_i32, %c0_i32_0 : i32, i32, i32
  }
  func.func @transform_6(%arg0: i32) -> (i32, i32, i32) {
    %c0_i32 = arith.constant 0 : i32
    %c0_i32_0 = arith.constant 0 : i32
    %c0_i32_1 = arith.constant 0 : i32
    return %arg0, %c0_i32, %c0_i32_0 : i32, i32, i32
  }
  func.func @transform_7(%arg0: i32) -> (i32, i32, i32) {
    %c0_i32 = arith.constant 0 : i32
    %c0_i32_0 = arith.constant 0 : i32
    %c0_i32_1 = arith.constant 0 : i32
    return %arg0, %c0_i32, %c0_i32_0 : i32, i32, i32
  }
  func.func @transform_8(%arg0: i32) -> (i32, i32, i32) {
    %c0_i32 = arith.constant 0 : i32
    %c0_i32_0 = arith.constant 0 : i32
    %c0_i32_1 = arith.constant 0 : i32
    return %arg0, %c0_i32, %c0_i32_0 : i32, i32, i32
  }
  func.func @transform_9(%arg0: i32) -> (i32, i32, i32) {
    %c0_i32 = arith.constant 0 : i32
    %c0_i32_0 = arith.constant 0 : i32
    %c0_i32_1 = arith.constant 0 : i32
    return %arg0, %c0_i32, %c0_i32_0 : i32, i32, i32
  }
  func.func @transform_10(%arg0: i32) -> (i32, i32, i32) {
    %c0_i32 = arith.constant 0 : i32
    %c0_i32_0 = arith.constant 0 : i32
    %c0_i32_1 = arith.constant 0 : i32
    return %arg0, %c0_i32, %c0_i32_0 : i32, i32, i32
  }
  func.func @transform_11(%arg0: i32) -> (i32, i32, i32) {
    %c0_i32 = arith.constant 0 : i32
    %c0_i32_0 = arith.constant 0 : i32
    %c0_i32_1 = arith.constant 0 : i32
    return %arg0, %c0_i32, %c0_i32_0 : i32, i32, i32
  }
  func.func @transform_12(%arg0: i32) -> (i32, i32, i32) {
    %c0_i32 = arith.constant 0 : i32
    %c0_i32_0 = arith.constant 0 : i32
    %c0_i32_1 = arith.constant 0 : i32
    return %arg0, %c0_i32, %c0_i32_0 : i32, i32, i32
  }
  func.func @transform_13(%arg0: i32) -> (i32, i32, i32) {
    %c0_i32 = arith.constant 0 : i32
    %c0_i32_0 = arith.constant 0 : i32
    %c0_i32_1 = arith.constant 0 : i32
    return %arg0, %c0_i32, %c0_i32_0 : i32, i32, i32
  }
  func.func @transform_14(%arg0: i32) -> (i32, i32, i32) {
    %c0_i32 = arith.constant 0 : i32
    %c0_i32_0 = arith.constant 0 : i32
    %c0_i32_1 = arith.constant 0 : i32
    return %arg0, %c0_i32, %c0_i32_0 : i32, i32, i32
  }
  func.func @transform_15(%arg0: i32) -> (i32, i32, i32) {
    %c0_i32 = arith.constant 0 : i32
    %c0_i32_0 = arith.constant 0 : i32
    %c0_i32_1 = arith.constant 0 : i32
    return %arg0, %c0_i32, %c0_i32_0 : i32, i32, i32
  }
  func.func @transform_16(%arg0: i32) -> (i32, i32, i32) {
    %c0_i32 = arith.constant 0 : i32
    %c0_i32_0 = arith.constant 0 : i32
    %c0_i32_1 = arith.constant 0 : i32
    return %arg0, %c0_i32, %c0_i32_0 : i32, i32, i32
  }
}

</mosaic_0001>

<llo_original>
// kernel: tpu_custom_call.1
$region0: #{tpu_custom_call.1}
  #allocation0 [shape = 'u32[]', space=smem, size = 0x4, offset = 0x4, fixed_abs, tag = 'smem constant byte address 0x4 - core index']
  #allocation1 [shape = 'u32[144,128]{1,0:T(1,128)}', space=vmem, size = 0x12000, scoped, tag = 'internal scratch']
  %s0 = inlined_call_operand.vmem [shape: f32[1,16], index: 0, kind: input, shape index: {}]
  %s1 = inlined_call_operand.vmem [shape: f32[1,16], index: 1, kind: input, shape index: {}]
  %s2 = inlined_call_operand.vmem [shape: f32[1,128], index: 2, kind: input, shape index: {}]
  %s3 = inlined_call_operand.vmem [shape: f32[1,128], index: 3, kind: input, shape index: {}]
  %s4 = inlined_call_operand.vmem [shape: f32[4,32,16], index: 4, kind: input, shape index: {}]
  %s5 = inlined_call_operand.vmem [shape: bf16[4,16,256], index: 5, kind: input, shape index: {}]
  %s6 = inlined_call_operand.vmem [shape: f32[4,1,256], index: 6, kind: input, shape index: {}]
  %s7 = inlined_call_operand.hbm [shape: bf16[4,256,256], index: 7, kind: input, shape index: {}]
  %s8 = inlined_call_operand.vmem [shape: f32[4,1,256], index: 8, kind: input, shape index: {}]
  %s9 = inlined_call_operand.hbm [shape: bf16[4,256,256], index: 9, kind: input, shape index: {}]
  %s10 = inlined_call_operand.vmem [shape: f32[4,1,256], index: 10, kind: input, shape index: {}]
  %s11 = inlined_call_operand.hbm [shape: bf16[4,256,128], index: 11, kind: input, shape index: {}]
  %s12 = inlined_call_operand.vmem [shape: f32[4,1,128], index: 12, kind: input, shape index: {}]
  %s13 = inlined_call_operand.hbm [shape: bf16[4,256,128], index: 13, kind: input, shape index: {}]
  %s14 = inlined_call_operand.vmem [shape: f32[4,1,128], index: 14, kind: input, shape index: {}]
  %s15 = inlined_call_operand.hbm [shape: f32[4,32,128], index: 15, kind: output, shape index: {0}]
  %s16 = inlined_call_operand.hbm [shape: f32[4,32,128], index: 16, kind: output, shape index: {1}]
  %17 = xla_tuple %s15, %s16
  %s18 = sld [smem:[#allocation0]]
  $region117: #{tpu_custom_call.1} parent=0
    _
  %s20 = ssub.s32 1, %s18
  %s21 = scalar_select 0, %s20, %s18
  $region1: #{tpu_custom_call.1} parent=0
    #allocation2 [shape = 'u8[524288]{0}', space=vmem, size = 0x80000, scoped, tag = 'input window, operand 7']
    #allocation3 [shape = 's32[2]{0}', space=sflag, size = 0x8, scoped, tag = 'scoped memory for tpu_custom_call.1']
    #allocation4 [shape = 's32[2]{0}', space=sflag, size = 0x8, scoped, tag = 'scoped memory for tpu_custom_call.1']
    #allocation5 [shape = 'u8[524288]{0}', space=vmem, size = 0x80000, scoped, tag = 'input window, operand 9']
    #allocation6 [shape = 's32[2]{0}', space=sflag, size = 0x8, scoped, tag = 'scoped memory for tpu_custom_call.1']
    #allocation7 [shape = 'u8[262144]{0}', space=vmem, size = 0x40000, scoped, tag = 'input window, operand 11']
    #allocation8 [shape = 'u8[262144]{0}', space=vmem, size = 0x40000, scoped, tag = 'input window, operand 13']
    #allocation9 [shape = 's32[2]{0}', space=sflag, size = 0x8, scoped, tag = 'scoped memory for tpu_custom_call.1']
    #allocation10 [shape = 'u8[65536]{0}', space=vmem, size = 0x10000, scoped, tag = 'output window, operand 0']
    #allocation11 [shape = 'u8[65536]{0}', space=vmem, size = 0x10000, scoped, tag = 'output window, operand 1']
    #allocation12 [shape = 's32[2]{0}', space=sflag, size = 0x8, scoped, tag = 'scoped memory for tpu_custom_call.1']
    %22 = vsyncpa [#allocation3], 0
    %s23 = scalar_lea.sflag [#allocation3], 1
    %24 = vsyncpa %s23, 0
    %25 = vsyncpa [#allocation6], 0
    %s26 = scalar_lea.sflag [#allocation6], 1
    %27 = vsyncpa %s26, 0
    %28 = vsyncpa [#allocation9], 0
    %s29 = scalar_lea.sflag [#allocation9], 1
    %30 = vsyncpa %s29, 0
    %31 = vsyncpa [#allocation4], 0
    %s32 = scalar_lea.sflag [#allocation4], 1
    %33 = vsyncpa %s32, 0
    %34 = vsyncpa [#allocation12], 0
    %s35 = scalar_lea.sflag [#allocation12], 1
    %36 = vsyncpa %s35, 0
    loop: start=0, step=1, limit=4
    $region2: #{tpu_custom_call.1} parent=1 // loop_pre_header
      _
    $region3: #{tpu_custom_call.1} parent=1 // loop_header
      %s38 = sphi 0, %s42
      %p39 = scmp.ge.s32.totalorder %s38, 4
      %s46 = sphi 0, %s46
      %s48 = sphi 0, %s46
      %s49 = sphi 0, %s48
      %s63 = sphi 0, %s49
      %s67 = sphi 0, %s67
      %s69 = sphi 0, %s67
      %s70 = sphi 0, %s69
      %s84 = sphi 0, %s70
      %s88 = sphi 0, %s88
      %s90 = sphi 0, %s88
      %s91 = sphi 0, %s90
      %s105 = sphi 0, %s91
      %s109 = sphi 0, %s109
      %s111 = sphi 0, %s109
      %s112 = sphi 0, %s111
      %s126 = sphi 0, %s112
      %s132 = sphi 0, %s134
      %s135 = sphi 0, %s132
      %s136 = sphi 0, %s135
      %s152 = sphi 0, %s136
      %s158 = sphi 0, %s160
      %s161 = sphi 0, %s158
      %s162 = sphi 0, %s161
      %s178 = sphi 0, %s162
      %s184 = sphi 0, %s186
      %s187 = sphi 0, %s184
      %s188 = sphi 0, %s187
      %s204 = sphi 0, %s188
      %s210 = sphi 0, %s212
      %s213 = sphi 0, %s210
      %s214 = sphi 0, %s213
      %s230 = sphi 0, %s214
      %s236 = sphi 0, %s238
      %s239 = sphi 0, %s236
      %s240 = sphi 0, %s239
      %s256 = sphi 0, %s240
      %s262 = sphi 0, %s264
      %s265 = sphi 0, %s262
      %s266 = sphi 0, %s265
      %s282 = sphi 0, %s266
      %s288 = sphi 0, %s290
      %s291 = sphi 0, %s288
      %s292 = sphi 0, %s291
      %s308 = sphi 0, %s292
      %s314 = sphi 0, %s316
      %s317 = sphi 0, %s314
      %s318 = sphi 0, %s317
      %s334 = sphi 0, %s318
      %s340 = sphi 0, %s342
      %s343 = sphi 0, %s340
      %s344 = sphi 0, %s343
      %s360 = sphi 0, %s344
      %s366 = sphi 0, %s368
      %s369 = sphi 0, %s366
      %s370 = sphi 0, %s369
      %s386 = sphi 0, %s370
      %s392 = sphi 0, %s394
      %s395 = sphi 0, %s392
      %s396 = sphi 0, %s395
      %s412 = sphi 0, %s396
      %s418 = sphi 0, %s420
      %s421 = sphi 0, %s418
      %s422 = sphi 0, %s421
      %s438 = sphi 0, %s422
      %s444 = sphi 0, %s446
      %s447 = sphi 0, %s444
      %s448 = sphi 0, %s447
      %s464 = sphi 0, %s448
    $region4: #{tpu_custom_call.1} parent=1 // loop_header_branch
      %41 = sbr.rel (%p39) target = $region8
    $region5: #{tpu_custom_call.1} parent=1 // loop_body
      %s43 = ssub.s32 %s38, 1
      %s44 = ssub.s32 %s38, 2
      %s45 = sadd.s32 %s38, 1
      %s47 = sadd.s32 %s46, 1
      %p50 = scmp.eq.s32.totalorder %s38, 1
      %p51 = scmp.ne.s32.totalorder %s46, %s48
      %p52 = scmp.eq.s32.totalorder %s38, 0
      %p53 = por %p51, %p52
      %p54 = scmp.ne.s32.totalorder %s46, %s48
      %p55 = scmp.eq.s32.totalorder %s43, 1
      %p56 = por %p54, %p55
      %p57 = scmp.ne.s32.totalorder %s48, %s49
      %p58 = scmp.eq.s32.totalorder %s43, 0
      %p59 = por %p57, %p58
      %p60 = scmp.ne.s32.totalorder %s48, %s49
      %p61 = scmp.eq.s32.totalorder %s44, 1
      %p62 = por %p60, %p61
      %p64 = scmp.ne.s32.totalorder %s49, %s63
      %p65 = scmp.eq.s32.totalorder %s44, 0
      %p66 = por %p64, %p65
      %s68 = sadd.s32 %s67, 1
      %p71 = scmp.eq.s32.totalorder %s38, 1
      %p72 = scmp.ne.s32.totalorder %s67, %s69
      %p73 = scmp.eq.s32.totalorder %s38, 0
      %p74 = por %p72, %p73
      %p75 = scmp.ne.s32.totalorder %s67, %s69
      %p76 = scmp.eq.s32.totalorder %s43, 1
      %p77 = por %p75, %p76
      %p78 = scmp.ne.s32.totalorder %s69, %s70
      %p79 = scmp.eq.s32.totalorder %s43, 0
      %p80 = por %p78, %p79
      %p81 = scmp.ne.s32.totalorder %s69, %s70
      %p82 = scmp.eq.s32.totalorder %s44, 1
      %p83 = por %p81, %p82
      %p85 = scmp.ne.s32.totalorder %s70, %s84
      %p86 = scmp.eq.s32.totalorder %s44, 0
      %p87 = por %p85, %p86
      %s89 = sadd.s32 %s88, 1
      %p92 = scmp.eq.s32.totalorder %s38, 1
      %p93 = scmp.ne.s32.totalorder %s88, %s90
      %p94 = scmp.eq.s32.totalorder %s38, 0
      %p95 = por %p93, %p94
      %p96 = scmp.ne.s32.totalorder %s88, %s90
      %p97 = scmp.eq.s32.totalorder %s43, 1
      %p98 = por %p96, %p97
      %p99 = scmp.ne.s32.totalorder %s90, %s91
      %p100 = scmp.eq.s32.totalorder %s43, 0
      %p101 = por %p99, %p100
      %p102 = scmp.ne.s32.totalorder %s90, %s91
      %p103 = scmp.eq.s32.totalorder %s44, 1
      %p104 = por %p102, %p103
      %p106 = scmp.ne.s32.totalorder %s91, %s105
      %p107 = scmp.eq.s32.totalorder %s44, 0
      %p108 = por %p106, %p107
      %s110 = sadd.s32 %s109, 1
      %p113 = scmp.eq.s32.totalorder %s38, 1
      %p114 = scmp.ne.s32.totalorder %s109, %s111
      %p115 = scmp.eq.s32.totalorder %s38, 0
      %p116 = por %p114, %p115
      %p117 = scmp.ne.s32.totalorder %s109, %s111
      %p118 = scmp.eq.s32.totalorder %s43, 1
      %p119 = por %p117, %p118
      %p120 = scmp.ne.s32.totalorder %s111, %s112
      %p121 = scmp.eq.s32.totalorder %s43, 0
      %p122 = por %p120, %p121
      %p123 = scmp.ne.s32.totalorder %s111, %s112
      %p124 = scmp.eq.s32.totalorder %s44, 1
      %p125 = por %p123, %p124
      %p127 = scmp.ne.s32.totalorder %s112, %s126
      %p128 = scmp.eq.s32.totalorder %s44, 0
      %p129 = por %p127, %p128
      %s130 = ssub.s32 %s38, %s45
      %p131 = scmp.eq.s32.totalorder %s130, 0
      %s133 = sadd.s32 %s132, 1
      %s134 = scalar_select %p131, %s132, %s133
      %p137 = pneg %p131
      %p138 = scmp.eq.s32.totalorder %s38, 1
      %p139 = por %p137, %p138
      %p140 = scmp.ne.s32.totalorder %s132, %s135
      %p141 = scmp.eq.s32.totalorder %s38, 0
      %p142 = por %p140, %p141
      %p143 = scmp.ne.s32.totalorder %s132, %s135
      %p144 = scmp.eq.s32.totalorder %s43, 1
      %p145 = por %p143, %p144
      %p146 = scmp.ne.s32.totalorder %s135, %s136
      %p147 = scmp.eq.s32.totalorder %s43, 0
      %p148 = por %p146, %p147
      %p149 = scmp.ne.s32.totalorder %s135, %s136
      %p150 = scmp.eq.s32.totalorder %s44, 1
      %p151 = por %p149, %p150
      %p153 = scmp.ne.s32.totalorder %s136, %s152
      %p154 = scmp.eq.s32.totalorder %s44, 0
      %p155 = por %p153, %p154
      %s156 = ssub.s32 %s38, %s45
      %p157 = scmp.eq.s32.totalorder %s156, 0
      %s159 = sadd.s32 %s158, 1
      %s160 = scalar_select %p157, %s158, %s159
      %p163 = pneg %p157
      %p164 = scmp.eq.s32.totalorder %s38, 1
      %p165 = por %p163, %p164
      %p166 = scmp.ne.s32.totalorder %s158, %s161
      %p167 = scmp.eq.s32.totalorder %s38, 0
      %p168 = por %p166, %p167
      %p169 = scmp.ne.s32.totalorder %s158, %s161
      %p170 = scmp.eq.s32.totalorder %s43, 1
      %p171 = por %p169, %p170
      %p172 = scmp.ne.s32.totalorder %s161, %s162
      %p173 = scmp.eq.s32.totalorder %s43, 0
      %p174 = por %p172, %p173
      %p175 = scmp.ne.s32.totalorder %s161, %s162
      %p176 = scmp.eq.s32.totalorder %s44, 1
      %p177 = por %p175, %p176
      %p179 = scmp.ne.s32.totalorder %s162, %s178
      %p180 = scmp.eq.s32.totalorder %s44, 0
      %p181 = por %p179, %p180
      %s182 = ssub.s32 %s38, %s45
      %p183 = scmp.eq.s32.totalorder %s182, 0
      %s185 = sadd.s32 %s184, 1
      %s186 = scalar_select %p183, %s184, %s185
      %p189 = pneg %p183
      %p190 = scmp.eq.s32.totalorder %s38, 1
      %p191 = por %p189, %p190
      %p192 = scmp.ne.s32.totalorder %s184, %s187
      %p193 = scmp.eq.s32.totalorder %s38, 0
      %p194 = por %p192, %p193
      %p195 = scmp.ne.s32.totalorder %s184, %s187
      %p196 = scmp.eq.s32.totalorder %s43, 1
      %p197 = por %p195, %p196
      %p198 = scmp.ne.s32.totalorder %s187, %s188
      %p199 = scmp.eq.s32.totalorder %s43, 0
      %p200 = por %p198, %p199
      %p201 = scmp.ne.s32.totalorder %s187, %s188
      %p202 = scmp.eq.s32.totalorder %s44, 1
      %p203 = por %p201, %p202
      %p205 = scmp.ne.s32.totalorder %s188, %s204
      %p206 = scmp.eq.s32.totalorder %s44, 0
      %p207 = por %p205, %p206
      %s208 = ssub.s32 %s38, %s45
      %p209 = scmp.eq.s32.totalorder %s208, 0
      %s211 = sadd.s32 %s210, 1
      %s212 = scalar_select %p209, %s210, %s211
      %p215 = pneg %p209
      %p216 = scmp.eq.s32.totalorder %s38, 1
      %p217 = por %p215, %p216
      %p218 = scmp.ne.s32.totalorder %s210, %s213
      %p219 = scmp.eq.s32.totalorder %s38, 0
      %p220 = por %p218, %p219
      %p221 = scmp.ne.s32.totalorder %s210, %s213
      %p222 = scmp.eq.s32.totalorder %s43, 1
      %p223 = por %p221, %p222
      %p224 = scmp.ne.s32.totalorder %s213, %s214
      %p225 = scmp.eq.s32.totalorder %s43, 0
      %p226 = por %p224, %p225
      %p227 = scmp.ne.s32.totalorder %s213, %s214
      %p228 = scmp.eq.s32.totalorder %s44, 1
      %p229 = por %p227, %p228
      %p231 = scmp.ne.s32.totalorder %s214, %s230
      %p232 = scmp.eq.s32.totalorder %s44, 0
      %p233 = por %p231, %p232
      %s234 = ssub.s32 %s38, %s45
      %p235 = scmp.eq.s32.totalorder %s234, 0
      %s237 = sadd.s32 %s236, 1
      %s238 = scalar_select %p235, %s236, %s237
      %p241 = pneg %p235
      %p242 = scmp.eq.s32.totalorder %s38, 1
      %p243 = por %p241, %p242
      %p244 = scmp.ne.s32.totalorder %s236, %s239
      %p245 = scmp.eq.s32.totalorder %s38, 0
      %p246 = por %p244, %p245
      %p247 = scmp.ne.s32.totalorder %s236, %s239
      %p248 = scmp.eq.s32.totalorder %s43, 1
      %p249 = por %p247, %p248
      %p250 = scmp.ne.s32.totalorder %s239, %s240
      %p251 = scmp.eq.s32.totalorder %s43, 0
      %p252 = por %p250, %p251
      %p253 = scmp.ne.s32.totalorder %s239, %s240
      %p254 = scmp.eq.s32.totalorder %s44, 1
      %p255 = por %p253, %p254
      %p257 = scmp.ne.s32.totalorder %s240, %s256
      %p258 = scmp.eq.s32.totalorder %s44, 0
      %p259 = por %p257, %p258
      %s260 = ssub.s32 %s38, %s45
      %p261 = scmp.eq.s32.totalorder %s260, 0
      %s263 = sadd.s32 %s262, 1
      %s264 = scalar_select %p261, %s262, %s263
      %p267 = pneg %p261
      %p268 = scmp.eq.s32.totalorder %s38, 1
      %p269 = por %p267, %p268
      %p270 = scmp.ne.s32.totalorder %s262, %s265
      %p271 = scmp.eq.s32.totalorder %s38, 0
      %p272 = por %p270, %p271
      %p273 = scmp.ne.s32.totalorder %s262, %s265
      %p274 = scmp.eq.s32.totalorder %s43, 1
      %p275 = por %p273, %p274
      %p276 = scmp.ne.s32.totalorder %s265, %s266
      %p277 = scmp.eq.s32.totalorder %s43, 0
      %p278 = por %p276, %p277
      %p279 = scmp.ne.s32.totalorder %s265, %s266
      %p280 = scmp.eq.s32.totalorder %s44, 1
      %p281 = por %p279, %p280
      %p283 = scmp.ne.s32.totalorder %s266, %s282
      %p284 = scmp.eq.s32.totalorder %s44, 0
      %p285 = por %p283, %p284
      %s286 = ssub.s32 %s38, %s45
      %p287 = scmp.eq.s32.totalorder %s286, 0
      %s289 = sadd.s32 %s288, 1
      %s290 = scalar_select %p287, %s288, %s289
      %p293 = pneg %p287
      %p294 = scmp.eq.s32.totalorder %s38, 1
      %p295 = por %p293, %p294
      %p296 = scmp.ne.s32.totalorder %s288, %s291
      %p297 = scmp.eq.s32.totalorder %s38, 0
      %p298 = por %p296, %p297
      %p299 = scmp.ne.s32.totalorder %s288, %s291
      %p300 = scmp.eq.s32.totalorder %s43, 1
      %p301 = por %p299, %p300
      %p302 = scmp.ne.s32.totalorder %s291, %s292
      %p303 = scmp.eq.s32.totalorder %s43, 0
      %p304 = por %p302, %p303
      %p305 = scmp.ne.s32.totalorder %s291, %s292
      %p306 = scmp.eq.s32.totalorder %s44, 1
      %p307 = por %p305, %p306
      %p309 = scmp.ne.s32.totalorder %s292, %s308
      %p310 = scmp.eq.s32.totalorder %s44, 0
      %p311 = por %p309, %p310
      %s312 = ssub.s32 %s38, %s45
      %p313 = scmp.eq.s32.totalorder %s312, 0
      %s315 = sadd.s32 %s314, 1
      %s316 = scalar_select %p313, %s314, %s315
      %p319 = pneg %p313
      %p320 = scmp.eq.s32.totalorder %s38, 1
      %p321 = por %p319, %p320
      %p322 = scmp.ne.s32.totalorder %s314, %s317
      %p323 = scmp.eq.s32.totalorder %s38, 0
      %p324 = por %p322, %p323
      %p325 = scmp.ne.s32.totalorder %s314, %s317
      %p326 = scmp.eq.s32.totalorder %s43, 1
      %p327 = por %p325, %p326
      %p328 = scmp.ne.s32.totalorder %s317, %s318
      %p329 = scmp.eq.s32.totalorder %s43, 0
      %p330 = por %p328, %p329
      %p331 = scmp.ne.s32.totalorder %s317, %s318
      %p332 = scmp.eq.s32.totalorder %s44, 1
      %p333 = por %p331, %p332
      %p335 = scmp.ne.s32.totalorder %s318, %s334
      %p336 = scmp.eq.s32.totalorder %s44, 0
      %p337 = por %p335, %p336
      %s338 = ssub.s32 %s38, %s45
      %p339 = scmp.eq.s32.totalorder %s338, 0
      %s341 = sadd.s32 %s340, 1
      %s342 = scalar_select %p339, %s340, %s341
      %p345 = pneg %p339
      %p346 = scmp.eq.s32.totalorder %s38, 1
      %p347 = por %p345, %p346
      %p348 = scmp.ne.s32.totalorder %s340, %s343
      %p349 = scmp.eq.s32.totalorder %s38, 0
      %p350 = por %p348, %p349
      %p351 = scmp.ne.s32.totalorder %s340, %s343
      %p352 = scmp.eq.s32.totalorder %s43, 1
      %p353 = por %p351, %p352
      %p354 = scmp.ne.s32.totalorder %s343, %s344
      %p355 = scmp.eq.s32.totalorder %s43, 0
      %p356 = por %p354, %p355
      %p357 = scmp.ne.s32.totalorder %s343, %s344
      %p358 = scmp.eq.s32.totalorder %s44, 1
      %p359 = por %p357, %p358
      %p361 = scmp.ne.s32.totalorder %s344, %s360
      %p362 = scmp.eq.s32.totalorder %s44, 0
      %p363 = por %p361, %p362
      %s364 = ssub.s32 %s38, %s45
      %p365 = scmp.eq.s32.totalorder %s364, 0
      %s367 = sadd.s32 %s366, 1
      %s368 = scalar_select %p365, %s366, %s367
      %p371 = pneg %p365
      %p372 = scmp.eq.s32.totalorder %s38, 1
      %p373 = por %p371, %p372
      %p374 = scmp.ne.s32.totalorder %s366, %s369
      %p375 = scmp.eq.s32.totalorder %s38, 0
      %p376 = por %p374, %p375
      %p377 = scmp.ne.s32.totalorder %s366, %s369
      %p378 = scmp.eq.s32.totalorder %s43, 1
      %p379 = por %p377, %p378
      %p380 = scmp.ne.s32.totalorder %s369, %s370
      %p381 = scmp.eq.s32.totalorder %s43, 0
      %p382 = por %p380, %p381
      %p383 = scmp.ne.s32.totalorder %s369, %s370
      %p384 = scmp.eq.s32.totalorder %s44, 1
      %p385 = por %p383, %p384
      %p387 = scmp.ne.s32.totalorder %s370, %s386
      %p388 = scmp.eq.s32.totalorder %s44, 0
      %p389 = por %p387, %p388
      %s390 = ssub.s32 %s38, %s45
      %p391 = scmp.eq.s32.totalorder %s390, 0
      %s393 = sadd.s32 %s392, 1
      %s394 = scalar_select %p391, %s392, %s393
      %p397 = pneg %p391
      %p398 = scmp.eq.s32.totalorder %s38, 1
      %p399 = por %p397, %p398
      %p400 = scmp.ne.s32.totalorder %s392, %s395
      %p401 = scmp.eq.s32.totalorder %s38, 0
      %p402 = por %p400, %p401
      %p403 = scmp.ne.s32.totalorder %s392, %s395
      %p404 = scmp.eq.s32.totalorder %s43, 1
      %p405 = por %p403, %p404
      %p406 = scmp.ne.s32.totalorder %s395, %s396
      %p407 = scmp.eq.s32.totalorder %s43, 0
      %p408 = por %p406, %p407
      %p409 = scmp.ne.s32.totalorder %s395, %s396
      %p410 = scmp.eq.s32.totalorder %s44, 1
      %p411 = por %p409, %p410
      %p413 = scmp.ne.s32.totalorder %s396, %s412
      %p414 = scmp.eq.s32.totalorder %s44, 0
      %p415 = por %p413, %p414
      %s416 = ssub.s32 %s38, %s45
      %p417 = scmp.eq.s32.totalorder %s416, 0
      %s419 = sadd.s32 %s418, 1
      %s420 = scalar_select %p417, %s418, %s419
      %p423 = pneg %p417
      %p424 = scmp.eq.s32.totalorder %s38, 1
      %p425 = por %p423, %p424
      %p426 = scmp.ne.s32.totalorder %s418, %s421
      %p427 = scmp.eq.s32.totalorder %s38, 0
      %p428 = por %p426, %p427
      %p429 = scmp.ne.s32.totalorder %s418, %s421
      %p430 = scmp.eq.s32.totalorder %s43, 1
      %p431 = por %p429, %p430
      %p432 = scmp.ne.s32.totalorder %s421, %s422
      %p433 = scmp.eq.s32.totalorder %s43, 0
      %p434 = por %p432, %p433
      %p435 = scmp.ne.s32.totalorder %s421, %s422
      %p436 = scmp.eq.s32.totalorder %s44, 1
      %p437 = por %p435, %p436
      %p439 = scmp.ne.s32.totalorder %s422, %s438
      %p440 = scmp.eq.s32.totalorder %s44, 0
      %p441 = por %p439, %p440
      %s442 = ssub.s32 %s38, %s45
      %p443 = scmp.eq.s32.totalorder %s442, 0
      %s445 = sadd.s32 %s444, 1
      %s446 = scalar_select %p443, %s444, %s445
      %p449 = pneg %p443
      %p450 = scmp.eq.s32.totalorder %s38, 1
      %p451 = por %p449, %p450
      %p452 = scmp.ne.s32.totalorder %s444, %s447
      %p453 = scmp.eq.s32.totalorder %s38, 0
      %p454 = por %p452, %p453
      %p455 = scmp.ne.s32.totalorder %s444, %s447
      %p456 = scmp.eq.s32.totalorder %s43, 1
      %p457 = por %p455, %p456
      %p458 = scmp.ne.s32.totalorder %s447, %s448
      %p459 = scmp.eq.s32.totalorder %s43, 0
      %p460 = por %p458, %p459
      %p461 = scmp.ne.s32.totalorder %s447, %s448
      %p462 = scmp.eq.s32.totalorder %s44, 1
      %p463 = por %p461, %p462
      %p465 = scmp.ne.s32.totalorder %s448, %s464
      %p466 = scmp.eq.s32.totalorder %s44, 0
      %p467 = por %p465, %p466
      %p468 = scmp.le.s32.totalorder 1, %s38
      %p469 = scmp.lt.s32.totalorder %s38, 3
      %p470 = pnand %p468, %p469
      %p471 = pneg %p470
      // Predicated region
      $region9: #{tpu_custom_call.1} parent=5 // pred_check
        _
      $region10: #{tpu_custom_call.1} parent=5 // pred_check_branch
        %473 = sbr.rel (%p470) target = $region12
      $region11: #{tpu_custom_call.1} parent=5 // pred_region
        %s474 = ssub.s32 %s38, 1
        // Predicated region
        $region13: #{tpu_custom_call.1} parent=11 // pred_check
          %p475 = pneg %p59
        $region14: #{tpu_custom_call.1} parent=11 // pred_check_branch
          %477 = sbr.rel (%p475) target = $region16
        $region15: #{tpu_custom_call.1} parent=11 // pred_region
          _
        $region16: #{tpu_custom_call.1} parent=11 // pred_fallthru
          _
        // Predicated region
        $region17: #{tpu_custom_call.1} parent=11 // pred_check
          %p478 = pneg %p80
        $region18: #{tpu_custom_call.1} parent=11 // pred_check_branch
          %480 = sbr.rel (%p478) target = $region20
        $region19: #{tpu_custom_call.1} parent=11 // pred_region
          _
        $region20: #{tpu_custom_call.1} parent=11 // pred_fallthru
          _
        // Predicated region
        $region21: #{tpu_custom_call.1} parent=11 // pred_check
          %p481 = pneg %p101
        $region22: #{tpu_custom_call.1} parent=11 // pred_check_branch
          %483 = sbr.rel (%p481) target = $region24
        $region23: #{tpu_custom_call.1} parent=11 // pred_region
          _
        $region24: #{tpu_custom_call.1} parent=11 // pred_fallthru
          _
        // Predicated region
        $region25: #{tpu_custom_call.1} parent=11 // pred_check
          %p484 = pneg %p122
        $region26: #{tpu_custom_call.1} parent=11 // pred_check_branch
          %486 = sbr.rel (%p484) target = $region28
        $region27: #{tpu_custom_call.1} parent=11 // pred_region
          _
        $region28: #{tpu_custom_call.1} parent=11 // pred_fallthru
          _
      $region12: #{tpu_custom_call.1} parent=5 // pred_fallthru
        _
      %p487 = scmp.lt.s32.totalorder %s38, 2
      // Predicated region
      $region29: #{tpu_custom_call.1} parent=5 // pred_check
        %p488 = pneg %p487
      $region30: #{tpu_custom_call.1} parent=5 // pred_check_branch
        %490 = sbr.rel (%p488) target = $region32
      $region31: #{tpu_custom_call.1} parent=5 // pred_region
        // Predicated region
        $region33: #{tpu_custom_call.1} parent=31 // pred_check
          %p491 = pneg %p142
        $region34: #{tpu_custom_call.1} parent=31 // pred_check_branch
          %493 = sbr.rel (%p491) target = $region36
        $region35: #{tpu_custom_call.1} parent=31 // pred_region
          %s494 = smul.u32 2, %s38
          %p495 = scmp.lt.s32.totalorder %s494, 3
          %s496 = scalar_select %p495, %s494, 3
          %s497 = smul.addr %s496, 4
          %s498 = smul.addr %s497, 8
          %s499 = scalar_lea.vmem %s4, %s498
          %s500 = smul.u32 2, %s38
        $region36: #{tpu_custom_call.1} parent=31 // pred_fallthru
          _
        // Predicated region
        $region37: #{tpu_custom_call.1} parent=31 // pred_check
          %p501 = pneg %p168
        $region38: #{tpu_custom_call.1} parent=31 // pred_check_branch
          %503 = sbr.rel (%p501) target = $region40
        $region39: #{tpu_custom_call.1} parent=31 // pred_region
          %s504 = smul.u32 2, %s38
          %p505 = scmp.lt.s32.totalorder %s504, 3
          %s506 = scalar_select %p505, %s504, 3
          %s507 = smul.addr %s506, 4
          %s508 = smul.addr %s507, 4
          %s509 = scalar_lea.vmem %s5, %s508
          %s510 = smul.u32 2, %s38
        $region40: #{tpu_custom_call.1} parent=31 // pred_fallthru
          _
        // Predicated region
        $region41: #{tpu_custom_call.1} parent=31 // pred_check
          %p511 = pneg %p194
        $region42: #{tpu_custom_call.1} parent=31 // pred_check_branch
          %513 = sbr.rel (%p511) target = $region44
        $region43: #{tpu_custom_call.1} parent=31 // pred_region
          %s514 = smul.u32 2, %s38
          %p515 = scmp.lt.s32.totalorder %s514, 3
          %s516 = scalar_select %p515, %s514, 3
          %s517 = smul.addr %s516, 2
          %s518 = scalar_lea.vmem %s6, %s517
          %s519 = smul.u32 2, %s38
        $region44: #{tpu_custom_call.1} parent=31 // pred_fallthru
          _
        // Predicated region
        $region45: #{tpu_custom_call.1} parent=31 // pred_check
          %p520 = pneg %p220
        $region46: #{tpu_custom_call.1} parent=31 // pred_check_branch
          %522 = sbr.rel (%p520) target = $region48
        $region47: #{tpu_custom_call.1} parent=31 // pred_region
          %s523 = sand.u32 %s210, 1
          %s524 = scalar_lea.sflag [#allocation3], %s523
          %s525 = sand.u32 %s210, 1
          %s526 = smul.addr %s525, 512
          %s527 = scalar_lea.vmem [#allocation2], %s526
          %s528 = smul.u32 2, %s38
          %s530 = ssub.s32 8192, 8192
          %531 = vsyncadd %s524, %s530
          %s532 = smul.addr %s528, 64
          %s533 = smul.addr %s532, 64
          %s534 = scalar_lea.hbm %s7, %s533
          %s535 = sshll.u32 %s527, 4
          %s536 = int_to_ptr.vmem [resolvable:$true] %s535
          %541 = dma.hbm_to_vmem [thread:$0]  %s534, 8192, %s536, %s524, 128, 128, 8
        $region48: #{tpu_custom_call.1} parent=31 // pred_fallthru
          _
        // Predicated region
        $region49: #{tpu_custom_call.1} parent=31 // pred_check
          %p542 = pneg %p246
        $region50: #{tpu_custom_call.1} parent=31 // pred_check_branch
          %544 = sbr.rel (%p542) target = $region52
        $region51: #{tpu_custom_call.1} parent=31 // pred_region
          %s545 = smul.u32 2, %s38
          %p546 = scmp.lt.s32.totalorder %s545, 3
          %s547 = scalar_select %p546, %s545, 3
          %s548 = smul.addr %s547, 2
          %s549 = scalar_lea.vmem %s8, %s548
          %s550 = smul.u32 2, %s38
        $region52: #{tpu_custom_call.1} parent=31 // pred_fallthru
          _
        // Predicated region
        $region53: #{tpu_custom_call.1} parent=31 // pred_check
          %p551 = pneg %p272
        $region54: #{tpu_custom_call.1} parent=31 // pred_check_branch
          %553 = sbr.rel (%p551) target = $region56
        $region55: #{tpu_custom_call.1} parent=31 // pred_region
          %s554 = sand.u32 %s38, 1
          %s555 = scalar_lea.sflag [#allocation6], %s554
          %s556 = sand.u32 %s262, 1
          %s557 = smul.addr %s556, 512
          %s558 = scalar_lea.vmem [#allocation5], %s557
          %s559 = smul.u32 2, %s38
          %s561 = ssub.s32 8192, 8192
          %562 = vsyncadd %s555, %s561
          %s563 = smul.addr %s559, 64
          %s564 = smul.addr %s563, 64
          %s565 = scalar_lea.hbm %s9, %s564
          %s566 = sshll.u32 %s558, 4
          %s567 = int_to_ptr.vmem [resolvable:$true] %s566
          %572 = dma.hbm_to_vmem [thread:$0]  %s565, 8192, %s567, %s555, 128, 128, 8
        $region56: #{tpu_custom_call.1} parent=31 // pred_fallthru
          _
        // Predicated region
        $region57: #{tpu_custom_call.1} parent=31 // pred_check
          %p573 = pneg %p298
        $region58: #{tpu_custom_call.1} parent=31 // pred_check_branch
          %575 = sbr.rel (%p573) target = $region60
        $region59: #{tpu_custom_call.1} parent=31 // pred_region
          %s576 = smul.u32 2, %s38
          %p577 = scmp.lt.s32.totalorder %s576, 3
          %s578 = scalar_select %p577, %s576, 3
          %s579 = smul.addr %s578, 2
          %s580 = scalar_lea.vmem %s10, %s579
          %s581 = smul.u32 2, %s38
        $region60: #{tpu_custom_call.1} parent=31 // pred_fallthru
          _
        // Predicated region
        $region61: #{tpu_custom_call.1} parent=31 // pred_check
          %p582 = pneg %p324
        $region62: #{tpu_custom_call.1} parent=31 // pred_check_branch
          %584 = sbr.rel (%p582) target = $region64
        $region63: #{tpu_custom_call.1} parent=31 // pred_region
          %s585 = sand.u32 %s38, 1
          %s586 = scalar_lea.sflag [#allocation6], %s585
          %s587 = sand.u32 %s314, 1
          %s588 = smul.addr %s587, 256
          %s589 = scalar_lea.vmem [#allocation7], %s588
          %s590 = smul.u32 2, %s38
          %s592 = ssub.s32 4096, 4096
          %593 = vsyncadd %s586, %s592
          %s594 = smul.addr %s590, 32
          %s595 = smul.addr %s594, 64
          %s596 = scalar_lea.hbm %s11, %s595
          %s597 = sshll.u32 %s589, 4
          %s598 = int_to_ptr.vmem [resolvable:$true] %s597
          %603 = dma.hbm_to_vmem [thread:$0]  %s596, 4096, %s598, %s586, 64, 64, 4
        $region64: #{tpu_custom_call.1} parent=31 // pred_fallthru
          _
        // Predicated region
        $region65: #{tpu_custom_call.1} parent=31 // pred_check
          %p604 = pneg %p350
        $region66: #{tpu_custom_call.1} parent=31 // pred_check_branch
          %606 = sbr.rel (%p604) target = $region68
        $region67: #{tpu_custom_call.1} parent=31 // pred_region
          %s607 = smul.u32 2, %s38
          %p608 = scmp.lt.s32.totalorder %s607, 3
          %s609 = scalar_select %p608, %s607, 3
          %s610 = scalar_lea.vmem %s12, %s609
          %s611 = smul.u32 2, %s38
        $region68: #{tpu_custom_call.1} parent=31 // pred_fallthru
          _
        // Predicated region
        $region69: #{tpu_custom_call.1} parent=31 // pred_check
          %p612 = pneg %p376
        $region70: #{tpu_custom_call.1} parent=31 // pred_check_branch
          %614 = sbr.rel (%p612) target = $region72
        $region71: #{tpu_custom_call.1} parent=31 // pred_region
          %s615 = sand.u32 %s366, 1
          %s616 = scalar_lea.sflag [#allocation9], %s615
          %s617 = sand.u32 %s366, 1
          %s618 = smul.addr %s617, 256
          %s619 = scalar_lea.vmem [#allocation8], %s618
          %s620 = smul.u32 2, %s38
          %s622 = ssub.s32 4096, 4096
          %623 = vsyncadd %s616, %s622
          %s624 = smul.addr %s620, 32
          %s625 = smul.addr %s624, 64
          %s626 = scalar_lea.hbm %s13, %s625
          %s627 = sshll.u32 %s619, 4
          %s628 = int_to_ptr.vmem [resolvable:$true] %s627
          %633 = dma.hbm_to_vmem [thread:$0]  %s626, 4096, %s628, %s616, 64, 64, 4
        $region72: #{tpu_custom_call.1} parent=31 // pred_fallthru
          _
        // Predicated region
        $region73: #{tpu_custom_call.1} parent=31 // pred_check
          %p634 = pneg %p402
        $region74: #{tpu_custom_call.1} parent=31 // pred_check_branch
          %636 = sbr.rel (%p634) target = $region76
        $region75: #{tpu_custom_call.1} parent=31 // pred_region
          %s637 = smul.u32 2, %s38
          %p638 = scmp.lt.s32.totalorder %s637, 3
          %s639 = scalar_select %p638, %s637, 3
          %s640 = scalar_lea.vmem %s14, %s639
          %s641 = smul.u32 2, %s38
        $region76: #{tpu_custom_call.1} parent=31 // pred_fallthru
          _
      $region32: #{tpu_custom_call.1} parent=5 // pred_fallthru
        _
      %p642 = scmp.le.s32.totalorder 1, %s38
      %p643 = scmp.lt.s32.totalorder %s38, 3
      %p644 = pnand %p642, %p643
      %p645 = pneg %p644
      // Predicated region
      $region77: #{tpu_custom_call.1} parent=5 // pred_check
        _
      $region78: #{tpu_custom_call.1} parent=5 // pred_check_branch
        %647 = sbr.rel (%p644) target = $region80
      $region79: #{tpu_custom_call.1} parent=5 // pred_region
        %s648 = ssub.s32 %s38, 1
        %s649 = sand.u32 %s213, 1
        %s650 = scalar_lea.sflag [#allocation3], %s649
        %s651 = sand.u32 %s213, 1
        %s652 = smul.addr %s651, 512
        %s653 = scalar_lea.vmem [#allocation2], %s652
        // Predicated region
        $region81: #{tpu_custom_call.1} parent=79 // pred_check
          %p654 = pneg %p226
        $region82: #{tpu_custom_call.1} parent=79 // pred_check_branch
          %656 = sbr.rel (%p654) target = $region84
        $region83: #{tpu_custom_call.1} parent=79 // pred_region
          %657 = dma.done %s650, 8192
        $region84: #{tpu_custom_call.1} parent=79 // pred_fallthru
          _
        %s658 = sand.u32 %s43, 1
        %s659 = scalar_lea.sflag [#allocation6], %s658
        %s660 = sand.u32 %s265, 1
        %s661 = smul.addr %s660, 512
        %s662 = scalar_lea.vmem [#allocation5], %s661
        // Predicated region
        $region85: #{tpu_custom_call.1} parent=79 // pred_check
          %p663 = pneg %p278
        $region86: #{tpu_custom_call.1} parent=79 // pred_check_branch
          %665 = sbr.rel (%p663) target = $region88
        $region87: #{tpu_custom_call.1} parent=79 // pred_region
          %666 = dma.done %s659, 8192
        $region88: #{tpu_custom_call.1} parent=79 // pred_fallthru
          _
        %s667 = sand.u32 %s43, 1
        %s668 = scalar_lea.sflag [#allocation6], %s667
        %s669 = sand.u32 %s317, 1
        %s670 = smul.addr %s669, 256
        %s671 = scalar_lea.vmem [#allocation7], %s670
        // Predicated region
        $region89: #{tpu_custom_call.1} parent=79 // pred_check
          %p672 = pneg %p330
        $region90: #{tpu_custom_call.1} parent=79 // pred_check_branch
          %674 = sbr.rel (%p672) target = $region92
        $region91: #{tpu_custom_call.1} parent=79 // pred_region
          %675 = dma.done %s668, 4096
        $region92: #{tpu_custom_call.1} parent=79 // pred_fallthru
          _
        %s676 = sand.u32 %s369, 1
        %s677 = scalar_lea.sflag [#allocation9], %s676
        %s678 = sand.u32 %s369, 1
        %s679 = smul.addr %s678, 256
        %s680 = scalar_lea.vmem [#allocation8], %s679
        // Predicated region
        $region93: #{tpu_custom_call.1} parent=79 // pred_check
          %p681 = pneg %p382
        $region94: #{tpu_custom_call.1} parent=79 // pred_check_branch
          %683 = sbr.rel (%p681) target = $region96
        $region95: #{tpu_custom_call.1} parent=79 // pred_region
          %684 = dma.done %s677, 4096
        $region96: #{tpu_custom_call.1} parent=79 // pred_fallthru
          _
        %p685 = pneg %p59
        %p686 = pneg %p56
        %p687 = pneg %p80
        %p688 = pneg %p77
        %p689 = pneg %p101
        %p690 = pneg %p98
        %p691 = pneg %p122
        %p692 = pneg %p119
        %s693 = smul.u32 2, %s43
        %p694 = scmp.lt.s32.totalorder %s693, 3
        %s695 = scalar_select %p694, %s693, 3
        %s696 = smul.addr %s695, 4
        %s697 = smul.addr %s696, 8
        %s698 = scalar_lea.vmem %s4, %s697
        %p699 = pneg %p148
        %p700 = pneg %p145
        %s701 = smul.u32 2, %s43
        %p702 = scmp.lt.s32.totalorder %s701, 3
        %s703 = scalar_select %p702, %s701, 3
        %s704 = smul.addr %s703, 4
        %s705 = smul.addr %s704, 4
        %s706 = scalar_lea.vmem %s5, %s705
        %p707 = pneg %p174
        %p708 = pneg %p171
        %s709 = smul.u32 2, %s43
        %p710 = scmp.lt.s32.totalorder %s709, 3
        %s711 = scalar_select %p710, %s709, 3
        %s712 = smul.addr %s711, 2
        %s713 = scalar_lea.vmem %s6, %s712
        %p714 = pneg %p200
        %p715 = pneg %p197
        %s716 = sand.u32 %s213, 1
        %s717 = scalar_lea.sflag [#allocation3], %s716
        %s718 = sand.u32 %s213, 1
        %s719 = smul.addr %s718, 512
        %s720 = scalar_lea.vmem [#allocation2], %s719
        %p721 = pneg %p226
        %p722 = pneg %p223
        %s723 = smul.u32 2, %s43
        %p724 = scmp.lt.s32.totalorder %s723, 3
        %s725 = scalar_select %p724, %s723, 3
        %s726 = smul.addr %s725, 2
        %s727 = scalar_lea.vmem %s8, %s726
        %p728 = pneg %p252
        %p729 = pneg %p249
        %s730 = sand.u32 %s43, 1
        %s731 = scalar_lea.sflag [#allocation6], %s730
        %s732 = sand.u32 %s265, 1
        %s733 = smul.addr %s732, 512
        %s734 = scalar_lea.vmem [#allocation5], %s733
        %p735 = pneg %p278
        %p736 = pneg %p275
        %s737 = smul.u32 2, %s43
        %p738 = scmp.lt.s32.totalorder %s737, 3
        %s739 = scalar_select %p738, %s737, 3
        %s740 = smul.addr %s739, 2
        %s741 = scalar_lea.vmem %s10, %s740
        %p742 = pneg %p304
        %p743 = pneg %p301
        %s744 = sand.u32 %s43, 1
        %s745 = scalar_lea.sflag [#allocation6], %s744
        %s746 = sand.u32 %s317, 1
        %s747 = smul.addr %s746, 256
        %s748 = scalar_lea.vmem [#allocation7], %s747
        %p749 = pneg %p330
        %p750 = pneg %p327
        %s751 = smul.u32 2, %s43
        %p752 = scmp.lt.s32.totalorder %s751, 3
        %s753 = scalar_select %p752, %s751, 3
        %s754 = scalar_lea.vmem %s12, %s753
        %p755 = pneg %p356
        %p756 = pneg %p353
        %s757 = sand.u32 %s369, 1
        %s758 = scalar_lea.sflag [#allocation9], %s757
        %s759 = sand.u32 %s369, 1
        %s760 = smul.addr %s759, 256
        %s761 = scalar_lea.vmem [#allocation8], %s760
        %p762 = pneg %p382
        %p763 = pneg %p379
        %s764 = smul.u32 2, %s43
        %p765 = scmp.lt.s32.totalorder %s764, 3
        %s766 = scalar_select %p765, %s764, 3
        %s767 = scalar_lea.vmem %s14, %s766
        %p768 = pneg %p408
        %p769 = pneg %p405
        %p770 = pneg %p434
        %p771 = pneg %p431
        %s772 = sand.u32 %s421, 1
        %s773 = scalar_lea.sflag [#allocation4], %s772
        %s774 = sand.u32 %s421, 1
        %s775 = smul.addr %s774, 64
        %s776 = scalar_lea.vmem [#allocation10], %s775
        %p777 = pneg %p460
        %p778 = pneg %p457
        %s779 = sand.u32 %s447, 1
        %s780 = scalar_lea.sflag [#allocation12], %s779
        %s781 = sand.u32 %s447, 1
        %s782 = smul.addr %s781, 64
        %s783 = scalar_lea.vmem [#allocation11], %s782
        %s784 = smul.u32 2, %s43
        %p785 = scmp.lt.s32.totalorder %s784, 3
        %s786 = scalar_select %p785, %s784, 3
        %s787 = smul.addr %s786, 4
        %s788 = smul.addr %s787, 8
        %s789 = scalar_lea.vmem %s4, %s788
        %s790 = smul.u32 2, %s43
        %s791 = smul.u32 2, %s43
        %p792 = scmp.lt.s32.totalorder %s791, 3
        %s793 = scalar_select %p792, %s791, 3
        %s794 = smul.addr %s793, 4
        %s795 = smul.addr %s794, 4
        %s796 = scalar_lea.vmem %s5, %s795
        %s797 = smul.u32 2, %s43
        %s798 = smul.u32 2, %s43
        %p799 = scmp.lt.s32.totalorder %s798, 3
        %s800 = scalar_select %p799, %s798, 3
        %s801 = smul.addr %s800, 2
        %s802 = scalar_lea.vmem %s6, %s801
        %s803 = smul.u32 2, %s43
        %s804 = smul.u32 2, %s43
        %s805 = smul.u32 2, %s43
        %p806 = scmp.lt.s32.totalorder %s805, 3
        %s807 = scalar_select %p806, %s805, 3
        %s808 = smul.addr %s807, 2
        %s809 = scalar_lea.vmem %s8, %s808
        %s810 = smul.u32 2, %s43
        %s811 = smul.u32 2, %s43
        %s812 = smul.u32 2, %s43
        %p813 = scmp.lt.s32.totalorder %s812, 3
        %s814 = scalar_select %p813, %s812, 3
        %s815 = smul.addr %s814, 2
        %s816 = scalar_lea.vmem %s10, %s815
        %s817 = smul.u32 2, %s43
        %s818 = smul.u32 2, %s43
        %s819 = smul.u32 2, %s43
        %p820 = scmp.lt.s32.totalorder %s819, 3
        %s821 = scalar_select %p820, %s819, 3
        %s822 = scalar_lea.vmem %s12, %s821
        %s823 = smul.u32 2, %s43
        %s824 = smul.u32 2, %s43
        %s825 = smul.u32 2, %s43
        %p826 = scmp.lt.s32.totalorder %s825, 3
        %s827 = scalar_select %p826, %s825, 3
        %s828 = scalar_lea.vmem %s14, %s827
        %s829 = smul.u32 2, %s43
        %s830 = smul.u32 2, %s43
        %s831 = smul.u32 2, %s43
        %v833 = vld [vmem:[%s0] sm:$0x1]
        %v834 = vld [vmem:[%s1] sm:$0x1]
        %v835 = vld [vmem:[%s2] sm:$0x1]
        %v836 = vld [vmem:[%s3] sm:$0x1]
        %v837 = vld [vmem:[%s789] sm:$0xff]
        %v838 = vld [vmem:[%s789 + $0x8] sm:$0xff]
        %v839 = vld [vmem:[%s789 + $0x10] sm:$0xff]
        %v840 = vld [vmem:[%s789 + $0x18] sm:$0xff]
        %v842 = vlaneseq
        %v843 = vshrl.u32 %v842, 7
        %v844 = vsub.s32 0, %v843
        %v845 = vrot.slane %v833, %v844
        %v847 = vsub.f32 %v837, %v845
        %v848 = vsub.f32 %v838, %v845
        %v849 = vsub.f32 %v839, %v845
        %v850 = vsub.f32 %v840, %v845
        %v852 = vlaneseq
        %v853 = vshrl.u32 %v852, 7
        %v854 = vsub.s32 0, %v853
        %v855 = vrot.slane %v834, %v854
        %v857 = vmul.f32 %v847, %v855
        %v858 = vmul.f32 %v848, %v855
        %v859 = vmul.f32 %v849, %v855
        %v860 = vmul.f32 %v850, %v855
        %v861 = vpack.c.bf16 %v858, %v857
        %v862 = vpack.c.bf16 %v860, %v859
        %v863 = vld [vmem:[%s796] sm:$0xff]
        %v864 = vld [vmem:[%s796 + $0x8] sm:$0xff]
        %v865 = vld [vmem:[%s802] sm:$0x3]
        %v867 = vlaneseq
        %v868 = vshrl.u32 %v867, 7
        %v869 = vsub.s32 0, %v868
        %v870 = vrot.slane %v865, %v869
        %v871 = vlaneseq
        %v872 = vshrl.u32 %v871, 7
        %v873 = vsub.s32 1, %v872
        %v874 = vrot.slane %v865, %v873
        %v879 = vunpack.c.l.b16 %v863
        %v880 = vunpack.c.h.b16 %v863
        %v881 = vunpack.c.l.b16 %v864
        %v882 = vunpack.c.h.b16 %v864
        %v883 = vpack.c.b16 %v881, %v879
        %v884 = vpack.c.b16 %v882, %v880
        %vm887 = vcmask 130048
        %v889 = vsel %vm887, %v861, 0
        %v892 = vsel %vm887, %v862, 0
        %894 = vmatprep.subr.bf16.mxu0 %v884
        %895 = vmatpush1.bf16.msra.mxu0 %v883
        %896 = vmatprep.subr.bf16.mxu0 0
        %897 = vmatpush1.bf16.msra.mxu0 0
        %898 = vmatprep.subr.bf16.mxu0 0
        %899 = vmatpush1.bf16.msra.mxu0 0
        %900 = vmatprep.subr.bf16.mxu0 0
        %901 = vmatpush1.bf16.msra.mxu0 0
        %902 = vmatprep.subr.bf16.mxu0 0
        %903 = vmatpush1.bf16.msra.mxu0 0
        %904 = vmatprep.subr.bf16.mxu0 0
        %905 = vmatpush1.bf16.msra.mxu0 0
        %906 = vmatprep.subr.bf16.mxu0 0
        %907 = vmatpush1.bf16.msra.mxu0 0
        %908 = vmatprep.subr.bf16.mxu0 0
        %909 = vmatpush1.bf16.msra.mxu0 0
        %910 = vmatprep.subr.bf16.mxu0 0
        %911 = vmatpush1.bf16.msra.mxu0 0
        %912 = vmatprep.subr.bf16.mxu0 0
        %913 = vmatpush1.bf16.msra.mxu0 0
        %914 = vmatprep.subr.bf16.mxu0 0
        %915 = vmatpush1.bf16.msra.mxu0 0
        %916 = vmatprep.subr.bf16.mxu0 0
        %917 = vmatpush1.bf16.msra.mxu0 0
        %918 = vmatprep.subr.bf16.mxu0 0
        %919 = vmatpush1.bf16.msra.mxu0 0
        %920 = vmatprep.subr.bf16.mxu0 0
        %921 = vmatpush1.bf16.msra.mxu0 0
        %922 = vmatprep.subr.bf16.mxu0 0
        %923 = vmatpush1.bf16.msra.mxu0 0
        %924 = vmatprep.subr.bf16.mxu0 0
        %925 = vmatpush1.bf16.msra.mxu0 0
        %926 = vmatprep.mubr.bf16.mxu0 0
        %927 = vmatmul.mubr.bf16.gmra.mrb[0].mxu0 %v889
        %v928 = vpop.f32.mrb[0].mxu0
        %v929 = vadd.f32 %v870, %v928
        %v930 = vpop.f32.mrb[0].mxu0
        %v931 = vadd.f32 %v874, %v930
        %v932 = vpop.f32.mrb[0].mxu0
        %v933 = vadd.f32 %v870, %v932
        %v934 = vpop.f32.mrb[0].mxu0
        %v935 = vadd.f32 %v874, %v934
        %936 = vmatprep.mubr.bf16.mxu0 0
        %937 = vmatmul.mubr.bf16.gmra.mrb[0].mxu0 %v892
        %v938 = vpop.f32.mrb[0].mxu0
        %v939 = vadd.f32 %v870, %v938
        %v940 = vpop.f32.mrb[0].mxu0
        %v941 = vadd.f32 %v874, %v940
        %v942 = vpop.f32.mrb[0].mxu0
        %v943 = vadd.f32 %v870, %v942
        %v944 = vpop.f32.mrb[0].mxu0
        %v945 = vadd.f32 %v874, %v944
        %946 = vdwg.mxu0
        %v947 = vxor.u32 %v929, 2147483648
        %v948 = vxor.u32 %v931, 2147483648
        %v949 = vxor.u32 %v933, 2147483648
        %v950 = vxor.u32 %v935, 2147483648
        %v951 = vxor.u32 %v939, 2147483648
        %v952 = vxor.u32 %v941, 2147483648
        %v953 = vxor.u32 %v943, 2147483648
        %v954 = vxor.u32 %v945, 2147483648
        %v955 = vmul.f32 %v947, 1.442695
        %v956 = vpow.pop %v955
        %v957 = vmul.f32 %v948, 1.442695
        %v958 = vpow.pop %v957
        %v959 = vmul.f32 %v949, 1.442695
        %v960 = vpow.pop %v959
        %v961 = vmul.f32 %v950, 1.442695
        %v962 = vpow.pop %v961
        %v963 = vmul.f32 %v951, 1.442695
        %v964 = vpow.pop %v963
        %v965 = vmul.f32 %v952, 1.442695
        %v966 = vpow.pop %v965
        %v967 = vmul.f32 %v953, 1.442695
        %v968 = vpow.pop %v967
        %v969 = vmul.f32 %v954, 1.442695
        %v970 = vpow.pop %v969
        %v971 = vadd.f32 %v956, 1.0
        %v972 = vadd.f32 %v958, 1.0
        %v973 = vadd.f32 %v960, 1.0
        %v974 = vadd.f32 %v962, 1.0
        %v975 = vadd.f32 %v964, 1.0
        %v976 = vadd.f32 %v966, 1.0
        %v977 = vadd.f32 %v968, 1.0
        %v978 = vadd.f32 %v970, 1.0
        %v979 = vrcp.pop %v971
        %v980 = vmul.f32 1.0, %v979
        %v981 = vrcp.pop %v972
        %v982 = vmul.f32 1.0, %v981
        %v983 = vrcp.pop %v973
        %v984 = vmul.f32 1.0, %v983
        %v985 = vrcp.pop %v974
        %v986 = vmul.f32 1.0, %v985
        %v987 = vrcp.pop %v975
        %v988 = vmul.f32 1.0, %v987
        %v989 = vrcp.pop %v976
        %v990 = vmul.f32 1.0, %v989
        %v991 = vrcp.pop %v977
        %v992 = vmul.f32 1.0, %v991
        %v993 = vrcp.pop %v978
        %v994 = vmul.f32 1.0, %v993
        %v995 = vmul.f32 %v929, %v980
        %v996 = vmul.f32 %v931, %v982
        %v997 = vmul.f32 %v933, %v984
        %v998 = vmul.f32 %v935, %v986
        %v999 = vmul.f32 %v939, %v988
        %v1000 = vmul.f32 %v941, %v990
        %v1001 = vmul.f32 %v943, %v992
        %v1002 = vmul.f32 %v945, %v994
        %v1003 = vpack.c.bf16 %v997, %v995
        %v1004 = vpack.c.bf16 %v998, %v996
        %v1005 = vpack.c.bf16 %v1001, %v999
        %v1006 = vpack.c.bf16 %v1002, %v1000
        %v1007 = vld [vmem:[%s653] sm:$0xff]
        %v1008 = vld [vmem:[%s653 + $0x8] sm:$0xff]
        %v1009 = vld [vmem:[%s653 + $0x10] sm:$0xff]
        %v1010 = vld [vmem:[%s653 + $0x18] sm:$0xff]
        %v1011 = vld [vmem:[%s653 + $0x20] sm:$0xff]
        %v1012 = vld [vmem:[%s653 + $0x28] sm:$0xff]
        %v1013 = vld [vmem:[%s653 + $0x30] sm:$0xff]
        %v1014 = vld [vmem:[%s653 + $0x38] sm:$0xff]
        %v1015 = vld [vmem:[%s653 + $0x40] sm:$0xff]
        %v1016 = vld [vmem:[%s653 + $0x48] sm:$0xff]
        %v1017 = vld [vmem:[%s653 + $0x50] sm:$0xff]
        %v1018 = vld [vmem:[%s653 + $0x58] sm:$0xff]
        %v1019 = vld [vmem:[%s653 + $0x60] sm:$0xff]
        %v1020 = vld [vmem:[%s653 + $0x68] sm:$0xff]
        %v1021 = vld [vmem:[%s653 + $0x70] sm:$0xff]
        %v1022 = vld [vmem:[%s653 + $0x78] sm:$0xff]
        %v1023 = vld [vmem:[%s653 + $0x80] sm:$0xff]
        %v1024 = vld [vmem:[%s653 + $0x88] sm:$0xff]
        %v1025 = vld [vmem:[%s653 + $0x90] sm:$0xff]
        %v1026 = vld [vmem:[%s653 + $0x98] sm:$0xff]
        %v1027 = vld [vmem:[%s653 + $0xa0] sm:$0xff]
        %v1028 = vld [vmem:[%s653 + $0xa8] sm:$0xff]
        %v1029 = vld [vmem:[%s653 + $0xb0] sm:$0xff]
        %v1030 = vld [vmem:[%s653 + $0xb8] sm:$0xff]
        %v1031 = vld [vmem:[%s653 + $0xc0] sm:$0xff]
        %v1032 = vld [vmem:[%s653 + $0xc8] sm:$0xff]
        %v1033 = vld [vmem:[%s653 + $0xd0] sm:$0xff]
        %v1034 = vld [vmem:[%s653 + $0xd8] sm:$0xff]
        %v1035 = vld [vmem:[%s653 + $0xe0] sm:$0xff]
        %v1036 = vld [vmem:[%s653 + $0xe8] sm:$0xff]
        %v1037 = vld [vmem:[%s653 + $0xf0] sm:$0xff]
        %v1038 = vld [vmem:[%s653 + $0xf8] sm:$0xff]
        %v1039 = vld [vmem:[%s809] sm:$0x3]
        %v1041 = vlaneseq
        %v1042 = vshrl.u32 %v1041, 7
        %v1043 = vsub.s32 0, %v1042
        %v1044 = vrot.slane %v1039, %v1043
        %v1045 = vlaneseq
        %v1046 = vshrl.u32 %v1045, 7
        %v1047 = vsub.s32 1, %v1046
        %v1048 = vrot.slane %v1039, %v1047
        %v1083 = vunpack.c.l.b16 %v1007
        %v1084 = vunpack.c.h.b16 %v1007
        %v1085 = vunpack.c.l.b16 %v1008
        %v1086 = vunpack.c.h.b16 %v1008
        %v1087 = vunpack.c.l.b16 %v1009
        %v1088 = vunpack.c.h.b16 %v1009
        %v1089 = vunpack.c.l.b16 %v1010
        %v1090 = vunpack.c.h.b16 %v1010
        %v1091 = vunpack.c.l.b16 %v1011
        %v1092 = vunpack.c.h.b16 %v1011
        %v1093 = vunpack.c.l.b16 %v1012
        %v1094 = vunpack.c.h.b16 %v1012
        %v1095 = vunpack.c.l.b16 %v1013
        %v1096 = vunpack.c.h.b16 %v1013
        %v1097 = vunpack.c.l.b16 %v1014
        %v1098 = vunpack.c.h.b16 %v1014
        %v1099 = vunpack.c.l.b16 %v1015
        %v1100 = vunpack.c.h.b16 %v1015
        %v1101 = vunpack.c.l.b16 %v1016
        %v1102 = vunpack.c.h.b16 %v1016
        %v1103 = vunpack.c.l.b16 %v1017
        %v1104 = vunpack.c.h.b16 %v1017
        %v1105 = vunpack.c.l.b16 %v1018
        %v1106 = vunpack.c.h.b16 %v1018
        %v1107 = vunpack.c.l.b16 %v1019
        %v1108 = vunpack.c.h.b16 %v1019
        %v1109 = vunpack.c.l.b16 %v1020
        %v1110 = vunpack.c.h.b16 %v1020
        %v1111 = vunpack.c.l.b16 %v1021
        %v1112 = vunpack.c.h.b16 %v1021
        %v1113 = vunpack.c.l.b16 %v1022
        %v1114 = vunpack.c.h.b16 %v1022
        %v1115 = vunpack.c.l.b16 %v1023
        %v1116 = vunpack.c.h.b16 %v1023
        %v1117 = vunpack.c.l.b16 %v1024
        %v1118 = vunpack.c.h.b16 %v1024
        %v1119 = vunpack.c.l.b16 %v1025
        %v1120 = vunpack.c.h.b16 %v1025
        %v1121 = vunpack.c.l.b16 %v1026
        %v1122 = vunpack.c.h.b16 %v1026
        %v1123 = vunpack.c.l.b16 %v1027
        %v1124 = vunpack.c.h.b16 %v1027
        %v1125 = vunpack.c.l.b16 %v1028
        %v1126 = vunpack.c.h.b16 %v1028
        %v1127 = vunpack.c.l.b16 %v1029
        %v1128 = vunpack.c.h.b16 %v1029
        %v1129 = vunpack.c.l.b16 %v1030
        %v1130 = vunpack.c.h.b16 %v1030
        %v1131 = vunpack.c.l.b16 %v1031
        %v1132 = vunpack.c.h.b16 %v1031
        %v1133 = vunpack.c.l.b16 %v1032
        %v1134 = vunpack.c.h.b16 %v1032
        %v1135 = vunpack.c.l.b16 %v1033
        %v1136 = vunpack.c.h.b16 %v1033
        %v1137 = vunpack.c.l.b16 %v1034
        %v1138 = vunpack.c.h.b16 %v1034
        %v1139 = vunpack.c.l.b16 %v1035
        %v1140 = vunpack.c.h.b16 %v1035
        %v1141 = vunpack.c.l.b16 %v1036
        %v1142 = vunpack.c.h.b16 %v1036
        %v1143 = vunpack.c.l.b16 %v1037
        %v1144 = vunpack.c.h.b16 %v1037
        %v1145 = vunpack.c.l.b16 %v1038
        %v1146 = vunpack.c.h.b16 %v1038
        %v1147 = vpack.c.b16 %v1085, %v1083
        %v1148 = vpack.c.b16 %v1086, %v1084
        %v1149 = vpack.c.b16 %v1089, %v1087
        %v1150 = vpack.c.b16 %v1090, %v1088
        %v1151 = vpack.c.b16 %v1093, %v1091
        %v1152 = vpack.c.b16 %v1094, %v1092
        %v1153 = vpack.c.b16 %v1097, %v1095
        %v1154 = vpack.c.b16 %v1098, %v1096
        %v1155 = vpack.c.b16 %v1101, %v1099
        %v1156 = vpack.c.b16 %v1102, %v1100
        %v1157 = vpack.c.b16 %v1105, %v1103
        %v1158 = vpack.c.b16 %v1106, %v1104
        %v1159 = vpack.c.b16 %v1109, %v1107
        %v1160 = vpack.c.b16 %v1110, %v1108
        %v1161 = vpack.c.b16 %v1113, %v1111
        %v1162 = vpack.c.b16 %v1114, %v1112
        %v1163 = vpack.c.b16 %v1117, %v1115
        %v1164 = vpack.c.b16 %v1118, %v1116
        %v1165 = vpack.c.b16 %v1121, %v1119
        %v1166 = vpack.c.b16 %v1122, %v1120
        %v1167 = vpack.c.b16 %v1125, %v1123
        %v1168 = vpack.c.b16 %v1126, %v1124
        %v1169 = vpack.c.b16 %v1129, %v1127
        %v1170 = vpack.c.b16 %v1130, %v1128
        %v1171 = vpack.c.b16 %v1133, %v1131
        %v1172 = vpack.c.b16 %v1134, %v1132
        %v1173 = vpack.c.b16 %v1137, %v1135
        %v1174 = vpack.c.b16 %v1138, %v1136
        %v1175 = vpack.c.b16 %v1141, %v1139
        %v1176 = vpack.c.b16 %v1142, %v1140
        %v1177 = vpack.c.b16 %v1145, %v1143
        %v1178 = vpack.c.b16 %v1146, %v1144
        %1211 = vmatprep.subr.bf16.mxu0 %v1148
        %1212 = vmatpush1.bf16.msra.mxu0 %v1147
        %1213 = vmatprep.subr.bf16.mxu0 %v1150
        %1214 = vmatpush1.bf16.msra.mxu0 %v1149
        %1215 = vmatprep.subr.bf16.mxu0 %v1152
        %1216 = vmatpush1.bf16.msra.mxu0 %v1151
        %1217 = vmatprep.subr.bf16.mxu0 %v1154
        %1218 = vmatpush1.bf16.msra.mxu0 %v1153
        %1219 = vmatprep.subr.bf16.mxu0 %v1156
        %1220 = vmatpush1.bf16.msra.mxu0 %v1155
        %1221 = vmatprep.subr.bf16.mxu0 %v1158
        %1222 = vmatpush1.bf16.msra.mxu0 %v1157
        %1223 = vmatprep.subr.bf16.mxu0 %v1160
        %1224 = vmatpush1.bf16.msra.mxu0 %v1159
        %1225 = vmatprep.subr.bf16.mxu0 %v1162
        %1226 = vmatpush1.bf16.msra.mxu0 %v1161
        %1227 = vmatprep.subr.bf16.mxu0 %v1164
        %1228 = vmatpush1.bf16.msra.mxu0 %v1163
        %1229 = vmatprep.subr.bf16.mxu0 %v1166
        %1230 = vmatpush1.bf16.msra.mxu0 %v1165
        %1231 = vmatprep.subr.bf16.mxu0 %v1168
        %1232 = vmatpush1.bf16.msra.mxu0 %v1167
        %1233 = vmatprep.subr.bf16.mxu0 %v1170
        %1234 = vmatpush1.bf16.msra.mxu0 %v1169
        %1235 = vmatprep.subr.bf16.mxu0 %v1172
        %1236 = vmatpush1.bf16.msra.mxu0 %v1171
        %1237 = vmatprep.subr.bf16.mxu0 %v1174
        %1238 = vmatpush1.bf16.msra.mxu0 %v1173
        %1239 = vmatprep.subr.bf16.mxu0 %v1176
        %1240 = vmatpush1.bf16.msra.mxu0 %v1175
        %1241 = vmatprep.subr.bf16.mxu0 %v1178
        %1242 = vmatpush1.bf16.msra.mxu0 %v1177
        %1243 = vmatprep.mubr.bf16.mxu0 %v1004
        %1244 = vmatmul.mubr.bf16.gmra.mrb[0].mxu0 %v1003
        %v1245 = vpop.f32.mrb[0].mxu0
        %v1246 = vadd.f32 %v1044, %v1245
        %v1247 = vpop.f32.mrb[0].mxu0
        %v1248 = vadd.f32 %v1048, %v1247
        %v1249 = vpop.f32.mrb[0].mxu0
        %v1250 = vadd.f32 %v1044, %v1249
        %v1251 = vpop.f32.mrb[0].mxu0
        %v1252 = vadd.f32 %v1048, %v1251
        %1253 = vmatprep.mubr.bf16.mxu0 %v1006
        %1254 = vmatmul.mubr.bf16.gmra.mrb[0].mxu0 %v1005
        %v1255 = vpop.f32.mrb[0].mxu0
        %v1256 = vadd.f32 %v1044, %v1255
        %v1257 = vpop.f32.mrb[0].mxu0
        %v1258 = vadd.f32 %v1048, %v1257
        %v1259 = vpop.f32.mrb[0].mxu0
        %v1260 = vadd.f32 %v1044, %v1259
        %v1261 = vpop.f32.mrb[0].mxu0
        %v1262 = vadd.f32 %v1048, %v1261
        %1263 = vdwg.mxu0
        %v1264 = vxor.u32 %v1246, 2147483648
        %v1265 = vxor.u32 %v1248, 2147483648
        %v1266 = vxor.u32 %v1250, 2147483648
        %v1267 = vxor.u32 %v1252, 2147483648
        %v1268 = vxor.u32 %v1256, 2147483648
        %v1269 = vxor.u32 %v1258, 2147483648
        %v1270 = vxor.u32 %v1260, 2147483648
        %v1271 = vxor.u32 %v1262, 2147483648
        %v1272 = vmul.f32 %v1264, 1.442695
        %v1273 = vpow.pop %v1272
        %v1274 = vmul.f32 %v1265, 1.442695
        %v1275 = vpow.pop %v1274
        %v1276 = vmul.f32 %v1266, 1.442695
        %v1277 = vpow.pop %v1276
        %v1278 = vmul.f32 %v1267, 1.442695
        %v1279 = vpow.pop %v1278
        %v1280 = vmul.f32 %v1268, 1.442695
        %v1281 = vpow.pop %v1280
        %v1282 = vmul.f32 %v1269, 1.442695
        %v1283 = vpow.pop %v1282
        %v1284 = vmul.f32 %v1270, 1.442695
        %v1285 = vpow.pop %v1284
        %v1286 = vmul.f32 %v1271, 1.442695
        %v1287 = vpow.pop %v1286
        %v1288 = vadd.f32 %v1273, 1.0
        %v1289 = vadd.f32 %v1275, 1.0
        %v1290 = vadd.f32 %v1277, 1.0
        %v1291 = vadd.f32 %v1279, 1.0
        %v1292 = vadd.f32 %v1281, 1.0
        %v1293 = vadd.f32 %v1283, 1.0
        %v1294 = vadd.f32 %v1285, 1.0
        %v1295 = vadd.f32 %v1287, 1.0
        %v1296 = vrcp.pop %v1288
        %v1297 = vmul.f32 1.0, %v1296
        %v1298 = vrcp.pop %v1289
        %v1299 = vmul.f32 1.0, %v1298
        %v1300 = vrcp.pop %v1290
        %v1301 = vmul.f32 1.0, %v1300
        %v1302 = vrcp.pop %v1291
        %v1303 = vmul.f32 1.0, %v1302
        %v1304 = vrcp.pop %v1292
        %v1305 = vmul.f32 1.0, %v1304
        %v1306 = vrcp.pop %v1293
        %v1307 = vmul.f32 1.0, %v1306
        %v1308 = vrcp.pop %v1294
        %v1309 = vmul.f32 1.0, %v1308
        %v1310 = vrcp.pop %v1295
        %v1311 = vmul.f32 1.0, %v1310
        %v1312 = vmul.f32 %v1246, %v1297
        %v1313 = vmul.f32 %v1248, %v1299
        %v1314 = vmul.f32 %v1250, %v1301
        %v1315 = vmul.f32 %v1252, %v1303
        %v1316 = vmul.f32 %v1256, %v1305
        %v1317 = vmul.f32 %v1258, %v1307
        %v1318 = vmul.f32 %v1260, %v1309
        %v1319 = vmul.f32 %v1262, %v1311
        %v1320 = vpack.c.bf16 %v1314, %v1312
        %v1321 = vpack.c.bf16 %v1315, %v1313
        %v1322 = vpack.c.bf16 %v1318, %v1316
        %v1323 = vpack.c.bf16 %v1319, %v1317
        %v1324 = vld [vmem:[%s662] sm:$0xff]
        %v1325 = vld [vmem:[%s662 + $0x8] sm:$0xff]
        %v1326 = vld [vmem:[%s662 + $0x10] sm:$0xff]
        %v1327 = vld [vmem:[%s662 + $0x18] sm:$0xff]
        %v1328 = vld [vmem:[%s662 + $0x20] sm:$0xff]
        %v1329 = vld [vmem:[%s662 + $0x28] sm:$0xff]
        %v1330 = vld [vmem:[%s662 + $0x30] sm:$0xff]
        %v1331 = vld [vmem:[%s662 + $0x38] sm:$0xff]
        %v1332 = vld [vmem:[%s662 + $0x40] sm:$0xff]
        %v1333 = vld [vmem:[%s662 + $0x48] sm:$0xff]
        %v1334 = vld [vmem:[%s662 + $0x50] sm:$0xff]
        %v1335 = vld [vmem:[%s662 + $0x58] sm:$0xff]
        %v1336 = vld [vmem:[%s662 + $0x60] sm:$0xff]
        %v1337 = vld [vmem:[%s662 + $0x68] sm:$0xff]
        %v1338 = vld [vmem:[%s662 + $0x70] sm:$0xff]
        %v1339 = vld [vmem:[%s662 + $0x78] sm:$0xff]
        %v1340 = vld [vmem:[%s662 + $0x80] sm:$0xff]
        %v1341 = vld [vmem:[%s662 + $0x88] sm:$0xff]
        %v1342 = vld [vmem:[%s662 + $0x90] sm:$0xff]
        %v1343 = vld [vmem:[%s662 + $0x98] sm:$0xff]
        %v1344 = vld [vmem:[%s662 + $0xa0] sm:$0xff]
        %v1345 = vld [vmem:[%s662 + $0xa8] sm:$0xff]
        %v1346 = vld [vmem:[%s662 + $0xb0] sm:$0xff]
        %v1347 = vld [vmem:[%s662 + $0xb8] sm:$0xff]
        %v1348 = vld [vmem:[%s662 + $0xc0] sm:$0xff]
        %v1349 = vld [vmem:[%s662 + $0xc8] sm:$0xff]
        %v1350 = vld [vmem:[%s662 + $0xd0] sm:$0xff]
        %v1351 = vld [vmem:[%s662 + $0xd8] sm:$0xff]
        %v1352 = vld [vmem:[%s662 + $0xe0] sm:$0xff]
        %v1353 = vld [vmem:[%s662 + $0xe8] sm:$0xff]
        %v1354 = vld [vmem:[%s662 + $0xf0] sm:$0xff]
        %v1355 = vld [vmem:[%s662 + $0xf8] sm:$0xff]
        %v1356 = vld [vmem:[%s816] sm:$0x3]
        %v1358 = vlaneseq
        %v1359 = vshrl.u32 %v1358, 7
        %v1360 = vsub.s32 0, %v1359
        %v1361 = vrot.slane %v1356, %v1360
        %v1362 = vlaneseq
        %v1363 = vshrl.u32 %v1362, 7
        %v1364 = vsub.s32 1, %v1363
        %v1365 = vrot.slane %v1356, %v1364
        %v1400 = vunpack.c.l.b16 %v1324
        %v1401 = vunpack.c.h.b16 %v1324
        %v1402 = vunpack.c.l.b16 %v1325
        %v1403 = vunpack.c.h.b16 %v1325
        %v1404 = vunpack.c.l.b16 %v1326
        %v1405 = vunpack.c.h.b16 %v1326
        %v1406 = vunpack.c.l.b16 %v1327
        %v1407 = vunpack.c.h.b16 %v1327
        %v1408 = vunpack.c.l.b16 %v1328
        %v1409 = vunpack.c.h.b16 %v1328
        %v1410 = vunpack.c.l.b16 %v1329
        %v1411 = vunpack.c.h.b16 %v1329
        %v1412 = vunpack.c.l.b16 %v1330
        %v1413 = vunpack.c.h.b16 %v1330
        %v1414 = vunpack.c.l.b16 %v1331
        %v1415 = vunpack.c.h.b16 %v1331
        %v1416 = vunpack.c.l.b16 %v1332
        %v1417 = vunpack.c.h.b16 %v1332
        %v1418 = vunpack.c.l.b16 %v1333
        %v1419 = vunpack.c.h.b16 %v1333
        %v1420 = vunpack.c.l.b16 %v1334
        %v1421 = vunpack.c.h.b16 %v1334
        %v1422 = vunpack.c.l.b16 %v1335
        %v1423 = vunpack.c.h.b16 %v1335
        %v1424 = vunpack.c.l.b16 %v1336
        %v1425 = vunpack.c.h.b16 %v1336
        %v1426 = vunpack.c.l.b16 %v1337
        %v1427 = vunpack.c.h.b16 %v1337
        %v1428 = vunpack.c.l.b16 %v1338
        %v1429 = vunpack.c.h.b16 %v1338
        %v1430 = vunpack.c.l.b16 %v1339
        %v1431 = vunpack.c.h.b16 %v1339
        %v1432 = vunpack.c.l.b16 %v1340
        %v1433 = vunpack.c.h.b16 %v1340
        %v1434 = vunpack.c.l.b16 %v1341
        %v1435 = vunpack.c.h.b16 %v1341
        %v1436 = vunpack.c.l.b16 %v1342
        %v1437 = vunpack.c.h.b16 %v1342
        %v1438 = vunpack.c.l.b16 %v1343
        %v1439 = vunpack.c.h.b16 %v1343
        %v1440 = vunpack.c.l.b16 %v1344
        %v1441 = vunpack.c.h.b16 %v1344
        %v1442 = vunpack.c.l.b16 %v1345
        %v1443 = vunpack.c.h.b16 %v1345
        %v1444 = vunpack.c.l.b16 %v1346
        %v1445 = vunpack.c.h.b16 %v1346
        %v1446 = vunpack.c.l.b16 %v1347
        %v1447 = vunpack.c.h.b16 %v1347
        %v1448 = vunpack.c.l.b16 %v1348
        %v1449 = vunpack.c.h.b16 %v1348
        %v1450 = vunpack.c.l.b16 %v1349
        %v1451 = vunpack.c.h.b16 %v1349
        %v1452 = vunpack.c.l.b16 %v1350
        %v1453 = vunpack.c.h.b16 %v1350
        %v1454 = vunpack.c.l.b16 %v1351
        %v1455 = vunpack.c.h.b16 %v1351
        %v1456 = vunpack.c.l.b16 %v1352
        %v1457 = vunpack.c.h.b16 %v1352
        %v1458 = vunpack.c.l.b16 %v1353
        %v1459 = vunpack.c.h.b16 %v1353
        %v1460 = vunpack.c.l.b16 %v1354
        %v1461 = vunpack.c.h.b16 %v1354
        %v1462 = vunpack.c.l.b16 %v1355
        %v1463 = vunpack.c.h.b16 %v1355
        %v1464 = vpack.c.b16 %v1402, %v1400
        %v1465 = vpack.c.b16 %v1403, %v1401
        %v1466 = vpack.c.b16 %v1406, %v1404
        %v1467 = vpack.c.b16 %v1407, %v1405
        %v1468 = vpack.c.b16 %v1410, %v1408
        %v1469 = vpack.c.b16 %v1411, %v1409
        %v1470 = vpack.c.b16 %v1414, %v1412
        %v1471 = vpack.c.b16 %v1415, %v1413
        %v1472 = vpack.c.b16 %v1418, %v1416
        %v1473 = vpack.c.b16 %v1419, %v1417
        %v1474 = vpack.c.b16 %v1422, %v1420
        %v1475 = vpack.c.b16 %v1423, %v1421
        %v1476 = vpack.c.b16 %v1426, %v1424
        %v1477 = vpack.c.b16 %v1427, %v1425
        %v1478 = vpack.c.b16 %v1430, %v1428
        %v1479 = vpack.c.b16 %v1431, %v1429
        %v1480 = vpack.c.b16 %v1434, %v1432
        %v1481 = vpack.c.b16 %v1435, %v1433
        %v1482 = vpack.c.b16 %v1438, %v1436
        %v1483 = vpack.c.b16 %v1439, %v1437
        %v1484 = vpack.c.b16 %v1442, %v1440
        %v1485 = vpack.c.b16 %v1443, %v1441
        %v1486 = vpack.c.b16 %v1446, %v1444
        %v1487 = vpack.c.b16 %v1447, %v1445
        %v1488 = vpack.c.b16 %v1450, %v1448
        %v1489 = vpack.c.b16 %v1451, %v1449
        %v1490 = vpack.c.b16 %v1454, %v1452
        %v1491 = vpack.c.b16 %v1455, %v1453
        %v1492 = vpack.c.b16 %v1458, %v1456
        %v1493 = vpack.c.b16 %v1459, %v1457
        %v1494 = vpack.c.b16 %v1462, %v1460
        %v1495 = vpack.c.b16 %v1463, %v1461
        %1528 = vmatprep.subr.bf16.mxu0 %v1465
        %1529 = vmatpush1.bf16.msra.mxu0 %v1464
        %1530 = vmatprep.subr.bf16.mxu0 %v1467
        %1531 = vmatpush1.bf16.msra.mxu0 %v1466
        %1532 = vmatprep.subr.bf16.mxu0 %v1469
        %1533 = vmatpush1.bf16.msra.mxu0 %v1468
        %1534 = vmatprep.subr.bf16.mxu0 %v1471
        %1535 = vmatpush1.bf16.msra.mxu0 %v1470
        %1536 = vmatprep.subr.bf16.mxu0 %v1473
        %1537 = vmatpush1.bf16.msra.mxu0 %v1472
        %1538 = vmatprep.subr.bf16.mxu0 %v1475
        %1539 = vmatpush1.bf16.msra.mxu0 %v1474
        %1540 = vmatprep.subr.bf16.mxu0 %v1477
        %1541 = vmatpush1.bf16.msra.mxu0 %v1476
        %1542 = vmatprep.subr.bf16.mxu0 %v1479
        %1543 = vmatpush1.bf16.msra.mxu0 %v1478
        %1544 = vmatprep.subr.bf16.mxu0 %v1481
        %1545 = vmatpush1.bf16.msra.mxu0 %v1480
        %1546 = vmatprep.subr.bf16.mxu0 %v1483
        %1547 = vmatpush1.bf16.msra.mxu0 %v1482
        %1548 = vmatprep.subr.bf16.mxu0 %v1485
        %1549 = vmatpush1.bf16.msra.mxu0 %v1484
        %1550 = vmatprep.subr.bf16.mxu0 %v1487
        %1551 = vmatpush1.bf16.msra.mxu0 %v1486
        %1552 = vmatprep.subr.bf16.mxu0 %v1489
        %1553 = vmatpush1.bf16.msra.mxu0 %v1488
        %1554 = vmatprep.subr.bf16.mxu0 %v1491
        %1555 = vmatpush1.bf16.msra.mxu0 %v1490
        %1556 = vmatprep.subr.bf16.mxu0 %v1493
        %1557 = vmatpush1.bf16.msra.mxu0 %v1492
        %1558 = vmatprep.subr.bf16.mxu0 %v1495
        %1559 = vmatpush1.bf16.msra.mxu0 %v1494
        %1560 = vmatprep.mubr.bf16.mxu0 %v1321
        %1561 = vmatmul.mubr.bf16.gmra.mrb[0].mxu0 %v1320
        %v1562 = vpop.f32.mrb[0].mxu0
        %v1563 = vadd.f32 %v1361, %v1562
        %v1564 = vpop.f32.mrb[0].mxu0
        %v1565 = vadd.f32 %v1365, %v1564
        %v1566 = vpop.f32.mrb[0].mxu0
        %v1567 = vadd.f32 %v1361, %v1566
        %v1568 = vpop.f32.mrb[0].mxu0
        %v1569 = vadd.f32 %v1365, %v1568
        %1570 = vmatprep.mubr.bf16.mxu0 %v1323
        %1571 = vmatmul.mubr.bf16.gmra.mrb[0].mxu0 %v1322
        %v1572 = vpop.f32.mrb[0].mxu0
        %v1573 = vadd.f32 %v1361, %v1572
        %v1574 = vpop.f32.mrb[0].mxu0
        %v1575 = vadd.f32 %v1365, %v1574
        %v1576 = vpop.f32.mrb[0].mxu0
        %v1577 = vadd.f32 %v1361, %v1576
        %v1578 = vpop.f32.mrb[0].mxu0
        %v1579 = vadd.f32 %v1365, %v1578
        %1580 = vdwg.mxu0
        %v1581 = vxor.u32 %v1563, 2147483648
        %v1582 = vxor.u32 %v1565, 2147483648
        %v1583 = vxor.u32 %v1567, 2147483648
        %v1584 = vxor.u32 %v1569, 2147483648
        %v1585 = vxor.u32 %v1573, 2147483648
        %v1586 = vxor.u32 %v1575, 2147483648
        %v1587 = vxor.u32 %v1577, 2147483648
        %v1588 = vxor.u32 %v1579, 2147483648
        %v1589 = vmul.f32 %v1581, 1.442695
        %v1590 = vpow.pop %v1589
        %v1591 = vmul.f32 %v1582, 1.442695
        %v1592 = vpow.pop %v1591
        %v1593 = vmul.f32 %v1583, 1.442695
        %v1594 = vpow.pop %v1593
        %v1595 = vmul.f32 %v1584, 1.442695
        %v1596 = vpow.pop %v1595
        %v1597 = vmul.f32 %v1585, 1.442695
        %v1598 = vpow.pop %v1597
        %v1599 = vmul.f32 %v1586, 1.442695
        %v1600 = vpow.pop %v1599
        %v1601 = vmul.f32 %v1587, 1.442695
        %v1602 = vpow.pop %v1601
        %v1603 = vmul.f32 %v1588, 1.442695
        %v1604 = vpow.pop %v1603
        %v1605 = vadd.f32 %v1590, 1.0
        %v1606 = vadd.f32 %v1592, 1.0
        %v1607 = vadd.f32 %v1594, 1.0
        %v1608 = vadd.f32 %v1596, 1.0
        %v1609 = vadd.f32 %v1598, 1.0
        %v1610 = vadd.f32 %v1600, 1.0
        %v1611 = vadd.f32 %v1602, 1.0
        %v1612 = vadd.f32 %v1604, 1.0
        %v1613 = vrcp.pop %v1605
        %v1614 = vmul.f32 1.0, %v1613
        %v1615 = vrcp.pop %v1606
        %v1616 = vmul.f32 1.0, %v1615
        %v1617 = vrcp.pop %v1607
        %v1618 = vmul.f32 1.0, %v1617
        %v1619 = vrcp.pop %v1608
        %v1620 = vmul.f32 1.0, %v1619
        %v1621 = vrcp.pop %v1609
        %v1622 = vmul.f32 1.0, %v1621
        %v1623 = vrcp.pop %v1610
        %v1624 = vmul.f32 1.0, %v1623
        %v1625 = vrcp.pop %v1611
        %v1626 = vmul.f32 1.0, %v1625
        %v1627 = vrcp.pop %v1612
        %v1628 = vmul.f32 1.0, %v1627
        %v1629 = vmul.f32 %v1563, %v1614
        %v1630 = vmul.f32 %v1565, %v1616
        %v1631 = vmul.f32 %v1567, %v1618
        %v1632 = vmul.f32 %v1569, %v1620
        %v1633 = vmul.f32 %v1573, %v1622
        %v1634 = vmul.f32 %v1575, %v1624
        %v1635 = vmul.f32 %v1577, %v1626
        %v1636 = vmul.f32 %v1579, %v1628
        %v1637 = vpack.c.bf16 %v1631, %v1629
        %v1638 = vpack.c.bf16 %v1632, %v1630
        %v1639 = vpack.c.bf16 %v1635, %v1633
        %v1640 = vpack.c.bf16 %v1636, %v1634
        %v1641 = vld [vmem:[%s671] sm:$0xf]
        %v1642 = vld [vmem:[%s671 + $0x4] sm:$0xf]
        %v1643 = vld [vmem:[%s671 + $0x8] sm:$0xf]
        %v1644 = vld [vmem:[%s671 + $0xc] sm:$0xf]
        %v1645 = vld [vmem:[%s671 + $0x10] sm:$0xf]
        %v1646 = vld [vmem:[%s671 + $0x14] sm:$0xf]
        %v1647 = vld [vmem:[%s671 + $0x18] sm:$0xf]
        %v1648 = vld [vmem:[%s671 + $0x1c] sm:$0xf]
        %v1649 = vld [vmem:[%s671 + $0x20] sm:$0xf]
        %v1650 = vld [vmem:[%s671 + $0x24] sm:$0xf]
        %v1651 = vld [vmem:[%s671 + $0x28] sm:$0xf]
        %v1652 = vld [vmem:[%s671 + $0x2c] sm:$0xf]
        %v1653 = vld [vmem:[%s671 + $0x30] sm:$0xf]
        %v1654 = vld [vmem:[%s671 + $0x34] sm:$0xf]
        %v1655 = vld [vmem:[%s671 + $0x38] sm:$0xf]
        %v1656 = vld [vmem:[%s671 + $0x3c] sm:$0xf]
        %v1657 = vld [vmem:[%s671 + $0x40] sm:$0xf]
        %v1658 = vld [vmem:[%s671 + $0x44] sm:$0xf]
        %v1659 = vld [vmem:[%s671 + $0x48] sm:$0xf]
        %v1660 = vld [vmem:[%s671 + $0x4c] sm:$0xf]
        %v1661 = vld [vmem:[%s671 + $0x50] sm:$0xf]
        %v1662 = vld [vmem:[%s671 + $0x54] sm:$0xf]
        %v1663 = vld [vmem:[%s671 + $0x58] sm:$0xf]
        %v1664 = vld [vmem:[%s671 + $0x5c] sm:$0xf]
        %v1665 = vld [vmem:[%s671 + $0x60] sm:$0xf]
        %v1666 = vld [vmem:[%s671 + $0x64] sm:$0xf]
        %v1667 = vld [vmem:[%s671 + $0x68] sm:$0xf]
        %v1668 = vld [vmem:[%s671 + $0x6c] sm:$0xf]
        %v1669 = vld [vmem:[%s671 + $0x70] sm:$0xf]
        %v1670 = vld [vmem:[%s671 + $0x74] sm:$0xf]
        %v1671 = vld [vmem:[%s671 + $0x78] sm:$0xf]
        %v1672 = vld [vmem:[%s671 + $0x7c] sm:$0xf]
        %v1673 = vld [vmem:[%s822] sm:$0x1]
        %v1675 = vlaneseq
        %v1676 = vshrl.u32 %v1675, 7
        %v1677 = vsub.s32 0, %v1676
        %v1678 = vrot.slane %v1673, %v1677
        %v1712 = vunpack.c.l.b16 %v1641
        %v1713 = vunpack.c.l.b16 %v1642
        %v1714 = vunpack.c.l.b16 %v1643
        %v1715 = vunpack.c.l.b16 %v1644
        %v1716 = vunpack.c.l.b16 %v1645
        %v1717 = vunpack.c.l.b16 %v1646
        %v1718 = vunpack.c.l.b16 %v1647
        %v1719 = vunpack.c.l.b16 %v1648
        %v1720 = vunpack.c.l.b16 %v1649
        %v1721 = vunpack.c.l.b16 %v1650
        %v1722 = vunpack.c.l.b16 %v1651
        %v1723 = vunpack.c.l.b16 %v1652
        %v1724 = vunpack.c.l.b16 %v1653
        %v1725 = vunpack.c.l.b16 %v1654
        %v1726 = vunpack.c.l.b16 %v1655
        %v1727 = vunpack.c.l.b16 %v1656
        %v1728 = vunpack.c.l.b16 %v1657
        %v1729 = vunpack.c.l.b16 %v1658
        %v1730 = vunpack.c.l.b16 %v1659
        %v1731 = vunpack.c.l.b16 %v1660
        %v1732 = vunpack.c.l.b16 %v1661
        %v1733 = vunpack.c.l.b16 %v1662
        %v1734 = vunpack.c.l.b16 %v1663
        %v1735 = vunpack.c.l.b16 %v1664
        %v1736 = vunpack.c.l.b16 %v1665
        %v1737 = vunpack.c.l.b16 %v1666
        %v1738 = vunpack.c.l.b16 %v1667
        %v1739 = vunpack.c.l.b16 %v1668
        %v1740 = vunpack.c.l.b16 %v1669
        %v1741 = vunpack.c.l.b16 %v1670
        %v1742 = vunpack.c.l.b16 %v1671
        %v1743 = vunpack.c.l.b16 %v1672
        %v1744 = vpack.c.b16 %v1713, %v1712
        %v1745 = vpack.c.b16 %v1715, %v1714
        %v1746 = vpack.c.b16 %v1717, %v1716
        %v1747 = vpack.c.b16 %v1719, %v1718
        %v1748 = vpack.c.b16 %v1721, %v1720
        %v1749 = vpack.c.b16 %v1723, %v1722
        %v1750 = vpack.c.b16 %v1725, %v1724
        %v1751 = vpack.c.b16 %v1727, %v1726
        %v1752 = vpack.c.b16 %v1729, %v1728
        %v1753 = vpack.c.b16 %v1731, %v1730
        %v1754 = vpack.c.b16 %v1733, %v1732
        %v1755 = vpack.c.b16 %v1735, %v1734
        %v1756 = vpack.c.b16 %v1737, %v1736
        %v1757 = vpack.c.b16 %v1739, %v1738
        %v1758 = vpack.c.b16 %v1741, %v1740
        %v1759 = vpack.c.b16 %v1743, %v1742
        %1776 = vmatprep.subr.bf16.mxu0 0
        %1777 = vmatpush1.bf16.msra.mxu0 %v1744
        %1778 = vmatprep.subr.bf16.mxu0 0
        %1779 = vmatpush1.bf16.msra.mxu0 %v1745
        %1780 = vmatprep.subr.bf16.mxu0 0
        %1781 = vmatpush1.bf16.msra.mxu0 %v1746
        %1782 = vmatprep.subr.bf16.mxu0 0
        %1783 = vmatpush1.bf16.msra.mxu0 %v1747
        %1784 = vmatprep.subr.bf16.mxu0 0
        %1785 = vmatpush1.bf16.msra.mxu0 %v1748
        %1786 = vmatprep.subr.bf16.mxu0 0
        %1787 = vmatpush1.bf16.msra.mxu0 %v1749
        %1788 = vmatprep.subr.bf16.mxu0 0
        %1789 = vmatpush1.bf16.msra.mxu0 %v1750
        %1790 = vmatprep.subr.bf16.mxu0 0
        %1791 = vmatpush1.bf16.msra.mxu0 %v1751
        %1792 = vmatprep.subr.bf16.mxu0 0
        %1793 = vmatpush1.bf16.msra.mxu0 %v1752
        %1794 = vmatprep.subr.bf16.mxu0 0
        %1795 = vmatpush1.bf16.msra.mxu0 %v1753
        %1796 = vmatprep.subr.bf16.mxu0 0
        %1797 = vmatpush1.bf16.msra.mxu0 %v1754
        %1798 = vmatprep.subr.bf16.mxu0 0
        %1799 = vmatpush1.bf16.msra.mxu0 %v1755
        %1800 = vmatprep.subr.bf16.mxu0 0
        %1801 = vmatpush1.bf16.msra.mxu0 %v1756
        %1802 = vmatprep.subr.bf16.mxu0 0
        %1803 = vmatpush1.bf16.msra.mxu0 %v1757
        %1804 = vmatprep.subr.bf16.mxu0 0
        %1805 = vmatpush1.bf16.msra.mxu0 %v1758
        %1806 = vmatprep.subr.bf16.mxu0 0
        %1807 = vmatpush1.bf16.msra.mxu0 %v1759
        %1808 = vmatprep.mubr.bf16.mxu0 %v1638
        %1809 = vmatmul.mubr.bf16.gmra.mrb[0].mxu0 %v1637
        %v1810 = vpop.f32.mrb[0].mxu0
        %v1811 = vadd.f32 %v1678, %v1810
        %v1812 = vpop.f32.mrb[0].mxu0
        %v1813 = vpop.f32.mrb[0].mxu0
        %v1814 = vadd.f32 %v1678, %v1813
        %v1815 = vpop.f32.mrb[0].mxu0
        %1816 = vmatprep.mubr.bf16.mxu0 %v1640
        %1817 = vmatmul.mubr.bf16.gmra.mrb[0].mxu0 %v1639
        %v1818 = vpop.f32.mrb[0].mxu0
        %v1819 = vadd.f32 %v1678, %v1818
        %v1820 = vpop.f32.mrb[0].mxu0
        %v1821 = vpop.f32.mrb[0].mxu0
        %v1822 = vadd.f32 %v1678, %v1821
        %v1823 = vpop.f32.mrb[0].mxu0
        %1824 = vdwg.mxu0
        %v1825 = vld [vmem:[%s680] sm:$0xf]
        %v1826 = vld [vmem:[%s680 + $0x4] sm:$0xf]
        %v1827 = vld [vmem:[%s680 + $0x8] sm:$0xf]
        %v1828 = vld [vmem:[%s680 + $0xc] sm:$0xf]
        %v1829 = vld [vmem:[%s680 + $0x10] sm:$0xf]
        %v1830 = vld [vmem:[%s680 + $0x14] sm:$0xf]
        %v1831 = vld [vmem:[%s680 + $0x18] sm:$0xf]
        %v1832 = vld [vmem:[%s680 + $0x1c] sm:$0xf]
        %v1833 = vld [vmem:[%s680 + $0x20] sm:$0xf]
        %v1834 = vld [vmem:[%s680 + $0x24] sm:$0xf]
        %v1835 = vld [vmem:[%s680 + $0x28] sm:$0xf]
        %v1836 = vld [vmem:[%s680 + $0x2c] sm:$0xf]
        %v1837 = vld [vmem:[%s680 + $0x30] sm:$0xf]
        %v1838 = vld [vmem:[%s680 + $0x34] sm:$0xf]
        %v1839 = vld [vmem:[%s680 + $0x38] sm:$0xf]
        %v1840 = vld [vmem:[%s680 + $0x3c] sm:$0xf]
        %v1841 = vld [vmem:[%s680 + $0x40] sm:$0xf]
        %v1842 = vld [vmem:[%s680 + $0x44] sm:$0xf]
        %v1843 = vld [vmem:[%s680 + $0x48] sm:$0xf]
        %v1844 = vld [vmem:[%s680 + $0x4c] sm:$0xf]
        %v1845 = vld [vmem:[%s680 + $0x50] sm:$0xf]
        %v1846 = vld [vmem:[%s680 + $0x54] sm:$0xf]
        %v1847 = vld [vmem:[%s680 + $0x58] sm:$0xf]
        %v1848 = vld [vmem:[%s680 + $0x5c] sm:$0xf]
        %v1849 = vld [vmem:[%s680 + $0x60] sm:$0xf]
        %v1850 = vld [vmem:[%s680 + $0x64] sm:$0xf]
        %v1851 = vld [vmem:[%s680 + $0x68] sm:$0xf]
        %v1852 = vld [vmem:[%s680 + $0x6c] sm:$0xf]
        %v1853 = vld [vmem:[%s680 + $0x70] sm:$0xf]
        %v1854 = vld [vmem:[%s680 + $0x74] sm:$0xf]
        %v1855 = vld [vmem:[%s680 + $0x78] sm:$0xf]
        %v1856 = vld [vmem:[%s680 + $0x7c] sm:$0xf]
        %v1857 = vld [vmem:[%s828] sm:$0x1]
        %v1859 = vlaneseq
        %v1860 = vshrl.u32 %v1859, 7
        %v1861 = vsub.s32 0, %v1860
        %v1862 = vrot.slane %v1857, %v1861
        %v1896 = vunpack.c.l.b16 %v1825
        %v1897 = vunpack.c.l.b16 %v1826
        %v1898 = vunpack.c.l.b16 %v1827
        %v1899 = vunpack.c.l.b16 %v1828
        %v1900 = vunpack.c.l.b16 %v1829
        %v1901 = vunpack.c.l.b16 %v1830
        %v1902 = vunpack.c.l.b16 %v1831
        %v1903 = vunpack.c.l.b16 %v1832
        %v1904 = vunpack.c.l.b16 %v1833
        %v1905 = vunpack.c.l.b16 %v1834
        %v1906 = vunpack.c.l.b16 %v1835
        %v1907 = vunpack.c.l.b16 %v1836
        %v1908 = vunpack.c.l.b16 %v1837
        %v1909 = vunpack.c.l.b16 %v1838
        %v1910 = vunpack.c.l.b16 %v1839
        %v1911 = vunpack.c.l.b16 %v1840
        %v1912 = vunpack.c.l.b16 %v1841
        %v1913 = vunpack.c.l.b16 %v1842
        %v1914 = vunpack.c.l.b16 %v1843
        %v1915 = vunpack.c.l.b16 %v1844
        %v1916 = vunpack.c.l.b16 %v1845
        %v1917 = vunpack.c.l.b16 %v1846
        %v1918 = vunpack.c.l.b16 %v1847
        %v1919 = vunpack.c.l.b16 %v1848
        %v1920 = vunpack.c.l.b16 %v1849
        %v1921 = vunpack.c.l.b16 %v1850
        %v1922 = vunpack.c.l.b16 %v1851
        %v1923 = vunpack.c.l.b16 %v1852
        %v1924 = vunpack.c.l.b16 %v1853
        %v1925 = vunpack.c.l.b16 %v1854
        %v1926 = vunpack.c.l.b16 %v1855
        %v1927 = vunpack.c.l.b16 %v1856
        %v1928 = vpack.c.b16 %v1897, %v1896
        %v1929 = vpack.c.b16 %v1899, %v1898
        %v1930 = vpack.c.b16 %v1901, %v1900
        %v1931 = vpack.c.b16 %v1903, %v1902
        %v1932 = vpack.c.b16 %v1905, %v1904
        %v1933 = vpack.c.b16 %v1907, %v1906
        %v1934 = vpack.c.b16 %v1909, %v1908
        %v1935 = vpack.c.b16 %v1911, %v1910
        %v1936 = vpack.c.b16 %v1913, %v1912
        %v1937 = vpack.c.b16 %v1915, %v1914
        %v1938 = vpack.c.b16 %v1917, %v1916
        %v1939 = vpack.c.b16 %v1919, %v1918
        %v1940 = vpack.c.b16 %v1921, %v1920
        %v1941 = vpack.c.b16 %v1923, %v1922
        %v1942 = vpack.c.b16 %v1925, %v1924
        %v1943 = vpack.c.b16 %v1927, %v1926
        %1960 = vmatprep.subr.bf16.mxu0 0
        %1961 = vmatpush1.bf16.msra.mxu0 %v1928
        %1962 = vmatprep.subr.bf16.mxu0 0
        %1963 = vmatpush1.bf16.msra.mxu0 %v1929
        %1964 = vmatprep.subr.bf16.mxu0 0
        %1965 = vmatpush1.bf16.msra.mxu0 %v1930
        %1966 = vmatprep.subr.bf16.mxu0 0
        %1967 = vmatpush1.bf16.msra.mxu0 %v1931
        %1968 = vmatprep.subr.bf16.mxu0 0
        %1969 = vmatpush1.bf16.msra.mxu0 %v1932
        %1970 = vmatprep.subr.bf16.mxu0 0
        %1971 = vmatpush1.bf16.msra.mxu0 %v1933
        %1972 = vmatprep.subr.bf16.mxu0 0
        %1973 = vmatpush1.bf16.msra.mxu0 %v1934
        %1974 = vmatprep.subr.bf16.mxu0 0
        %1975 = vmatpush1.bf16.msra.mxu0 %v1935
        %1976 = vmatprep.subr.bf16.mxu0 0
        %1977 = vmatpush1.bf16.msra.mxu0 %v1936
        %1978 = vmatprep.subr.bf16.mxu0 0
        %1979 = vmatpush1.bf16.msra.mxu0 %v1937
        %1980 = vmatprep.subr.bf16.mxu0 0
        %1981 = vmatpush1.bf16.msra.mxu0 %v1938
        %1982 = vmatprep.subr.bf16.mxu0 0
        %1983 = vmatpush1.bf16.msra.mxu0 %v1939
        %1984 = vmatprep.subr.bf16.mxu0 0
        %1985 = vmatpush1.bf16.msra.mxu0 %v1940
        %1986 = vmatprep.subr.bf16.mxu0 0
        %1987 = vmatpush1.bf16.msra.mxu0 %v1941
        %1988 = vmatprep.subr.bf16.mxu0 0
        %1989 = vmatpush1.bf16.msra.mxu0 %v1942
        %1990 = vmatprep.subr.bf16.mxu0 0
        %1991 = vmatpush1.bf16.msra.mxu0 %v1943
        %1992 = vmatprep.mubr.bf16.mxu0 %v1638
        %1993 = vmatmul.mubr.bf16.gmra.mrb[0].mxu0 %v1637
        %v1994 = vpop.f32.mrb[0].mxu0
        %v1995 = vadd.f32 %v1862, %v1994
        %v1996 = vpop.f32.mrb[0].mxu0
        %v1997 = vpop.f32.mrb[0].mxu0
        %v1998 = vadd.f32 %v1862, %v1997
        %v1999 = vpop.f32.mrb[0].mxu0
        %2000 = vmatprep.mubr.bf16.mxu0 %v1640
        %2001 = vmatmul.mubr.bf16.gmra.mrb[0].mxu0 %v1639
        %v2002 = vpop.f32.mrb[0].mxu0
        %v2003 = vadd.f32 %v1862, %v2002
        %v2004 = vpop.f32.mrb[0].mxu0
        %v2005 = vpop.f32.mrb[0].mxu0
        %v2006 = vadd.f32 %v1862, %v2005
        %v2007 = vpop.f32.mrb[0].mxu0
        %2008 = vdwg.mxu0
        %v2010 = vlaneseq
        %v2011 = vshrl.u32 %v2010, 7
        %v2012 = vsub.s32 0, %v2011
        %v2013 = vrot.slane %v835, %v2012
        %v2015 = vsub.f32 %v2013, %v1995
        %v2016 = vsub.f32 %v2013, %v1998
        %v2017 = vsub.f32 %v2013, %v2003
        %v2018 = vsub.f32 %v2013, %v2006
        %v2019 = vmax.f32 %v2015, 0.0
        %v2020 = vmax.f32 %v2016, 0.0
        %v2021 = vmax.f32 %v2017, 0.0
        %v2022 = vmax.f32 %v2018, 0.0
        %vm2023 = vcmp.ne.f32.partialorder %v2015, %v2015
        %vm2024 = vcmp.ne.f32.partialorder %v2016, %v2016
        %vm2025 = vcmp.ne.f32.partialorder %v2017, %v2017
        %vm2026 = vcmp.ne.f32.partialorder %v2018, %v2018
        %v2027 = vadd.f32 %v2015, 0.0
        %v2028 = vadd.f32 %v2016, 0.0
        %v2029 = vadd.f32 %v2017, 0.0
        %v2030 = vadd.f32 %v2018, 0.0
        %v2031 = vand.u32 2147483647, %v2015
        %v2032 = vand.u32 2147483647, %v2016
        %v2033 = vand.u32 2147483647, %v2017
        %v2034 = vand.u32 2147483647, %v2018
        %v2035 = vsub.f32 0.0, %v2031
        %v2036 = vsub.f32 0.0, %v2032
        %v2037 = vsub.f32 0.0, %v2033
        %v2038 = vsub.f32 0.0, %v2034
        %v2039 = vmul.f32 %v2035, 1.442695
        %v2040 = vpow.pop %v2039
        %v2041 = vmul.f32 %v2036, 1.442695
        %v2042 = vpow.pop %v2041
        %v2043 = vmul.f32 %v2037, 1.442695
        %v2044 = vpow.pop %v2043
        %v2045 = vmul.f32 %v2038, 1.442695
        %v2046 = vpow.pop %v2045
        %v2047 = vadd.f32 %v2040, 1.0
        %v2048 = vlog2.pop %v2047
        %v2049 = vmul.f32 %v2048, 0.6931472
        %v2050 = vmul.f32 -0.5, %v2040
        %v2051 = vadd.f32 %v2050, 1.0
        %v2052 = vmul.f32 %v2051, %v2040
        %v2053 = vand.u32 2147483647, %v2040
        %vm2054 = vcmp.lt.f32.partialorder %v2053, 0.0004427343
        %v2055 = vsel %vm2054, %v2052, %v2049
        %v2056 = vadd.f32 %v2042, 1.0
        %v2057 = vlog2.pop %v2056
        %v2058 = vmul.f32 %v2057, 0.6931472
        %v2059 = vmul.f32 -0.5, %v2042
        %v2060 = vadd.f32 %v2059, 1.0
        %v2061 = vmul.f32 %v2060, %v2042
        %v2062 = vand.u32 2147483647, %v2042
        %vm2063 = vcmp.lt.f32.partialorder %v2062, 0.0004427343
        %v2064 = vsel %vm2063, %v2061, %v2058
        %v2065 = vadd.f32 %v2044, 1.0
        %v2066 = vlog2.pop %v2065
        %v2067 = vmul.f32 %v2066, 0.6931472
        %v2068 = vmul.f32 -0.5, %v2044
        %v2069 = vadd.f32 %v2068, 1.0
        %v2070 = vmul.f32 %v2069, %v2044
        %v2071 = vand.u32 2147483647, %v2044
        %vm2072 = vcmp.lt.f32.partialorder %v2071, 0.0004427343
        %v2073 = vsel %vm2072, %v2070, %v2067
        %v2074 = vadd.f32 %v2046, 1.0
        %v2075 = vlog2.pop %v2074
        %v2076 = vmul.f32 %v2075, 0.6931472
        %v2077 = vmul.f32 -0.5, %v2046
        %v2078 = vadd.f32 %v2077, 1.0
        %v2079 = vmul.f32 %v2078, %v2046
        %v2080 = vand.u32 2147483647, %v2046
        %vm2081 = vcmp.lt.f32.partialorder %v2080, 0.0004427343
        %v2082 = vsel %vm2081, %v2079, %v2076
        %v2083 = vadd.f32 %v2019, %v2055
        %v2084 = vadd.f32 %v2020, %v2064
        %v2085 = vadd.f32 %v2021, %v2073
        %v2086 = vadd.f32 %v2022, %v2082
        %v2087 = vsel %vm2023, %v2027, %v2083
        %v2088 = vsel %vm2024, %v2028, %v2084
        %v2089 = vsel %vm2025, %v2029, %v2085
        %v2090 = vsel %vm2026, %v2030, %v2086
        %v2091 = vsub.f32 %v2013, %v2087
        %v2092 = vsub.f32 %v2013, %v2088
        %v2093 = vsub.f32 %v2013, %v2089
        %v2094 = vsub.f32 %v2013, %v2090
        %v2096 = vlaneseq
        %v2097 = vshrl.u32 %v2096, 7
        %v2098 = vsub.s32 0, %v2097
        %v2099 = vrot.slane %v836, %v2098
        %v2101 = vsub.f32 %v2091, %v2099
        %v2102 = vsub.f32 %v2092, %v2099
        %v2103 = vsub.f32 %v2093, %v2099
        %v2104 = vsub.f32 %v2094, %v2099
        %v2105 = vmax.f32 %v2101, 0.0
        %v2106 = vmax.f32 %v2102, 0.0
        %v2107 = vmax.f32 %v2103, 0.0
        %v2108 = vmax.f32 %v2104, 0.0
        %vm2109 = vcmp.ne.f32.partialorder %v2101, %v2101
        %vm2110 = vcmp.ne.f32.partialorder %v2102, %v2102
        %vm2111 = vcmp.ne.f32.partialorder %v2103, %v2103
        %vm2112 = vcmp.ne.f32.partialorder %v2104, %v2104
        %v2113 = vadd.f32 %v2101, 0.0
        %v2114 = vadd.f32 %v2102, 0.0
        %v2115 = vadd.f32 %v2103, 0.0
        %v2116 = vadd.f32 %v2104, 0.0
        %v2117 = vand.u32 2147483647, %v2101
        %v2118 = vand.u32 2147483647, %v2102
        %v2119 = vand.u32 2147483647, %v2103
        %v2120 = vand.u32 2147483647, %v2104
        %v2121 = vsub.f32 0.0, %v2117
        %v2122 = vsub.f32 0.0, %v2118
        %v2123 = vsub.f32 0.0, %v2119
        %v2124 = vsub.f32 0.0, %v2120
        %v2125 = vmul.f32 %v2121, 1.442695
        %v2126 = vpow.pop %v2125
        %v2127 = vmul.f32 %v2122, 1.442695
        %v2128 = vpow.pop %v2127
        %v2129 = vmul.f32 %v2123, 1.442695
        %v2130 = vpow.pop %v2129
        %v2131 = vmul.f32 %v2124, 1.442695
        %v2132 = vpow.pop %v2131
        %v2133 = vadd.f32 %v2126, 1.0
        %v2134 = vlog2.pop %v2133
        %v2135 = vmul.f32 %v2134, 0.6931472
        %v2136 = vmul.f32 -0.5, %v2126
        %v2137 = vadd.f32 %v2136, 1.0
        %v2138 = vmul.f32 %v2137, %v2126
        %v2139 = vand.u32 2147483647, %v2126
        %vm2140 = vcmp.lt.f32.partialorder %v2139, 0.0004427343
        %v2141 = vsel %vm2140, %v2138, %v2135
        %v2142 = vadd.f32 %v2128, 1.0
        %v2143 = vlog2.pop %v2142
        %v2144 = vmul.f32 %v2143, 0.6931472
        %v2145 = vmul.f32 -0.5, %v2128
        %v2146 = vadd.f32 %v2145, 1.0
        %v2147 = vmul.f32 %v2146, %v2128
        %v2148 = vand.u32 2147483647, %v2128
        %vm2149 = vcmp.lt.f32.partialorder %v2148, 0.0004427343
        %v2150 = vsel %vm2149, %v2147, %v2144
        %v2151 = vadd.f32 %v2130, 1.0
        %v2152 = vlog2.pop %v2151
        %v2153 = vmul.f32 %v2152, 0.6931472
        %v2154 = vmul.f32 -0.5, %v2130
        %v2155 = vadd.f32 %v2154, 1.0
        %v2156 = vmul.f32 %v2155, %v2130
        %v2157 = vand.u32 2147483647, %v2130
        %vm2158 = vcmp.lt.f32.partialorder %v2157, 0.0004427343
        %v2159 = vsel %vm2158, %v2156, %v2153
        %v2160 = vadd.f32 %v2132, 1.0
        %v2161 = vlog2.pop %v2160
        %v2162 = vmul.f32 %v2161, 0.6931472
        %v2163 = vmul.f32 -0.5, %v2132
        %v2164 = vadd.f32 %v2163, 1.0
        %v2165 = vmul.f32 %v2164, %v2132
        %v2166 = vand.u32 2147483647, %v2132
        %vm2167 = vcmp.lt.f32.partialorder %v2166, 0.0004427343
        %v2168 = vsel %vm2167, %v2165, %v2162
        %v2169 = vadd.f32 %v2105, %v2141
        %v2170 = vadd.f32 %v2106, %v2150
        %v2171 = vadd.f32 %v2107, %v2159
        %v2172 = vadd.f32 %v2108, %v2168
        %v2173 = vsel %vm2109, %v2113, %v2169
        %v2174 = vsel %vm2110, %v2114, %v2170
        %v2175 = vsel %vm2111, %v2115, %v2171
        %v2176 = vsel %vm2112, %v2116, %v2172
        %v2177 = vadd.f32 %v2099, %v2173
        %v2178 = vadd.f32 %v2099, %v2174
        %v2179 = vadd.f32 %v2099, %v2175
        %v2180 = vadd.f32 %v2099, %v2176
        %2181 = vst [vmem:[%s776] sm:$0xff] %v1811
        %2182 = vst [vmem:[%s776 + $0x8] sm:$0xff] %v1814
        %2183 = vst [vmem:[%s776 + $0x10] sm:$0xff] %v1819
        %2184 = vst [vmem:[%s776 + $0x18] sm:$0xff] %v1822
        %v2185 = vmul.f32 %v2177, 1.442695
        %v2186 = vpow.pop %v2185
        %v2187 = vmul.f32 %v2178, 1.442695
        %v2188 = vpow.pop %v2187
        %v2189 = vmul.f32 %v2179, 1.442695
        %v2190 = vpow.pop %v2189
        %v2191 = vmul.f32 %v2180, 1.442695
        %v2192 = vpow.pop %v2191
        %2193 = vst [vmem:[%s783] sm:$0xff] %v2186
        %2194 = vst [vmem:[%s783 + $0x8] sm:$0xff] %v2188
        %2195 = vst [vmem:[%s783 + $0x10] sm:$0xff] %v2190
        %2196 = vst [vmem:[%s783 + $0x18] sm:$0xff] %v2192
        %s2197 = scalar_lea.vmem %s789, 32
        %v2198 = vld [vmem:[%s2197] sm:$0xff]
        %v2199 = vld [vmem:[%s2197 + $0x8] sm:$0xff]
        %v2200 = vld [vmem:[%s2197 + $0x10] sm:$0xff]
        %v2201 = vld [vmem:[%s2197 + $0x18] sm:$0xff]
        %v2202 = vsub.f32 %v2198, %v845
        %v2203 = vsub.f32 %v2199, %v845
        %v2204 = vsub.f32 %v2200, %v845
        %v2205 = vsub.f32 %v2201, %v845
        %v2206 = vmul.f32 %v2202, %v855
        %v2207 = vmul.f32 %v2203, %v855
        %v2208 = vmul.f32 %v2204, %v855
        %v2209 = vmul.f32 %v2205, %v855
        %v2210 = vpack.c.bf16 %v2207, %v2206
        %v2211 = vpack.c.bf16 %v2209, %v2208
        %s2212 = scalar_lea.vmem %s796, 16
        %v2213 = vld [vmem:[%s2212] sm:$0xff]
        %v2214 = vld [vmem:[%s2212 + $0x8] sm:$0xff]
        %s2215 = scalar_lea.vmem %s802, 2
        %v2216 = vld [vmem:[%s2215] sm:$0x3]
        %v2218 = vlaneseq
        %v2219 = vshrl.u32 %v2218, 7
        %v2220 = vsub.s32 0, %v2219
        %v2221 = vrot.slane %v2216, %v2220
        %v2222 = vlaneseq
        %v2223 = vshrl.u32 %v2222, 7
        %v2224 = vsub.s32 1, %v2223
        %v2225 = vrot.slane %v2216, %v2224
        %v2230 = vunpack.c.l.b16 %v2213
        %v2231 = vunpack.c.h.b16 %v2213
        %v2232 = vunpack.c.l.b16 %v2214
        %v2233 = vunpack.c.h.b16 %v2214
        %v2234 = vpack.c.b16 %v2232, %v2230
        %v2235 = vpack.c.b16 %v2233, %v2231
        %v2239 = vsel %vm887, %v2210, 0
        %v2242 = vsel %vm887, %v2211, 0
        %2244 = vmatprep.subr.bf16.mxu0 %v2235
        %2245 = vmatpush1.bf16.msra.mxu0 %v2234
        %2246 = vmatprep.subr.bf16.mxu0 0
        %2247 = vmatpush1.bf16.msra.mxu0 0
        %2248 = vmatprep.subr.bf16.mxu0 0
        %2249 = vmatpush1.bf16.msra.mxu0 0
        %2250 = vmatprep.subr.bf16.mxu0 0
        %2251 = vmatpush1.bf16.msra.mxu0 0
        %2252 = vmatprep.subr.bf16.mxu0 0
        %2253 = vmatpush1.bf16.msra.mxu0 0
        %2254 = vmatprep.subr.bf16.mxu0 0
        %2255 = vmatpush1.bf16.msra.mxu0 0
        %2256 = vmatprep.subr.bf16.mxu0 0
        %2257 = vmatpush1.bf16.msra.mxu0 0
        %2258 = vmatprep.subr.bf16.mxu0 0
        %2259 = vmatpush1.bf16.msra.mxu0 0
        %2260 = vmatprep.subr.bf16.mxu0 0
        %2261 = vmatpush1.bf16.msra.mxu0 0
        %2262 = vmatprep.subr.bf16.mxu0 0
        %2263 = vmatpush1.bf16.msra.mxu0 0
        %2264 = vmatprep.subr.bf16.mxu0 0
        %2265 = vmatpush1.bf16.msra.mxu0 0
        %2266 = vmatprep.subr.bf16.mxu0 0
        %2267 = vmatpush1.bf16.msra.mxu0 0
        %2268 = vmatprep.subr.bf16.mxu0 0
        %2269 = vmatpush1.bf16.msra.mxu0 0
        %2270 = vmatprep.subr.bf16.mxu0 0
        %2271 = vmatpush1.bf16.msra.mxu0 0
        %2272 = vmatprep.subr.bf16.mxu0 0
        %2273 = vmatpush1.bf16.msra.mxu0 0
        %2274 = vmatprep.subr.bf16.mxu0 0
        %2275 = vmatpush1.bf16.msra.mxu0 0
        %2276 = vmatprep.mubr.bf16.mxu0 0
        %2277 = vmatmul.mubr.bf16.gmra.mrb[0].mxu0 %v2239
        %v2278 = vpop.f32.mrb[0].mxu0
        %v2279 = vadd.f32 %v2221, %v2278
        %v2280 = vpop.f32.mrb[0].mxu0
        %v2281 = vadd.f32 %v2225, %v2280
        %v2282 = vpop.f32.mrb[0].mxu0
        %v2283 = vadd.f32 %v2221, %v2282
        %v2284 = vpop.f32.mrb[0].mxu0
        %v2285 = vadd.f32 %v2225, %v2284
        %2286 = vmatprep.mubr.bf16.mxu0 0
        %2287 = vmatmul.mubr.bf16.gmra.mrb[0].mxu0 %v2242
        %v2288 = vpop.f32.mrb[0].mxu0
        %v2289 = vadd.f32 %v2221, %v2288
        %v2290 = vpop.f32.mrb[0].mxu0
        %v2291 = vadd.f32 %v2225, %v2290
        %v2292 = vpop.f32.mrb[0].mxu0
        %v2293 = vadd.f32 %v2221, %v2292
        %v2294 = vpop.f32.mrb[0].mxu0
        %v2295 = vadd.f32 %v2225, %v2294
        %2296 = vdwg.mxu0
        %v2297 = vxor.u32 %v2279, 2147483648
        %v2298 = vxor.u32 %v2281, 2147483648
        %v2299 = vxor.u32 %v2283, 2147483648
        %v2300 = vxor.u32 %v2285, 2147483648
        %v2301 = vxor.u32 %v2289, 2147483648
        %v2302 = vxor.u32 %v2291, 2147483648
        %v2303 = vxor.u32 %v2293, 2147483648
        %v2304 = vxor.u32 %v2295, 2147483648
        %v2305 = vmul.f32 %v2297, 1.442695
        %v2306 = vpow.pop %v2305
        %v2307 = vmul.f32 %v2298, 1.442695
        %v2308 = vpow.pop %v2307
        %v2309 = vmul.f32 %v2299, 1.442695
        %v2310 = vpow.pop %v2309
        %v2311 = vmul.f32 %v2300, 1.442695
        %v2312 = vpow.pop %v2311
        %v2313 = vmul.f32 %v2301, 1.442695
        %v2314 = vpow.pop %v2313
        %v2315 = vmul.f32 %v2302, 1.442695
        %v2316 = vpow.pop %v2315
        %v2317 = vmul.f32 %v2303, 1.442695
        %v2318 = vpow.pop %v2317
        %v2319 = vmul.f32 %v2304, 1.442695
        %v2320 = vpow.pop %v2319
        %v2321 = vadd.f32 %v2306, 1.0
        %v2322 = vadd.f32 %v2308, 1.0
        %v2323 = vadd.f32 %v2310, 1.0
        %v2324 = vadd.f32 %v2312, 1.0
        %v2325 = vadd.f32 %v2314, 1.0
        %v2326 = vadd.f32 %v2316, 1.0
        %v2327 = vadd.f32 %v2318, 1.0
        %v2328 = vadd.f32 %v2320, 1.0
        %v2329 = vrcp.pop %v2321
        %v2330 = vmul.f32 1.0, %v2329
        %v2331 = vrcp.pop %v2322
        %v2332 = vmul.f32 1.0, %v2331
        %v2333 = vrcp.pop %v2323
        %v2334 = vmul.f32 1.0, %v2333
        %v2335 = vrcp.pop %v2324
        %v2336 = vmul.f32 1.0, %v2335
        %v2337 = vrcp.pop %v2325
        %v2338 = vmul.f32 1.0, %v2337
        %v2339 = vrcp.pop %v2326
        %v2340 = vmul.f32 1.0, %v2339
        %v2341 = vrcp.pop %v2327
        %v2342 = vmul.f32 1.0, %v2341
        %v2343 = vrcp.pop %v2328
        %v2344 = vmul.f32 1.0, %v2343
        %v2345 = vmul.f32 %v2279, %v2330
        %v2346 = vmul.f32 %v2281, %v2332
        %v2347 = vmul.f32 %v2283, %v2334
        %v2348 = vmul.f32 %v2285, %v2336
        %v2349 = vmul.f32 %v2289, %v2338
        %v2350 = vmul.f32 %v2291, %v2340
        %v2351 = vmul.f32 %v2293, %v2342
        %v2352 = vmul.f32 %v2295, %v2344
        %v2353 = vpack.c.bf16 %v2347, %v2345
        %v2354 = vpack.c.bf16 %v2348, %v2346
        %v2355 = vpack.c.bf16 %v2351, %v2349
        %v2356 = vpack.c.bf16 %v2352, %v2350
        %s2357 = scalar_lea.vmem %s653, 256 [#allocation2]
        %v2358 = vld [vmem:[%s2357] sm:$0xff]
        %v2359 = vld [vmem:[%s2357 + $0x8] sm:$0xff]
        %v2360 = vld [vmem:[%s2357 + $0x10] sm:$0xff]
        %v2361 = vld [vmem:[%s2357 + $0x18] sm:$0xff]
        %v2362 = vld [vmem:[%s2357 + $0x20] sm:$0xff]
        %v2363 = vld [vmem:[%s2357 + $0x28] sm:$0xff]
        %v2364 = vld [vmem:[%s2357 + $0x30] sm:$0xff]
        %v2365 = vld [vmem:[%s2357 + $0x38] sm:$0xff]
        %v2366 = vld [vmem:[%s2357 + $0x40] sm:$0xff]
        %v2367 = vld [vmem:[%s2357 + $0x48] sm:$0xff]
        %v2368 = vld [vmem:[%s2357 + $0x50] sm:$0xff]
        %v2369 = vld [vmem:[%s2357 + $0x58] sm:$0xff]
        %v2370 = vld [vmem:[%s2357 + $0x60] sm:$0xff]
        %v2371 = vld [vmem:[%s2357 + $0x68] sm:$0xff]
        %v2372 = vld [vmem:[%s2357 + $0x70] sm:$0xff]
        %v2373 = vld [vmem:[%s2357 + $0x78] sm:$0xff]
        %v2374 = vld [vmem:[%s2357 + $0x80] sm:$0xff]
        %v2375 = vld [vmem:[%s2357 + $0x88] sm:$0xff]
        %v2376 = vld [vmem:[%s2357 + $0x90] sm:$0xff]
        %v2377 = vld [vmem:[%s2357 + $0x98] sm:$0xff]
        %v2378 = vld [vmem:[%s2357 + $0xa0] sm:$0xff]
        %v2379 = vld [vmem:[%s2357 + $0xa8] sm:$0xff]
        %v2380 = vld [vmem:[%s2357 + $0xb0] sm:$0xff]
        %v2381 = vld [vmem:[%s2357 + $0xb8] sm:$0xff]
        %v2382 = vld [vmem:[%s2357 + $0xc0] sm:$0xff]
        %v2383 = vld [vmem:[%s2357 + $0xc8] sm:$0xff]
        %v2384 = vld [vmem:[%s2357 + $0xd0] sm:$0xff]
        %v2385 = vld [vmem:[%s2357 + $0xd8] sm:$0xff]
        %v2386 = vld [vmem:[%s2357 + $0xe0] sm:$0xff]
        %v2387 = vld [vmem:[%s2357 + $0xe8] sm:$0xff]
        %v2388 = vld [vmem:[%s2357 + $0xf0] sm:$0xff]
        %v2389 = vld [vmem:[%s2357 + $0xf8] sm:$0xff]
        %s2390 = scalar_lea.vmem %s809, 2
        %v2391 = vld [vmem:[%s2390] sm:$0x3]
        %v2393 = vlaneseq
        %v2394 = vshrl.u32 %v2393, 7
        %v2395 = vsub.s32 0, %v2394
        %v2396 = vrot.slane %v2391, %v2395
        %v2397 = vlaneseq
        %v2398 = vshrl.u32 %v2397, 7
        %v2399 = vsub.s32 1, %v2398
        %v2400 = vrot.slane %v2391, %v2399
        %v2435 = vunpack.c.l.b16 %v2358
        %v2436 = vunpack.c.h.b16 %v2358
        %v2437 = vunpack.c.l.b16 %v2359
        %v2438 = vunpack.c.h.b16 %v2359
        %v2439 = vunpack.c.l.b16 %v2360
        %v2440 = vunpack.c.h.b16 %v2360
        %v2441 = vunpack.c.l.b16 %v2361
        %v2442 = vunpack.c.h.b16 %v2361
        %v2443 = vunpack.c.l.b16 %v2362
        %v2444 = vunpack.c.h.b16 %v2362
        %v2445 = vunpack.c.l.b16 %v2363
        %v2446 = vunpack.c.h.b16 %v2363
        %v2447 = vunpack.c.l.b16 %v2364
        %v2448 = vunpack.c.h.b16 %v2364
        %v2449 = vunpack.c.l.b16 %v2365
        %v2450 = vunpack.c.h.b16 %v2365
        %v2451 = vunpack.c.l.b16 %v2366
        %v2452 = vunpack.c.h.b16 %v2366
        %v2453 = vunpack.c.l.b16 %v2367
        %v2454 = vunpack.c.h.b16 %v2367
        %v2455 = vunpack.c.l.b16 %v2368
        %v2456 = vunpack.c.h.b16 %v2368
        %v2457 = vunpack.c.l.b16 %v2369
        %v2458 = vunpack.c.h.b16 %v2369
        %v2459 = vunpack.c.l.b16 %v2370
        %v2460 = vunpack.c.h.b16 %v2370
        %v2461 = vunpack.c.l.b16 %v2371
        %v2462 = vunpack.c.h.b16 %v2371
        %v2463 = vunpack.c.l.b16 %v2372
        %v2464 = vunpack.c.h.b16 %v2372
        %v2465 = vunpack.c.l.b16 %v2373
        %v2466 = vunpack.c.h.b16 %v2373
        %v2467 = vunpack.c.l.b16 %v2374
        %v2468 = vunpack.c.h.b16 %v2374
        %v2469 = vunpack.c.l.b16 %v2375
        %v2470 = vunpack.c.h.b16 %v2375
        %v2471 = vunpack.c.l.b16 %v2376
        %v2472 = vunpack.c.h.b16 %v2376
        %v2473 = vunpack.c.l.b16 %v2377
        %v2474 = vunpack.c.h.b16 %v2377
        %v2475 = vunpack.c.l.b16 %v2378
        %v2476 = vunpack.c.h.b16 %v2378
        %v2477 = vunpack.c.l.b16 %v2379
        %v2478 = vunpack.c.h.b16 %v2379
        %v2479 = vunpack.c.l.b16 %v2380
        %v2480 = vunpack.c.h.b16 %v2380
        %v2481 = vunpack.c.l.b16 %v2381
        %v2482 = vunpack.c.h.b16 %v2381
        %v2483 = vunpack.c.l.b16 %v2382
        %v2484 = vunpack.c.h.b16 %v2382
        %v2485 = vunpack.c.l.b16 %v2383
        %v2486 = vunpack.c.h.b16 %v2383
        %v2487 = vunpack.c.l.b16 %v2384
        %v2488 = vunpack.c.h.b16 %v2384
        %v2489 = vunpack.c.l.b16 %v2385
        %v2490 = vunpack.c.h.b16 %v2385
        %v2491 = vunpack.c.l.b16 %v2386
        %v2492 = vunpack.c.h.b16 %v2386
        %v2493 = vunpack.c.l.b16 %v2387
        %v2494 = vunpack.c.h.b16 %v2387
        %v2495 = vunpack.c.l.b16 %v2388
        %v2496 = vunpack.c.h.b16 %v2388
        %v2497 = vunpack.c.l.b16 %v2389
        %v2498 = vunpack.c.h.b16 %v2389
        %v2499 = vpack.c.b16 %v2437, %v2435
        %v2500 = vpack.c.b16 %v2438, %v2436
        %v2501 = vpack.c.b16 %v2441, %v2439
        %v2502 = vpack.c.b16 %v2442, %v2440
        %v2503 = vpack.c.b16 %v2445, %v2443
        %v2504 = vpack.c.b16 %v2446, %v2444
        %v2505 = vpack.c.b16 %v2449, %v2447
        %v2506 = vpack.c.b16 %v2450, %v2448
        %v2507 = vpack.c.b16 %v2453, %v2451
        %v2508 = vpack.c.b16 %v2454, %v2452
        %v2509 = vpack.c.b16 %v2457, %v2455
        %v2510 = vpack.c.b16 %v2458, %v2456
        %v2511 = vpack.c.b16 %v2461, %v2459
        %v2512 = vpack.c.b16 %v2462, %v2460
        %v2513 = vpack.c.b16 %v2465, %v2463
        %v2514 = vpack.c.b16 %v2466, %v2464
        %v2515 = vpack.c.b16 %v2469, %v2467
        %v2516 = vpack.c.b16 %v2470, %v2468
        %v2517 = vpack.c.b16 %v2473, %v2471
        %v2518 = vpack.c.b16 %v2474, %v2472
        %v2519 = vpack.c.b16 %v2477, %v2475
        %v2520 = vpack.c.b16 %v2478, %v2476
        %v2521 = vpack.c.b16 %v2481, %v2479
        %v2522 = vpack.c.b16 %v2482, %v2480
        %v2523 = vpack.c.b16 %v2485, %v2483
        %v2524 = vpack.c.b16 %v2486, %v2484
        %v2525 = vpack.c.b16 %v2489, %v2487
        %v2526 = vpack.c.b16 %v2490, %v2488
        %v2527 = vpack.c.b16 %v2493, %v2491
        %v2528 = vpack.c.b16 %v2494, %v2492
        %v2529 = vpack.c.b16 %v2497, %v2495
        %v2530 = vpack.c.b16 %v2498, %v2496
        %2563 = vmatprep.subr.bf16.mxu0 %v2500
        %2564 = vmatpush1.bf16.msra.mxu0 %v2499
        %2565 = vmatprep.subr.bf16.mxu0 %v2502
        %2566 = vmatpush1.bf16.msra.mxu0 %v2501
        %2567 = vmatprep.subr.bf16.mxu0 %v2504
        %2568 = vmatpush1.bf16.msra.mxu0 %v2503
        %2569 = vmatprep.subr.bf16.mxu0 %v2506
        %2570 = vmatpush1.bf16.msra.mxu0 %v2505
        %2571 = vmatprep.subr.bf16.mxu0 %v2508
        %2572 = vmatpush1.bf16.msra.mxu0 %v2507
        %2573 = vmatprep.subr.bf16.mxu0 %v2510
        %2574 = vmatpush1.bf16.msra.mxu0 %v2509
        %2575 = vmatprep.subr.bf16.mxu0 %v2512
        %2576 = vmatpush1.bf16.msra.mxu0 %v2511
        %2577 = vmatprep.subr.bf16.mxu0 %v2514
        %2578 = vmatpush1.bf16.msra.mxu0 %v2513
        %2579 = vmatprep.subr.bf16.mxu0 %v2516
        %2580 = vmatpush1.bf16.msra.mxu0 %v2515
        %2581 = vmatprep.subr.bf16.mxu0 %v2518
        %2582 = vmatpush1.bf16.msra.mxu0 %v2517
        %2583 = vmatprep.subr.bf16.mxu0 %v2520
        %2584 = vmatpush1.bf16.msra.mxu0 %v2519
        %2585 = vmatprep.subr.bf16.mxu0 %v2522
        %2586 = vmatpush1.bf16.msra.mxu0 %v2521
        %2587 = vmatprep.subr.bf16.mxu0 %v2524
        %2588 = vmatpush1.bf16.msra.mxu0 %v2523
        %2589 = vmatprep.subr.bf16.mxu0 %v2526
        %2590 = vmatpush1.bf16.msra.mxu0 %v2525
        %2591 = vmatprep.subr.bf16.mxu0 %v2528
        %2592 = vmatpush1.bf16.msra.mxu0 %v2527
        %2593 = vmatprep.subr.bf16.mxu0 %v2530
        %2594 = vmatpush1.bf16.msra.mxu0 %v2529
        %2595 = vmatprep.mubr.bf16.mxu0 %v2354
        %2596 = vmatmul.mubr.bf16.gmra.mrb[0].mxu0 %v2353
        %v2597 = vpop.f32.mrb[0].mxu0
        %v2598 = vadd.f32 %v2396, %v2597
        %v2599 = vpop.f32.mrb[0].mxu0
        %v2600 = vadd.f32 %v2400, %v2599
        %v2601 = vpop.f32.mrb[0].mxu0
        %v2602 = vadd.f32 %v2396, %v2601
        %v2603 = vpop.f32.mrb[0].mxu0
        %v2604 = vadd.f32 %v2400, %v2603
        %2605 = vmatprep.mubr.bf16.mxu0 %v2356
        %2606 = vmatmul.mubr.bf16.gmra.mrb[0].mxu0 %v2355
        %v2607 = vpop.f32.mrb[0].mxu0
        %v2608 = vadd.f32 %v2396, %v2607
        %v2609 = vpop.f32.mrb[0].mxu0
        %v2610 = vadd.f32 %v2400, %v2609
        %v2611 = vpop.f32.mrb[0].mxu0
        %v2612 = vadd.f32 %v2396, %v2611
        %v2613 = vpop.f32.mrb[0].mxu0
        %v2614 = vadd.f32 %v2400, %v2613
        %2615 = vdwg.mxu0
        %v2616 = vxor.u32 %v2598, 2147483648
        %v2617 = vxor.u32 %v2600, 2147483648
        %v2618 = vxor.u32 %v2602, 2147483648
        %v2619 = vxor.u32 %v2604, 2147483648
        %v2620 = vxor.u32 %v2608, 2147483648
        %v2621 = vxor.u32 %v2610, 2147483648
        %v2622 = vxor.u32 %v2612, 2147483648
        %v2623 = vxor.u32 %v2614, 2147483648
        %v2624 = vmul.f32 %v2616, 1.442695
        %v2625 = vpow.pop %v2624
        %v2626 = vmul.f32 %v2617, 1.442695
        %v2627 = vpow.pop %v2626
        %v2628 = vmul.f32 %v2618, 1.442695
        %v2629 = vpow.pop %v2628
        %v2630 = vmul.f32 %v2619, 1.442695
        %v2631 = vpow.pop %v2630
        %v2632 = vmul.f32 %v2620, 1.442695
        %v2633 = vpow.pop %v2632
        %v2634 = vmul.f32 %v2621, 1.442695
        %v2635 = vpow.pop %v2634
        %v2636 = vmul.f32 %v2622, 1.442695
        %v2637 = vpow.pop %v2636
        %v2638 = vmul.f32 %v2623, 1.442695
        %v2639 = vpow.pop %v2638
        %v2640 = vadd.f32 %v2625, 1.0
        %v2641 = vadd.f32 %v2627, 1.0
        %v2642 = vadd.f32 %v2629, 1.0
        %v2643 = vadd.f32 %v2631, 1.0
        %v2644 = vadd.f32 %v2633, 1.0
        %v2645 = vadd.f32 %v2635, 1.0
        %v2646 = vadd.f32 %v2637, 1.0
        %v2647 = vadd.f32 %v2639, 1.0
        %v2648 = vrcp.pop %v2640
        %v2649 = vmul.f32 1.0, %v2648
        %v2650 = vrcp.pop %v2641
        %v2651 = vmul.f32 1.0, %v2650
        %v2652 = vrcp.pop %v2642
        %v2653 = vmul.f32 1.0, %v2652
        %v2654 = vrcp.pop %v2643
        %v2655 = vmul.f32 1.0, %v2654
        %v2656 = vrcp.pop %v2644
        %v2657 = vmul.f32 1.0, %v2656
        %v2658 = vrcp.pop %v2645
        %v2659 = vmul.f32 1.0, %v2658
        %v2660 = vrcp.pop %v2646
        %v2661 = vmul.f32 1.0, %v2660
        %v2662 = vrcp.pop %v2647
        %v2663 = vmul.f32 1.0, %v2662
        %v2664 = vmul.f32 %v2598, %v2649
        %v2665 = vmul.f32 %v2600, %v2651
        %v2666 = vmul.f32 %v2602, %v2653
        %v2667 = vmul.f32 %v2604, %v2655
        %v2668 = vmul.f32 %v2608, %v2657
        %v2669 = vmul.f32 %v2610, %v2659
        %v2670 = vmul.f32 %v2612, %v2661
        %v2671 = vmul.f32 %v2614, %v2663
        %v2672 = vpack.c.bf16 %v2666, %v2664
        %v2673 = vpack.c.bf16 %v2667, %v2665
        %v2674 = vpack.c.bf16 %v2670, %v2668
        %v2675 = vpack.c.bf16 %v2671, %v2669
        %s2676 = scalar_lea.vmem %s662, 256 [#allocation5]
        %v2677 = vld [vmem:[%s2676] sm:$0xff]
        %v2678 = vld [vmem:[%s2676 + $0x8] sm:$0xff]
        %v2679 = vld [vmem:[%s2676 + $0x10] sm:$0xff]
        %v2680 = vld [vmem:[%s2676 + $0x18] sm:$0xff]
        %v2681 = vld [vmem:[%s2676 + $0x20] sm:$0xff]
        %v2682 = vld [vmem:[%s2676 + $0x28] sm:$0xff]
        %v2683 = vld [vmem:[%s2676 + $0x30] sm:$0xff]
        %v2684 = vld [vmem:[%s2676 + $0x38] sm:$0xff]
        %v2685 = vld [vmem:[%s2676 + $0x40] sm:$0xff]
        %v2686 = vld [vmem:[%s2676 + $0x48] sm:$0xff]
        %v2687 = vld [vmem:[%s2676 + $0x50] sm:$0xff]
        %v2688 = vld [vmem:[%s2676 + $0x58] sm:$0xff]
        %v2689 = vld [vmem:[%s2676 + $0x60] sm:$0xff]
        %v2690 = vld [vmem:[%s2676 + $0x68] sm:$0xff]
        %v2691 = vld [vmem:[%s2676 + $0x70] sm:$0xff]
        %v2692 = vld [vmem:[%s2676 + $0x78] sm:$0xff]
        %v2693 = vld [vmem:[%s2676 + $0x80] sm:$0xff]
        %v2694 = vld [vmem:[%s2676 + $0x88] sm:$0xff]
        %v2695 = vld [vmem:[%s2676 + $0x90] sm:$0xff]
        %v2696 = vld [vmem:[%s2676 + $0x98] sm:$0xff]
        %v2697 = vld [vmem:[%s2676 + $0xa0] sm:$0xff]
        %v2698 = vld [vmem:[%s2676 + $0xa8] sm:$0xff]
        %v2699 = vld [vmem:[%s2676 + $0xb0] sm:$0xff]
        %v2700 = vld [vmem:[%s2676 + $0xb8] sm:$0xff]
        %v2701 = vld [vmem:[%s2676 + $0xc0] sm:$0xff]
        %v2702 = vld [vmem:[%s2676 + $0xc8] sm:$0xff]
        %v2703 = vld [vmem:[%s2676 + $0xd0] sm:$0xff]
        %v2704 = vld [vmem:[%s2676 + $0xd8] sm:$0xff]
        %v2705 = vld [vmem:[%s2676 + $0xe0] sm:$0xff]
        %v2706 = vld [vmem:[%s2676 + $0xe8] sm:$0xff]
        %v2707 = vld [vmem:[%s2676 + $0xf0] sm:$0xff]
        %v2708 = vld [vmem:[%s2676 + $0xf8] sm:$0xff]
        %s2709 = scalar_lea.vmem %s816, 2
        %v2710 = vld [vmem:[%s2709] sm:$0x3]
        %v2712 = vlaneseq
        %v2713 = vshrl.u32 %v2712, 7
        %v2714 = vsub.s32 0, %v2713
        %v2715 = vrot.slane %v2710, %v2714
        %v2716 = vlaneseq
        %v2717 = vshrl.u32 %v2716, 7
        %v2718 = vsub.s32 1, %v2717
        %v2719 = vrot.slane %v2710, %v2718
        %v2754 = vunpack.c.l.b16 %v2677
        %v2755 = vunpack.c.h.b16 %v2677
        %v2756 = vunpack.c.l.b16 %v2678
        %v2757 = vunpack.c.h.b16 %v2678
        %v2758 = vunpack.c.l.b16 %v2679
        %v2759 = vunpack.c.h.b16 %v2679
        %v2760 = vunpack.c.l.b16 %v2680
        %v2761 = vunpack.c.h.b16 %v2680
        %v2762 = vunpack.c.l.b16 %v2681
        %v2763 = vunpack.c.h.b16 %v2681
        %v2764 = vunpack.c.l.b16 %v2682
        %v2765 = vunpack.c.h.b16 %v2682
        %v2766 = vunpack.c.l.b16 %v2683
        %v2767 = vunpack.c.h.b16 %v2683
        %v2768 = vunpack.c.l.b16 %v2684
        %v2769 = vunpack.c.h.b16 %v2684
        %v2770 = vunpack.c.l.b16 %v2685
        %v2771 = vunpack.c.h.b16 %v2685
        %v2772 = vunpack.c.l.b16 %v2686
        %v2773 = vunpack.c.h.b16 %v2686
        %v2774 = vunpack.c.l.b16 %v2687
        %v2775 = vunpack.c.h.b16 %v2687
        %v2776 = vunpack.c.l.b16 %v2688
        %v2777 = vunpack.c.h.b16 %v2688
        %v2778 = vunpack.c.l.b16 %v2689
        %v2779 = vunpack.c.h.b16 %v2689
        %v2780 = vunpack.c.l.b16 %v2690
        %v2781 = vunpack.c.h.b16 %v2690
        %v2782 = vunpack.c.l.b16 %v2691
        %v2783 = vunpack.c.h.b16 %v2691
        %v2784 = vunpack.c.l.b16 %v2692
        %v2785 = vunpack.c.h.b16 %v2692
        %v2786 = vunpack.c.l.b16 %v2693
        %v2787 = vunpack.c.h.b16 %v2693
        %v2788 = vunpack.c.l.b16 %v2694
        %v2789 = vunpack.c.h.b16 %v2694
        %v2790 = vunpack.c.l.b16 %v2695
        %v2791 = vunpack.c.h.b16 %v2695
        %v2792 = vunpack.c.l.b16 %v2696
        %v2793 = vunpack.c.h.b16 %v2696
        %v2794 = vunpack.c.l.b16 %v2697
        %v2795 = vunpack.c.h.b16 %v2697
        %v2796 = vunpack.c.l.b16 %v2698
        %v2797 = vunpack.c.h.b16 %v2698
        %v2798 = vunpack.c.l.b16 %v2699
        %v2799 = vunpack.c.h.b16 %v2699
        %v2800 = vunpack.c.l.b16 %v2700
        %v2801 = vunpack.c.h.b16 %v2700
        %v2802 = vunpack.c.l.b16 %v2701
        %v2803 = vunpack.c.h.b16 %v2701
        %v2804 = vunpack.c.l.b16 %v2702
        %v2805 = vunpack.c.h.b16 %v2702
        %v2806 = vunpack.c.l.b16 %v2703
        %v2807 = vunpack.c.h.b16 %v2703
        %v2808 = vunpack.c.l.b16 %v2704
        %v2809 = vunpack.c.h.b16 %v2704
        %v2810 = vunpack.c.l.b16 %v2705
        %v2811 = vunpack.c.h.b16 %v2705
        %v2812 = vunpack.c.l.b16 %v2706
        %v2813 = vunpack.c.h.b16 %v2706
        %v2814 = vunpack.c.l.b16 %v2707
        %v2815 = vunpack.c.h.b16 %v2707
        %v2816 = vunpack.c.l.b16 %v2708
        %v2817 = vunpack.c.h.b16 %v2708
        %v2818 = vpack.c.b16 %v2756, %v2754
        %v2819 = vpack.c.b16 %v2757, %v2755
        %v2820 = vpack.c.b16 %v2760, %v2758
        %v2821 = vpack.c.b16 %v2761, %v2759
        %v2822 = vpack.c.b16 %v2764, %v2762
        %v2823 = vpack.c.b16 %v2765, %v2763
        %v2824 = vpack.c.b16 %v2768, %v2766
        %v2825 = vpack.c.b16 %v2769, %v2767
        %v2826 = vpack.c.b16 %v2772, %v2770
        %v2827 = vpack.c.b16 %v2773, %v2771
        %v2828 = vpack.c.b16 %v2776, %v2774
        %v2829 = vpack.c.b16 %v2777, %v2775
        %v2830 = vpack.c.b16 %v2780, %v2778
        %v2831 = vpack.c.b16 %v2781, %v2779
        %v2832 = vpack.c.b16 %v2784, %v2782
        %v2833 = vpack.c.b16 %v2785, %v2783
        %v2834 = vpack.c.b16 %v2788, %v2786
        %v2835 = vpack.c.b16 %v2789, %v2787
        %v2836 = vpack.c.b16 %v2792, %v2790
        %v2837 = vpack.c.b16 %v2793, %v2791
        %v2838 = vpack.c.b16 %v2796, %v2794
        %v2839 = vpack.c.b16 %v2797, %v2795
        %v2840 = vpack.c.b16 %v2800, %v2798
        %v2841 = vpack.c.b16 %v2801, %v2799
        %v2842 = vpack.c.b16 %v2804, %v2802
        %v2843 = vpack.c.b16 %v2805, %v2803
        %v2844 = vpack.c.b16 %v2808, %v2806
        %v2845 = vpack.c.b16 %v2809, %v2807
        %v2846 = vpack.c.b16 %v2812, %v2810
        %v2847 = vpack.c.b16 %v2813, %v2811
        %v2848 = vpack.c.b16 %v2816, %v2814
        %v2849 = vpack.c.b16 %v2817, %v2815
        %2882 = vmatprep.subr.bf16.mxu0 %v2819
        %2883 = vmatpush1.bf16.msra.mxu0 %v2818
        %2884 = vmatprep.subr.bf16.mxu0 %v2821
        %2885 = vmatpush1.bf16.msra.mxu0 %v2820
        %2886 = vmatprep.subr.bf16.mxu0 %v2823
        %2887 = vmatpush1.bf16.msra.mxu0 %v2822
        %2888 = vmatprep.subr.bf16.mxu0 %v2825
        %2889 = vmatpush1.bf16.msra.mxu0 %v2824
        %2890 = vmatprep.subr.bf16.mxu0 %v2827
        %2891 = vmatpush1.bf16.msra.mxu0 %v2826
        %2892 = vmatprep.subr.bf16.mxu0 %v2829
        %2893 = vmatpush1.bf16.msra.mxu0 %v2828
        %2894 = vmatprep.subr.bf16.mxu0 %v2831
        %2895 = vmatpush1.bf16.msra.mxu0 %v2830
        %2896 = vmatprep.subr.bf16.mxu0 %v2833
        %2897 = vmatpush1.bf16.msra.mxu0 %v2832
        %2898 = vmatprep.subr.bf16.mxu0 %v2835
        %2899 = vmatpush1.bf16.msra.mxu0 %v2834
        %2900 = vmatprep.subr.bf16.mxu0 %v2837
        %2901 = vmatpush1.bf16.msra.mxu0 %v2836
        %2902 = vmatprep.subr.bf16.mxu0 %v2839
        %2903 = vmatpush1.bf16.msra.mxu0 %v2838
        %2904 = vmatprep.subr.bf16.mxu0 %v2841
        %2905 = vmatpush1.bf16.msra.mxu0 %v2840
        %2906 = vmatprep.subr.bf16.mxu0 %v2843
        %2907 = vmatpush1.bf16.msra.mxu0 %v2842
        %2908 = vmatprep.subr.bf16.mxu0 %v2845
        %2909 = vmatpush1.bf16.msra.mxu0 %v2844
        %2910 = vmatprep.subr.bf16.mxu0 %v2847
        %2911 = vmatpush1.bf16.msra.mxu0 %v2846
        %2912 = vmatprep.subr.bf16.mxu0 %v2849
        %2913 = vmatpush1.bf16.msra.mxu0 %v2848
        %2914 = vmatprep.mubr.bf16.mxu0 %v2673
        %2915 = vmatmul.mubr.bf16.gmra.mrb[0].mxu0 %v2672
        %v2916 = vpop.f32.mrb[0].mxu0
        %v2917 = vadd.f32 %v2715, %v2916
        %v2918 = vpop.f32.mrb[0].mxu0
        %v2919 = vadd.f32 %v2719, %v2918
        %v2920 = vpop.f32.mrb[0].mxu0
        %v2921 = vadd.f32 %v2715, %v2920
        %v2922 = vpop.f32.mrb[0].mxu0
        %v2923 = vadd.f32 %v2719, %v2922
        %2924 = vmatprep.mubr.bf16.mxu0 %v2675
        %2925 = vmatmul.mubr.bf16.gmra.mrb[0].mxu0 %v2674
        %v2926 = vpop.f32.mrb[0].mxu0
        %v2927 = vadd.f32 %v2715, %v2926
        %v2928 = vpop.f32.mrb[0].mxu0
        %v2929 = vadd.f32 %v2719, %v2928
        %v2930 = vpop.f32.mrb[0].mxu0
        %v2931 = vadd.f32 %v2715, %v2930
        %v2932 = vpop.f32.mrb[0].mxu0
        %v2933 = vadd.f32 %v2719, %v2932
        %2934 = vdwg.mxu0
        %v2935 = vxor.u32 %v2917, 2147483648
        %v2936 = vxor.u32 %v2919, 2147483648
        %v2937 = vxor.u32 %v2921, 2147483648
        %v2938 = vxor.u32 %v2923, 2147483648
        %v2939 = vxor.u32 %v2927, 2147483648
        %v2940 = vxor.u32 %v2929, 2147483648
        %v2941 = vxor.u32 %v2931, 2147483648
        %v2942 = vxor.u32 %v2933, 2147483648
        %v2943 = vmul.f32 %v2935, 1.442695
        %v2944 = vpow.pop %v2943
        %v2945 = vmul.f32 %v2936, 1.442695
        %v2946 = vpow.pop %v2945
        %v2947 = vmul.f32 %v2937, 1.442695
        %v2948 = vpow.pop %v2947
        %v2949 = vmul.f32 %v2938, 1.442695
        %v2950 = vpow.pop %v2949
        %v2951 = vmul.f32 %v2939, 1.442695
        %v2952 = vpow.pop %v2951
        %v2953 = vmul.f32 %v2940, 1.442695
        %v2954 = vpow.pop %v2953
        %v2955 = vmul.f32 %v2941, 1.442695
        %v2956 = vpow.pop %v2955
        %v2957 = vmul.f32 %v2942, 1.442695
        %v2958 = vpow.pop %v2957
        %v2959 = vadd.f32 %v2944, 1.0
        %v2960 = vadd.f32 %v2946, 1.0
        %v2961 = vadd.f32 %v2948, 1.0
        %v2962 = vadd.f32 %v2950, 1.0
        %v2963 = vadd.f32 %v2952, 1.0
        %v2964 = vadd.f32 %v2954, 1.0
        %v2965 = vadd.f32 %v2956, 1.0
        %v2966 = vadd.f32 %v2958, 1.0
        %v2967 = vrcp.pop %v2959
        %v2968 = vmul.f32 1.0, %v2967
        %v2969 = vrcp.pop %v2960
        %v2970 = vmul.f32 1.0, %v2969
        %v2971 = vrcp.pop %v2961
        %v2972 = vmul.f32 1.0, %v2971
        %v2973 = vrcp.pop %v2962
        %v2974 = vmul.f32 1.0, %v2973
        %v2975 = vrcp.pop %v2963
        %v2976 = vmul.f32 1.0, %v2975
        %v2977 = vrcp.pop %v2964
        %v2978 = vmul.f32 1.0, %v2977
        %v2979 = vrcp.pop %v2965
        %v2980 = vmul.f32 1.0, %v2979
        %v2981 = vrcp.pop %v2966
        %v2982 = vmul.f32 1.0, %v2981
        %v2983 = vmul.f32 %v2917, %v2968
        %v2984 = vmul.f32 %v2919, %v2970
        %v2985 = vmul.f32 %v2921, %v2972
        %v2986 = vmul.f32 %v2923, %v2974
        %v2987 = vmul.f32 %v2927, %v2976
        %v2988 = vmul.f32 %v2929, %v2978
        %v2989 = vmul.f32 %v2931, %v2980
        %v2990 = vmul.f32 %v2933, %v2982
        %v2991 = vpack.c.bf16 %v2985, %v2983
        %v2992 = vpack.c.bf16 %v2986, %v2984
        %v2993 = vpack.c.bf16 %v2989, %v2987
        %v2994 = vpack.c.bf16 %v2990, %v2988
        %s2995 = scalar_lea.vmem %s671, 128 [#allocation7]
        %v2996 = vld [vmem:[%s2995] sm:$0xf]
        %v2997 = vld [vmem:[%s2995 + $0x4] sm:$0xf]
        %v2998 = vld [vmem:[%s2995 + $0x8] sm:$0xf]
        %v2999 = vld [vmem:[%s2995 + $0xc] sm:$0xf]
        %v3000 = vld [vmem:[%s2995 + $0x10] sm:$0xf]
        %v3001 = vld [vmem:[%s2995 + $0x14] sm:$0xf]
        %v3002 = vld [vmem:[%s2995 + $0x18] sm:$0xf]
        %v3003 = vld [vmem:[%s2995 + $0x1c] sm:$0xf]
        %v3004 = vld [vmem:[%s2995 + $0x20] sm:$0xf]
        %v3005 = vld [vmem:[%s2995 + $0x24] sm:$0xf]
        %v3006 = vld [vmem:[%s2995 + $0x28] sm:$0xf]
        %v3007 = vld [vmem:[%s2995 + $0x2c] sm:$0xf]
        %v3008 = vld [vmem:[%s2995 + $0x30] sm:$0xf]
        %v3009 = vld [vmem:[%s2995 + $0x34] sm:$0xf]
        %v3010 = vld [vmem:[%s2995 + $0x38] sm:$0xf]
        %v3011 = vld [vmem:[%s2995 + $0x3c] sm:$0xf]
        %v3012 = vld [vmem:[%s2995 + $0x40] sm:$0xf]
        %v3013 = vld [vmem:[%s2995 + $0x44] sm:$0xf]
        %v3014 = vld [vmem:[%s2995 + $0x48] sm:$0xf]
        %v3015 = vld [vmem:[%s2995 + $0x4c] sm:$0xf]
        %v3016 = vld [vmem:[%s2995 + $0x50] sm:$0xf]
        %v3017 = vld [vmem:[%s2995 + $0x54] sm:$0xf]
        %v3018 = vld [vmem:[%s2995 + $0x58] sm:$0xf]
        %v3019 = vld [vmem:[%s2995 + $0x5c] sm:$0xf]
        %v3020 = vld [vmem:[%s2995 + $0x60] sm:$0xf]
        %v3021 = vld [vmem:[%s2995 + $0x64] sm:$0xf]
        %v3022 = vld [vmem:[%s2995 + $0x68] sm:$0xf]
        %v3023 = vld [vmem:[%s2995 + $0x6c] sm:$0xf]
        %v3024 = vld [vmem:[%s2995 + $0x70] sm:$0xf]
        %v3025 = vld [vmem:[%s2995 + $0x74] sm:$0xf]
        %v3026 = vld [vmem:[%s2995 + $0x78] sm:$0xf]
        %v3027 = vld [vmem:[%s2995 + $0x7c] sm:$0xf]
        %s3028 = scalar_lea.vmem %s822, 1
        %v3029 = vld [vmem:[%s3028] sm:$0x1]
        %v3031 = vlaneseq
        %v3032 = vshrl.u32 %v3031, 7
        %v3033 = vsub.s32 0, %v3032
        %v3034 = vrot.slane %v3029, %v3033
        %v3068 = vunpack.c.l.b16 %v2996
        %v3069 = vunpack.c.l.b16 %v2997
        %v3070 = vunpack.c.l.b16 %v2998
        %v3071 = vunpack.c.l.b16 %v2999
        %v3072 = vunpack.c.l.b16 %v3000
        %v3073 = vunpack.c.l.b16 %v3001
        %v3074 = vunpack.c.l.b16 %v3002
        %v3075 = vunpack.c.l.b16 %v3003
        %v3076 = vunpack.c.l.b16 %v3004
        %v3077 = vunpack.c.l.b16 %v3005
        %v3078 = vunpack.c.l.b16 %v3006
        %v3079 = vunpack.c.l.b16 %v3007
        %v3080 = vunpack.c.l.b16 %v3008
        %v3081 = vunpack.c.l.b16 %v3009
        %v3082 = vunpack.c.l.b16 %v3010
        %v3083 = vunpack.c.l.b16 %v3011
        %v3084 = vunpack.c.l.b16 %v3012
        %v3085 = vunpack.c.l.b16 %v3013
        %v3086 = vunpack.c.l.b16 %v3014
        %v3087 = vunpack.c.l.b16 %v3015
        %v3088 = vunpack.c.l.b16 %v3016
        %v3089 = vunpack.c.l.b16 %v3017
        %v3090 = vunpack.c.l.b16 %v3018
        %v3091 = vunpack.c.l.b16 %v3019
        %v3092 = vunpack.c.l.b16 %v3020
        %v3093 = vunpack.c.l.b16 %v3021
        %v3094 = vunpack.c.l.b16 %v3022
        %v3095 = vunpack.c.l.b16 %v3023
        %v3096 = vunpack.c.l.b16 %v3024
        %v3097 = vunpack.c.l.b16 %v3025
        %v3098 = vunpack.c.l.b16 %v3026
        %v3099 = vunpack.c.l.b16 %v3027
        %v3100 = vpack.c.b16 %v3069, %v3068
        %v3101 = vpack.c.b16 %v3071, %v3070
        %v3102 = vpack.c.b16 %v3073, %v3072
        %v3103 = vpack.c.b16 %v3075, %v3074
        %v3104 = vpack.c.b16 %v3077, %v3076
        %v3105 = vpack.c.b16 %v3079, %v3078
        %v3106 = vpack.c.b16 %v3081, %v3080
        %v3107 = vpack.c.b16 %v3083, %v3082
        %v3108 = vpack.c.b16 %v3085, %v3084
        %v3109 = vpack.c.b16 %v3087, %v3086
        %v3110 = vpack.c.b16 %v3089, %v3088
        %v3111 = vpack.c.b16 %v3091, %v3090
        %v3112 = vpack.c.b16 %v3093, %v3092
        %v3113 = vpack.c.b16 %v3095, %v3094
        %v3114 = vpack.c.b16 %v3097, %v3096
        %v3115 = vpack.c.b16 %v3099, %v3098
        %3132 = vmatprep.subr.bf16.mxu0 0
        %3133 = vmatpush1.bf16.msra.mxu0 %v3100
        %3134 = vmatprep.subr.bf16.mxu0 0
        %3135 = vmatpush1.bf16.msra.mxu0 %v3101
        %3136 = vmatprep.subr.bf16.mxu0 0
        %3137 = vmatpush1.bf16.msra.mxu0 %v3102
        %3138 = vmatprep.subr.bf16.mxu0 0
        %3139 = vmatpush1.bf16.msra.mxu0 %v3103
        %3140 = vmatprep.subr.bf16.mxu0 0
        %3141 = vmatpush1.bf16.msra.mxu0 %v3104
        %3142 = vmatprep.subr.bf16.mxu0 0
        %3143 = vmatpush1.bf16.msra.mxu0 %v3105
        %3144 = vmatprep.subr.bf16.mxu0 0
        %3145 = vmatpush1.bf16.msra.mxu0 %v3106
        %3146 = vmatprep.subr.bf16.mxu0 0
        %3147 = vmatpush1.bf16.msra.mxu0 %v3107
        %3148 = vmatprep.subr.bf16.mxu0 0
        %3149 = vmatpush1.bf16.msra.mxu0 %v3108
        %3150 = vmatprep.subr.bf16.mxu0 0
        %3151 = vmatpush1.bf16.msra.mxu0 %v3109
        %3152 = vmatprep.subr.bf16.mxu0 0
        %3153 = vmatpush1.bf16.msra.mxu0 %v3110
        %3154 = vmatprep.subr.bf16.mxu0 0
        %3155 = vmatpush1.bf16.msra.mxu0 %v3111
        %3156 = vmatprep.subr.bf16.mxu0 0
        %3157 = vmatpush1.bf16.msra.mxu0 %v3112
        %3158 = vmatprep.subr.bf16.mxu0 0
        %3159 = vmatpush1.bf16.msra.mxu0 %v3113
        %3160 = vmatprep.subr.bf16.mxu0 0
        %3161 = vmatpush1.bf16.msra.mxu0 %v3114
        %3162 = vmatprep.subr.bf16.mxu0 0
        %3163 = vmatpush1.bf16.msra.mxu0 %v3115
        %3164 = vmatprep.mubr.bf16.mxu0 %v2992
        %3165 = vmatmul.mubr.bf16.gmra.mrb[0].mxu0 %v2991
        %v3166 = vpop.f32.mrb[0].mxu0
        %v3167 = vadd.f32 %v3034, %v3166
        %v3168 = vpop.f32.mrb[0].mxu0
        %v3169 = vpop.f32.mrb[0].mxu0
        %v3170 = vadd.f32 %v3034, %v3169
        %v3171 = vpop.f32.mrb[0].mxu0
        %3172 = vmatprep.mubr.bf16.mxu0 %v2994
        %3173 = vmatmul.mubr.bf16.gmra.mrb[0].mxu0 %v2993
        %v3174 = vpop.f32.mrb[0].mxu0
        %v3175 = vadd.f32 %v3034, %v3174
        %v3176 = vpop.f32.mrb[0].mxu0
        %v3177 = vpop.f32.mrb[0].mxu0
        %v3178 = vadd.f32 %v3034, %v3177
        %v3179 = vpop.f32.mrb[0].mxu0
        %3180 = vdwg.mxu0
        %s3181 = scalar_lea.vmem %s680, 128 [#allocation8]
        %v3182 = vld [vmem:[%s3181] sm:$0xf]
        %v3183 = vld [vmem:[%s3181 + $0x4] sm:$0xf]
        %v3184 = vld [vmem:[%s3181 + $0x8] sm:$0xf]
        %v3185 = vld [vmem:[%s3181 + $0xc] sm:$0xf]
        %v3186 = vld [vmem:[%s3181 + $0x10] sm:$0xf]
        %v3187 = vld [vmem:[%s3181 + $0x14] sm:$0xf]
        %v3188 = vld [vmem:[%s3181 + $0x18] sm:$0xf]
        %v3189 = vld [vmem:[%s3181 + $0x1c] sm:$0xf]
        %v3190 = vld [vmem:[%s3181 + $0x20] sm:$0xf]
        %v3191 = vld [vmem:[%s3181 + $0x24] sm:$0xf]
        %v3192 = vld [vmem:[%s3181 + $0x28] sm:$0xf]
        %v3193 = vld [vmem:[%s3181 + $0x2c] sm:$0xf]
        %v3194 = vld [vmem:[%s3181 + $0x30] sm:$0xf]
        %v3195 = vld [vmem:[%s3181 + $0x34] sm:$0xf]
        %v3196 = vld [vmem:[%s3181 + $0x38] sm:$0xf]
        %v3197 = vld [vmem:[%s3181 + $0x3c] sm:$0xf]
        %v3198 = vld [vmem:[%s3181 + $0x40] sm:$0xf]
        %v3199 = vld [vmem:[%s3181 + $0x44] sm:$0xf]
        %v3200 = vld [vmem:[%s3181 + $0x48] sm:$0xf]
        %v3201 = vld [vmem:[%s3181 + $0x4c] sm:$0xf]
        %v3202 = vld [vmem:[%s3181 + $0x50] sm:$0xf]
        %v3203 = vld [vmem:[%s3181 + $0x54] sm:$0xf]
        %v3204 = vld [vmem:[%s3181 + $0x58] sm:$0xf]
        %v3205 = vld [vmem:[%s3181 + $0x5c] sm:$0xf]
        %v3206 = vld [vmem:[%s3181 + $0x60] sm:$0xf]
        %v3207 = vld [vmem:[%s3181 + $0x64] sm:$0xf]
        %v3208 = vld [vmem:[%s3181 + $0x68] sm:$0xf]
        %v3209 = vld [vmem:[%s3181 + $0x6c] sm:$0xf]
        %v3210 = vld [vmem:[%s3181 + $0x70] sm:$0xf]
        %v3211 = vld [vmem:[%s3181 + $0x74] sm:$0xf]
        %v3212 = vld [vmem:[%s3181 + $0x78] sm:$0xf]
        %v3213 = vld [vmem:[%s3181 + $0x7c] sm:$0xf]
        %s3214 = scalar_lea.vmem %s828, 1
        %v3215 = vld [vmem:[%s3214] sm:$0x1]
        %v3217 = vlaneseq
        %v3218 = vshrl.u32 %v3217, 7
        %v3219 = vsub.s32 0, %v3218
        %v3220 = vrot.slane %v3215, %v3219
        %v3254 = vunpack.c.l.b16 %v3182
        %v3255 = vunpack.c.l.b16 %v3183
        %v3256 = vunpack.c.l.b16 %v3184
        %v3257 = vunpack.c.l.b16 %v3185
        %v3258 = vunpack.c.l.b16 %v3186
        %v3259 = vunpack.c.l.b16 %v3187
        %v3260 = vunpack.c.l.b16 %v3188
        %v3261 = vunpack.c.l.b16 %v3189
        %v3262 = vunpack.c.l.b16 %v3190
        %v3263 = vunpack.c.l.b16 %v3191
        %v3264 = vunpack.c.l.b16 %v3192
        %v3265 = vunpack.c.l.b16 %v3193
        %v3266 = vunpack.c.l.b16 %v3194
        %v3267 = vunpack.c.l.b16 %v3195
        %v3268 = vunpack.c.l.b16 %v3196
        %v3269 = vunpack.c.l.b16 %v3197
        %v3270 = vunpack.c.l.b16 %v3198
        %v3271 = vunpack.c.l.b16 %v3199
        %v3272 = vunpack.c.l.b16 %v3200
        %v3273 = vunpack.c.l.b16 %v3201
        %v3274 = vunpack.c.l.b16 %v3202
        %v3275 = vunpack.c.l.b16 %v3203
        %v3276 = vunpack.c.l.b16 %v3204
        %v3277 = vunpack.c.l.b16 %v3205
        %v3278 = vunpack.c.l.b16 %v3206
        %v3279 = vunpack.c.l.b16 %v3207
        %v3280 = vunpack.c.l.b16 %v3208
        %v3281 = vunpack.c.l.b16 %v3209
        %v3282 = vunpack.c.l.b16 %v3210
        %v3283 = vunpack.c.l.b16 %v3211
        %v3284 = vunpack.c.l.b16 %v3212
        %v3285 = vunpack.c.l.b16 %v3213
        %v3286 = vpack.c.b16 %v3255, %v3254
        %v3287 = vpack.c.b16 %v3257, %v3256
        %v3288 = vpack.c.b16 %v3259, %v3258
        %v3289 = vpack.c.b16 %v3261, %v3260
        %v3290 = vpack.c.b16 %v3263, %v3262
        %v3291 = vpack.c.b16 %v3265, %v3264
        %v3292 = vpack.c.b16 %v3267, %v3266
        %v3293 = vpack.c.b16 %v3269, %v3268
        %v3294 = vpack.c.b16 %v3271, %v3270
        %v3295 = vpack.c.b16 %v3273, %v3272
        %v3296 = vpack.c.b16 %v3275, %v3274
        %v3297 = vpack.c.b16 %v3277, %v3276
        %v3298 = vpack.c.b16 %v3279, %v3278
        %v3299 = vpack.c.b16 %v3281, %v3280
        %v3300 = vpack.c.b16 %v3283, %v3282
        %v3301 = vpack.c.b16 %v3285, %v3284
        %3318 = vmatprep.subr.bf16.mxu0 0
        %3319 = vmatpush1.bf16.msra.mxu0 %v3286
        %3320 = vmatprep.subr.bf16.mxu0 0
        %3321 = vmatpush1.bf16.msra.mxu0 %v3287
        %3322 = vmatprep.subr.bf16.mxu0 0
        %3323 = vmatpush1.bf16.msra.mxu0 %v3288
        %3324 = vmatprep.subr.bf16.mxu0 0
        %3325 = vmatpush1.bf16.msra.mxu0 %v3289
        %3326 = vmatprep.subr.bf16.mxu0 0
        %3327 = vmatpush1.bf16.msra.mxu0 %v3290
        %3328 = vmatprep.subr.bf16.mxu0 0
        %3329 = vmatpush1.bf16.msra.mxu0 %v3291
        %3330 = vmatprep.subr.bf16.mxu0 0
        %3331 = vmatpush1.bf16.msra.mxu0 %v3292
        %3332 = vmatprep.subr.bf16.mxu0 0
        %3333 = vmatpush1.bf16.msra.mxu0 %v3293
        %3334 = vmatprep.subr.bf16.mxu0 0
        %3335 = vmatpush1.bf16.msra.mxu0 %v3294
        %3336 = vmatprep.subr.bf16.mxu0 0
        %3337 = vmatpush1.bf16.msra.mxu0 %v3295
        %3338 = vmatprep.subr.bf16.mxu0 0
        %3339 = vmatpush1.bf16.msra.mxu0 %v3296
        %3340 = vmatprep.subr.bf16.mxu0 0
        %3341 = vmatpush1.bf16.msra.mxu0 %v3297
        %3342 = vmatprep.subr.bf16.mxu0 0
        %3343 = vmatpush1.bf16.msra.mxu0 %v3298
        %3344 = vmatprep.subr.bf16.mxu0 0
        %3345 = vmatpush1.bf16.msra.mxu0 %v3299
        %3346 = vmatprep.subr.bf16.mxu0 0
        %3347 = vmatpush1.bf16.msra.mxu0 %v3300
        %3348 = vmatprep.subr.bf16.mxu0 0
        %3349 = vmatpush1.bf16.msra.mxu0 %v3301
        %3350 = vmatprep.mubr.bf16.mxu0 %v2992
        %3351 = vmatmul.mubr.bf16.gmra.mrb[0].mxu0 %v2991
        %v3352 = vpop.f32.mrb[0].mxu0
        %v3353 = vadd.f32 %v3220, %v3352
        %v3354 = vpop.f32.mrb[0].mxu0
        %v3355 = vpop.f32.mrb[0].mxu0
        %v3356 = vadd.f32 %v3220, %v3355
        %v3357 = vpop.f32.mrb[0].mxu0
        %3358 = vmatprep.mubr.bf16.mxu0 %v2994
        %3359 = vmatmul.mubr.bf16.gmra.mrb[0].mxu0 %v2993
        %v3360 = vpop.f32.mrb[0].mxu0
        %v3361 = vadd.f32 %v3220, %v3360
        %v3362 = vpop.f32.mrb[0].mxu0
        %v3363 = vpop.f32.mrb[0].mxu0
        %v3364 = vadd.f32 %v3220, %v3363
        %v3365 = vpop.f32.mrb[0].mxu0
        %3366 = vdwg.mxu0
        %v3367 = vsub.f32 %v2013, %v3353
        %v3368 = vsub.f32 %v2013, %v3356
        %v3369 = vsub.f32 %v2013, %v3361
        %v3370 = vsub.f32 %v2013, %v3364
        %v3371 = vmax.f32 %v3367, 0.0
        %v3372 = vmax.f32 %v3368, 0.0
        %v3373 = vmax.f32 %v3369, 0.0
        %v3374 = vmax.f32 %v3370, 0.0
        %vm3375 = vcmp.ne.f32.partialorder %v3367, %v3367
        %vm3376 = vcmp.ne.f32.partialorder %v3368, %v3368
        %vm3377 = vcmp.ne.f32.partialorder %v3369, %v3369
        %vm3378 = vcmp.ne.f32.partialorder %v3370, %v3370
        %v3379 = vadd.f32 %v3367, 0.0
        %v3380 = vadd.f32 %v3368, 0.0
        %v3381 = vadd.f32 %v3369, 0.0
        %v3382 = vadd.f32 %v3370, 0.0
        %v3383 = vand.u32 2147483647, %v3367
        %v3384 = vand.u32 2147483647, %v3368
        %v3385 = vand.u32 2147483647, %v3369
        %v3386 = vand.u32 2147483647, %v3370
        %v3387 = vsub.f32 0.0, %v3383
        %v3388 = vsub.f32 0.0, %v3384
        %v3389 = vsub.f32 0.0, %v3385
        %v3390 = vsub.f32 0.0, %v3386
        %v3391 = vmul.f32 %v3387, 1.442695
        %v3392 = vpow.pop %v3391
        %v3393 = vmul.f32 %v3388, 1.442695
        %v3394 = vpow.pop %v3393
        %v3395 = vmul.f32 %v3389, 1.442695
        %v3396 = vpow.pop %v3395
        %v3397 = vmul.f32 %v3390, 1.442695
        %v3398 = vpow.pop %v3397
        %v3399 = vadd.f32 %v3392, 1.0
        %v3400 = vlog2.pop %v3399
        %v3401 = vmul.f32 %v3400, 0.6931472
        %v3402 = vmul.f32 -0.5, %v3392
        %v3403 = vadd.f32 %v3402, 1.0
        %v3404 = vmul.f32 %v3403, %v3392
        %v3405 = vand.u32 2147483647, %v3392
        %vm3406 = vcmp.lt.f32.partialorder %v3405, 0.0004427343
        %v3407 = vsel %vm3406, %v3404, %v3401
        %v3408 = vadd.f32 %v3394, 1.0
        %v3409 = vlog2.pop %v3408
        %v3410 = vmul.f32 %v3409, 0.6931472
        %v3411 = vmul.f32 -0.5, %v3394
        %v3412 = vadd.f32 %v3411, 1.0
        %v3413 = vmul.f32 %v3412, %v3394
        %v3414 = vand.u32 2147483647, %v3394
        %vm3415 = vcmp.lt.f32.partialorder %v3414, 0.0004427343
        %v3416 = vsel %vm3415, %v3413, %v3410
        %v3417 = vadd.f32 %v3396, 1.0
        %v3418 = vlog2.pop %v3417
        %v3419 = vmul.f32 %v3418, 0.6931472
        %v3420 = vmul.f32 -0.5, %v3396
        %v3421 = vadd.f32 %v3420, 1.0
        %v3422 = vmul.f32 %v3421, %v3396
        %v3423 = vand.u32 2147483647, %v3396
        %vm3424 = vcmp.lt.f32.partialorder %v3423, 0.0004427343
        %v3425 = vsel %vm3424, %v3422, %v3419
        %v3426 = vadd.f32 %v3398, 1.0
        %v3427 = vlog2.pop %v3426
        %v3428 = vmul.f32 %v3427, 0.6931472
        %v3429 = vmul.f32 -0.5, %v3398
        %v3430 = vadd.f32 %v3429, 1.0
        %v3431 = vmul.f32 %v3430, %v3398
        %v3432 = vand.u32 2147483647, %v3398
        %vm3433 = vcmp.lt.f32.partialorder %v3432, 0.0004427343
        %v3434 = vsel %vm3433, %v3431, %v3428
        %v3435 = vadd.f32 %v3371, %v3407
        %v3436 = vadd.f32 %v3372, %v3416
        %v3437 = vadd.f32 %v3373, %v3425
        %v3438 = vadd.f32 %v3374, %v3434
        %v3439 = vsel %vm3375, %v3379, %v3435
        %v3440 = vsel %vm3376, %v3380, %v3436
        %v3441 = vsel %vm3377, %v3381, %v3437
        %v3442 = vsel %vm3378, %v3382, %v3438
        %v3443 = vsub.f32 %v2013, %v3439
        %v3444 = vsub.f32 %v2013, %v3440
        %v3445 = vsub.f32 %v2013, %v3441
        %v3446 = vsub.f32 %v2013, %v3442
        %v3447 = vsub.f32 %v3443, %v2099
        %v3448 = vsub.f32 %v3444, %v2099
        %v3449 = vsub.f32 %v3445, %v2099
        %v3450 = vsub.f32 %v3446, %v2099
        %v3451 = vmax.f32 %v3447, 0.0
        %v3452 = vmax.f32 %v3448, 0.0
        %v3453 = vmax.f32 %v3449, 0.0
        %v3454 = vmax.f32 %v3450, 0.0
        %vm3455 = vcmp.ne.f32.partialorder %v3447, %v3447
        %vm3456 = vcmp.ne.f32.partialorder %v3448, %v3448
        %vm3457 = vcmp.ne.f32.partialorder %v3449, %v3449
        %vm3458 = vcmp.ne.f32.partialorder %v3450, %v3450
        %v3459 = vadd.f32 %v3447, 0.0
        %v3460 = vadd.f32 %v3448, 0.0
        %v3461 = vadd.f32 %v3449, 0.0
        %v3462 = vadd.f32 %v3450, 0.0
        %v3463 = vand.u32 2147483647, %v3447
        %v3464 = vand.u32 2147483647, %v3448
        %v3465 = vand.u32 2147483647, %v3449
        %v3466 = vand.u32 2147483647, %v3450
        %v3467 = vsub.f32 0.0, %v3463
        %v3468 = vsub.f32 0.0, %v3464
        %v3469 = vsub.f32 0.0, %v3465
        %v3470 = vsub.f32 0.0, %v3466
        %v3471 = vmul.f32 %v3467, 1.442695
        %v3472 = vpow.pop %v3471
        %v3473 = vmul.f32 %v3468, 1.442695
        %v3474 = vpow.pop %v3473
        %v3475 = vmul.f32 %v3469, 1.442695
        %v3476 = vpow.pop %v3475
        %v3477 = vmul.f32 %v3470, 1.442695
        %v3478 = vpow.pop %v3477
        %v3479 = vadd.f32 %v3472, 1.0
        %v3480 = vlog2.pop %v3479
        %v3481 = vmul.f32 %v3480, 0.6931472
        %v3482 = vmul.f32 -0.5, %v3472
        %v3483 = vadd.f32 %v3482, 1.0
        %v3484 = vmul.f32 %v3483, %v3472
        %v3485 = vand.u32 2147483647, %v3472
        %vm3486 = vcmp.lt.f32.partialorder %v3485, 0.0004427343
        %v3487 = vsel %vm3486, %v3484, %v3481
        %v3488 = vadd.f32 %v3474, 1.0
        %v3489 = vlog2.pop %v3488
        %v3490 = vmul.f32 %v3489, 0.6931472
        %v3491 = vmul.f32 -0.5, %v3474
        %v3492 = vadd.f32 %v3491, 1.0
        %v3493 = vmul.f32 %v3492, %v3474
        %v3494 = vand.u32 2147483647, %v3474
        %vm3495 = vcmp.lt.f32.partialorder %v3494, 0.0004427343
        %v3496 = vsel %vm3495, %v3493, %v3490
        %v3497 = vadd.f32 %v3476, 1.0
        %v3498 = vlog2.pop %v3497
        %v3499 = vmul.f32 %v3498, 0.6931472
        %v3500 = vmul.f32 -0.5, %v3476
        %v3501 = vadd.f32 %v3500, 1.0
        %v3502 = vmul.f32 %v3501, %v3476
        %v3503 = vand.u32 2147483647, %v3476
        %vm3504 = vcmp.lt.f32.partialorder %v3503, 0.0004427343
        %v3505 = vsel %vm3504, %v3502, %v3499
        %v3506 = vadd.f32 %v3478, 1.0
        %v3507 = vlog2.pop %v3506
        %v3508 = vmul.f32 %v3507, 0.6931472
        %v3509 = vmul.f32 -0.5, %v3478
        %v3510 = vadd.f32 %v3509, 1.0
        %v3511 = vmul.f32 %v3510, %v3478
        %v3512 = vand.u32 2147483647, %v3478
        %vm3513 = vcmp.lt.f32.partialorder %v3512, 0.0004427343
        %v3514 = vsel %vm3513, %v3511, %v3508
        %v3515 = vadd.f32 %v3451, %v3487
        %v3516 = vadd.f32 %v3452, %v3496
        %v3517 = vadd.f32 %v3453, %v3505
        %v3518 = vadd.f32 %v3454, %v3514
        %v3519 = vsel %vm3455, %v3459, %v3515
        %v3520 = vsel %vm3456, %v3460, %v3516
        %v3521 = vsel %vm3457, %v3461, %v3517
        %v3522 = vsel %vm3458, %v3462, %v3518
        %v3523 = vadd.f32 %v2099, %v3519
        %v3524 = vadd.f32 %v2099, %v3520
        %v3525 = vadd.f32 %v2099, %v3521
        %v3526 = vadd.f32 %v2099, %v3522
        %s3527 = scalar_lea.vmem %s776, 32 [#allocation10]
        %3528 = vst [vmem:[%s3527] sm:$0xff] %v3167
        %3529 = vst [vmem:[%s3527 + $0x8] sm:$0xff] %v3170
        %3530 = vst [vmem:[%s3527 + $0x10] sm:$0xff] %v3175
        %3531 = vst [vmem:[%s3527 + $0x18] sm:$0xff] %v3178
        %v3532 = vmul.f32 %v3523, 1.442695
        %v3533 = vpow.pop %v3532
        %v3534 = vmul.f32 %v3524, 1.442695
        %v3535 = vpow.pop %v3534
        %v3536 = vmul.f32 %v3525, 1.442695
        %v3537 = vpow.pop %v3536
        %v3538 = vmul.f32 %v3526, 1.442695
        %v3539 = vpow.pop %v3538
        %s3540 = scalar_lea.vmem %s783, 32 [#allocation11]
        %3541 = vst [vmem:[%s3540] sm:$0xff] %v3533
        %3542 = vst [vmem:[%s3540 + $0x8] sm:$0xff] %v3535
        %3543 = vst [vmem:[%s3540 + $0x10] sm:$0xff] %v3537
        %3544 = vst [vmem:[%s3540 + $0x18] sm:$0xff] %v3539
        %s3545 = sand.u32 %s421, 1
        %s3546 = scalar_lea.sflag [#allocation4], %s3545
        %s3547 = sand.u32 %s421, 1
        %s3548 = smul.addr %s3547, 64
        %s3549 = scalar_lea.vmem [#allocation10], %s3548
        %s3550 = sand.u32 %s447, 1
        %s3551 = scalar_lea.sflag [#allocation12], %s3550
        %s3552 = sand.u32 %s447, 1
        %s3553 = smul.addr %s3552, 64
        %s3554 = scalar_lea.vmem [#allocation11], %s3553
        // Predicated region
        $region97: #{tpu_custom_call.1} parent=79 // pred_check
          %p3555 = pneg %p431
        $region98: #{tpu_custom_call.1} parent=79 // pred_check_branch
          %3557 = sbr.rel (%p3555) target = $region100
        $region99: #{tpu_custom_call.1} parent=79 // pred_region
          %s3558 = smul.u32 2, %s43
          %s3560 = ssub.s32 1024, 1024
          %3561 = vsyncadd %s3546, %s3560
          %s3562 = smul.addr %s3558, 4
          %s3563 = smul.addr %s3562, 128
          %s3564 = scalar_lea.hbm %s15, %s3563
          %s3565 = sshll.u32 %s3549, 4
          %s3566 = int_to_ptr.vmem [resolvable:$true] %s3565
          %3571 = dma.vmem_to_hbm [thread:$0]  %s3566, 1024, %s3564, %s3546, 128, 128, 8
        $region100: #{tpu_custom_call.1} parent=79 // pred_fallthru
          _
        // Predicated region
        $region101: #{tpu_custom_call.1} parent=79 // pred_check
          %p3572 = pneg %p457
        $region102: #{tpu_custom_call.1} parent=79 // pred_check_branch
          %3574 = sbr.rel (%p3572) target = $region104
        $region103: #{tpu_custom_call.1} parent=79 // pred_region
          %s3575 = smul.u32 2, %s43
          %s3577 = ssub.s32 1024, 1024
          %3578 = vsyncadd %s3551, %s3577
          %s3579 = smul.addr %s3575, 4
          %s3580 = smul.addr %s3579, 128
          %s3581 = scalar_lea.hbm %s16, %s3580
          %s3582 = sshll.u32 %s3554, 4
          %s3583 = int_to_ptr.vmem [resolvable:$true] %s3582
          %3588 = dma.vmem_to_hbm [thread:$0]  %s3583, 1024, %s3581, %s3551, 128, 128, 8
        $region104: #{tpu_custom_call.1} parent=79 // pred_fallthru
          _
      $region80: #{tpu_custom_call.1} parent=5 // pred_fallthru
        _
      %p3589 = scmp.le.s32.totalorder 2, %s38
      // Predicated region
      $region105: #{tpu_custom_call.1} parent=5 // pred_check
        %p3590 = pneg %p3589
      $region106: #{tpu_custom_call.1} parent=5 // pred_check_branch
        %3592 = sbr.rel (%p3590) target = $region108
      $region107: #{tpu_custom_call.1} parent=5 // pred_region
        %s3593 = ssub.s32 %s38, 2
        // Predicated region
        $region109: #{tpu_custom_call.1} parent=107 // pred_check
          %p3594 = pneg %p437
        $region110: #{tpu_custom_call.1} parent=107 // pred_check_branch
          %3596 = sbr.rel (%p3594) target = $region112
        $region111: #{tpu_custom_call.1} parent=107 // pred_region
          %s3597 = sand.u32 %s422, 1
          %s3598 = scalar_lea.sflag [#allocation4], %s3597
          %s3599 = sand.u32 %s422, 1
          %s3600 = smul.addr %s3599, 64
          %s3601 = scalar_lea.vmem [#allocation10], %s3600
          %3602 = dma.done %s3598, 1024
        $region112: #{tpu_custom_call.1} parent=107 // pred_fallthru
          _
        // Predicated region
        $region113: #{tpu_custom_call.1} parent=107 // pred_check
          %p3603 = pneg %p463
        $region114: #{tpu_custom_call.1} parent=107 // pred_check_branch
          %3605 = sbr.rel (%p3603) target = $region116
        $region115: #{tpu_custom_call.1} parent=107 // pred_region
          %s3606 = sand.u32 %s448, 1
          %s3607 = scalar_lea.sflag [#allocation12], %s3606
          %s3608 = sand.u32 %s448, 1
          %s3609 = smul.addr %s3608, 64
          %s3610 = scalar_lea.vmem [#allocation11], %s3609
          %3611 = dma.done %s3607, 1024
        $region116: #{tpu_custom_call.1} parent=107 // pred_fallthru
          _
      $region108: #{tpu_custom_call.1} parent=5 // pred_fallthru
        _
    $region6: #{tpu_custom_call.1} parent=1 // loop_footer
      %s42 = sadd.s32 1, %s38
    $region7: #{tpu_custom_call.1} parent=1 // loop_footer_branch
      %37 = sbr.rel target = $region3
    $region8: #{tpu_custom_call.1} parent=1 // loop_exit
      _
    %3612 = vsyncpa [#allocation3], 1
    %s3613 = scalar_lea.sflag [#allocation3], 1
    %3614 = vsyncpa %s3613, 1
    %3615 = vsyncpa [#allocation6], 1
    %s3616 = scalar_lea.sflag [#allocation6], 1
    %3617 = vsyncpa %s3616, 1
    %3618 = vsyncpa [#allocation9], 1
    %s3619 = scalar_lea.sflag [#allocation9], 1
    %3620 = vsyncpa %s3619, 1
    %3621 = vsyncpa [#allocation4], 1
    %s3622 = scalar_lea.sflag [#allocation4], 1
    %3623 = vsyncpa %s3622, 1
    %3624 = vsyncpa [#allocation12], 1
    %s3625 = scalar_lea.sflag [#allocation12], 1
    %3626 = vsyncpa %s3625, 1

</llo_original>
